<compile_context>
chip_gen: v5e
topology: v5e:2x2
jax: 0.10.0
libtpu: 0.0.40
codegen_flags: <defaults>
</compile_context>

<pallas_src>
import functools

import jax
import jax.numpy as jnp
from jax import lax
from jax.experimental import pallas as pl
from jax.experimental.pallas import tpu as pltpu


def decoder_kernel(Bp, T,
                   x_ref, wih0_ref, whh0_ref, wih1_ref, whh1_ref, fcw_ref, fcb_ref,
                   o_ref,
                   h0_seq_ref, h1_seq_ref, gi_r_ref, gi_z_ref, gi_n_ref):
    """x_ref: (T*Bp, I) time-major, batch-padded & flattened.  o_ref: (T*Bp, H).
    wih*/whh*: (3, K, H) per-gate pre-transposed weights, gate order [r, z, n]."""

    def layer_pass(inp_flat, wih_ref, whh_ref, h_seq_ref):
        # Hoist weight loads (per-gate, already transposed -> no XLU work).
        wih_r, wih_z, wih_n = wih_ref[0], wih_ref[1], wih_ref[2]
        whh_r, whh_z, whh_n = whh_ref[0], whh_ref[1], whh_ref[2]

        # Time-independent input-to-hidden products for ALL timesteps at once:
        # one batched MXU matmul per gate, off the serial recurrence chain.
        gi_r_ref[...] = jnp.dot(inp_flat, wih_r, preferred_element_type=jnp.float32)
        gi_z_ref[...] = jnp.dot(inp_flat, wih_z, preferred_element_type=jnp.float32)
        gi_n_ref[...] = jnp.dot(inp_flat, wih_n, preferred_element_type=jnp.float32)

        H = whh_r.shape[1]
        h = jnp.zeros((Bp, H), jnp.float32)
        # Fully unrolled (T static): LLO can overlap MXU pushes with the gate
        # math of neighbouring steps; only gh_* matmuls are on the dependent
        # chain.  All slice offsets are static and 8-sublane aligned.
        for t in range(T):
            rows = pl.ds(t * Bp, Bp)
            gh_r = jnp.dot(h, whh_r, preferred_element_type=jnp.float32)
            gh_z = jnp.dot(h, whh_z, preferred_element_type=jnp.float32)
            gh_n = jnp.dot(h, whh_n, preferred_element_type=jnp.float32)
            r = jax.nn.sigmoid(gi_r_ref[rows, :] + gh_r)
            z = jax.nn.sigmoid(gi_z_ref[rows, :] + gh_z)
            n = jnp.tanh(gi_n_ref[rows, :] + r * gh_n)
            h = (1.0 - z) * n + z * h
            h_seq_ref[rows, :] = h

    # Layer 0 over all T, then layer 1 (distinct scratches -> no read/write alias).
    layer_pass(x_ref[...], wih0_ref, whh0_ref, h0_seq_ref)
    # TODO(synk): inter-layer dropout (p=0.1) is train-time only; identity in eval mode.
    layer_pass(h0_seq_ref[...], wih1_ref, whh1_ref, h1_seq_ref)

    # Single batched FC + one aligned store of the whole output block.
    o_ref[...] = jnp.dot(h1_seq_ref[...], fcw_ref[...],
                         preferred_element_type=jnp.float32) + fcb_ref[...]


def decoder_forward(x, w_ih0, w_hh0, w_ih1, w_hh1, fc_w, fc_b):
    """x: (B, T, I); GRU weights in PyTorch layout (3H, K), gate order [r,z,n];
    fc_w: (H, H), fc_b: (H,).  Returns (B, T, H)."""
    B, T, I = x.shape
    H = w_hh0.shape[1]
    Bp = ((B + 7) // 8) * 8          # pad batch to a sublane multiple

    # ---- wrapper-side layout prep (cheap, off-kernel XLA ops) ----
    # time-major, batch-padded, flattened activations: row index = t*Bp + b
    x_tm = jnp.transpose(x, (1, 0, 2)).astype(jnp.float32)        # (T, B, I)
    x_tm = jnp.pad(x_tm, ((0, 0), (0, Bp - B), (0, 0)))           # (T, Bp, I)
    x_flat = x_tm.reshape(T * Bp, I)

    def prep(w, k):
        # (3H, k) PyTorch [r,z,n] -> (3, k, H) per-gate, pre-transposed
        return jnp.transpose(w.reshape(3, H, k), (0, 2, 1)).astype(jnp.float32)

    wih0 = prep(w_ih0, I)      # (3, I, H)
    whh0 = prep(w_hh0, H)      # (3, H, H)
    wih1 = prep(w_ih1, H)      # (3, H, H)
    whh1 = prep(w_hh1, H)      # (3, H, H)
    fcw_t = fc_w.T.astype(jnp.float32)            # (H, H)
    fcb2 = fc_b.reshape(1, H).astype(jnp.float32)

    def full_spec(shape):
        nd = len(shape)
        return pl.BlockSpec(shape, lambda i, _nd=nd: (0,) * _nd)

    flops = (2 * T * Bp * (I * 3 * H + H * 3 * H)      # layer 0: gi + gh
             + 2 * T * Bp * (H * 3 * H + H * 3 * H)    # layer 1: gi + gh
             + 2 * T * Bp * H * H)                     # fc
    transcendentals = 2 * T * 3 * Bp * H               # 2 sigmoid + 1 tanh / layer / step
    bytes_accessed = 4 * (x_flat.size + wih0.size + whh0.size + wih1.size
                          + whh1.size + fcw_t.size + fcb2.size + T * Bp * H)

    out_flat = pl.pallas_call(
        functools.partial(decoder_kernel, Bp, T),
        out_shape=jax.ShapeDtypeStruct((T * Bp, H), jnp.float32),
        grid=(1,),
        in_specs=[full_spec(a.shape)
                  for a in (x_flat, wih0, whh0, wih1, whh1, fcw_t, fcb2)],
        out_specs=full_spec((T * Bp, H)),
        scratch_shapes=[
            pltpu.VMEM((T * Bp, H), jnp.float32),   # layer-0 hidden sequence
            pltpu.VMEM((T * Bp, H), jnp.float32),   # layer-1 hidden sequence
            pltpu.VMEM((T * Bp, H), jnp.float32),   # gi_r (all timesteps)
            pltpu.VMEM((T * Bp, H), jnp.float32),   # gi_z
            pltpu.VMEM((T * Bp, H), jnp.float32),   # gi_n
        ],
        compiler_params=pltpu.CompilerParams(
            dimension_semantics=("arbitrary",)),
        cost_estimate=pl.CostEstimate(
            flops=flops, transcendentals=transcendentals,
            bytes_accessed=bytes_accessed),
    )(x_flat, wih0, whh0, wih1, whh1, fcw_t, fcb2)

    # (T*Bp, H) -> drop batch padding -> (B, T, H)  (batch_first, matching PyTorch)
    out = out_flat.reshape(T, Bp, H)[:, :B, :]
    return jnp.transpose(out, (1, 0, 2))


# -------- pure-JAX reference (same math) for a correctness check --------
def _ref_gru_layer(x, w_ih, w_hh):
    B, T, _ = x.shape
    H = w_hh.shape[1]

    def step(h, x_t):
        gi = x_t @ w_ih.T
        gh = h @ w_hh.T
        r = jax.nn.sigmoid(gi[:, :H] + gh[:, :H])
        z = jax.nn.sigmoid(gi[:, H:2 * H] + gh[:, H:2 * H])
        n = jnp.tanh(gi[:, 2 * H:] + r * gh[:, 2 * H:])
        h_new = (1.0 - z) * n + z * h
        return h_new, h_new

    _, ys = lax.scan(step, jnp.zeros((B, H), jnp.float32),
                     jnp.transpose(x, (1, 0, 2)))
    return jnp.transpose(ys, (1, 0, 2))


def decoder_reference(x, w_ih0, w_hh0, w_ih1, w_hh1, fc_w, fc_b):
    h0_seq = _ref_gru_layer(x, w_ih0, w_hh0)
    h1_seq = _ref_gru_layer(h0_seq, w_ih1, w_hh1)
    return h1_seq @ fc_w.T + fc_b


if __name__ == "__main__":
    # Params (matches the dataclass defaults except a small seq_len / batch).
    B = 2          # batch
    T = 8          # seq_len (small; spec default is 90, T >= 1 assumed)
    I = 4          # params.hidden_size  -> GRU input_size
    H = 18         # params.num_features -> GRU hidden_size / fc in & out

    key = jax.random.PRNGKey(0)
    ks = jax.random.split(key, 7)
    bound = 1.0 / jnp.sqrt(H)
    u = lambda k, shape: jax.random.uniform(k, shape, jnp.float32, -bound, bound)

    x = jax.random.normal(ks[0], (B, T, I), jnp.float32)
    w_ih_l0 = u(ks[1], (3 * H, I))    # layer 0: input_size = I
    w_hh_l0 = u(ks[2], (3 * H, H))
    w_ih_l1 = u(ks[3], (3 * H, H))    # layer 1: input_size = H
    w_hh_l1 = u(ks[4], (3 * H, H))
    fc_w = u(ks[5], (H, H))
    fc_b = u(ks[6], (H,))

    out = decoder_forward(x, w_ih_l0, w_hh_l0, w_ih_l1, w_hh_l1, fc_w, fc_b)
    out = jax.block_until_ready(out)

    ref = decoder_reference(x, w_ih_l0, w_hh_l0, w_ih_l1, w_hh_l1, fc_w, fc_b)
    assert out.shape == (B, T, H)
    assert jnp.allclose(out, ref, atol=5e-5, rtol=5e-5), \
        f"max err {jnp.max(jnp.abs(out - ref))}"

    print("KERNEL_OK")
</pallas_src>

<mosaic_0001>
module attributes {stable_mosaic.version = 11 : i64} {
  func.func @decoder_kernel(%arg0: i32, %arg1: memref<64x4xf32, #tpu.memory_space<vmem>>, %arg2: memref<3x4x18xf32, #tpu.memory_space<vmem>>, %arg3: memref<3x18x18xf32, #tpu.memory_space<vmem>>, %arg4: memref<3x18x18xf32, #tpu.memory_space<vmem>>, %arg5: memref<3x18x18xf32, #tpu.memory_space<vmem>>, %arg6: memref<18x18xf32, #tpu.memory_space<vmem>>, %arg7: memref<1x18xf32, #tpu.memory_space<vmem>>, %arg8: memref<64x18xf32, #tpu.memory_space<vmem>>, %arg9: memref<64x18xf32, #tpu.memory_space<vmem>>, %arg10: memref<64x18xf32, #tpu.memory_space<vmem>>, %arg11: memref<64x18xf32, #tpu.memory_space<vmem>>, %arg12: memref<64x18xf32, #tpu.memory_space<vmem>>, %arg13: memref<64x18xf32, #tpu.memory_space<vmem>>) attributes {dimension_semantics = [#tpu.dimension_semantics<arbitrary>], iteration_bounds = array<i64: 1>, scalar_prefetch = 0 : i64, scratch_operands = 5 : i64, tpu.core_type = #tpu.core_type<tc>, window_params = [{pipeline_mode = #tpu.pipeline_mode<synchronous>, transform_indices = @transform_0, window_bounds = array<i64: 64, 4>}, {pipeline_mode = #tpu.pipeline_mode<synchronous>, transform_indices = @transform_1, window_bounds = array<i64: 3, 4, 18>}, {pipeline_mode = #tpu.pipeline_mode<synchronous>, transform_indices = @transform_2, window_bounds = array<i64: 3, 18, 18>}, {pipeline_mode = #tpu.pipeline_mode<synchronous>, transform_indices = @transform_3, window_bounds = array<i64: 3, 18, 18>}, {pipeline_mode = #tpu.pipeline_mode<synchronous>, transform_indices = @transform_4, window_bounds = array<i64: 3, 18, 18>}, {pipeline_mode = #tpu.pipeline_mode<synchronous>, transform_indices = @transform_5, window_bounds = array<i64: 18, 18>}, {pipeline_mode = #tpu.pipeline_mode<synchronous>, transform_indices = @transform_6, window_bounds = array<i64: 1, 18>}, {pipeline_mode = #tpu.pipeline_mode<synchronous>, transform_indices = @transform_7, window_bounds = array<i64: 64, 18>}]} {
    %c0 = arith.constant 0 : index
    %c0_0 = arith.constant 0 : index
    %0 = vector.load %arg1[%c0, %c0_0] : memref<64x4xf32, #tpu.memory_space<vmem>>, vector<64x4xf32>
    %c0_1 = arith.constant 0 : index
    %c0_2 = arith.constant 0 : index
    %c0_3 = arith.constant 0 : index
    %1 = vector.load %arg2[%c0_1, %c0_2, %c0_3] : memref<3x4x18xf32, #tpu.memory_space<vmem>>, vector<1x4x18xf32>
    %2 = vector.shape_cast %1 : vector<1x4x18xf32> to vector<4x18xf32>
    %c1 = arith.constant 1 : index
    %c0_4 = arith.constant 0 : index
    %c0_5 = arith.constant 0 : index
    %3 = vector.load %arg2[%c1, %c0_4, %c0_5] : memref<3x4x18xf32, #tpu.memory_space<vmem>>, vector<1x4x18xf32>
    %4 = vector.shape_cast %3 : vector<1x4x18xf32> to vector<4x18xf32>
    %c2 = arith.constant 2 : index
    %c0_6 = arith.constant 0 : index
    %c0_7 = arith.constant 0 : index
    %5 = vector.load %arg2[%c2, %c0_6, %c0_7] : memref<3x4x18xf32, #tpu.memory_space<vmem>>, vector<1x4x18xf32>
    %6 = vector.shape_cast %5 : vector<1x4x18xf32> to vector<4x18xf32>
    %c0_8 = arith.constant 0 : index
    %c0_9 = arith.constant 0 : index
    %c0_10 = arith.constant 0 : index
    %7 = vector.load %arg3[%c0_8, %c0_9, %c0_10] : memref<3x18x18xf32, #tpu.memory_space<vmem>>, vector<1x18x18xf32>
    %8 = vector.shape_cast %7 : vector<1x18x18xf32> to vector<18x18xf32>
    %c1_11 = arith.constant 1 : index
    %c0_12 = arith.constant 0 : index
    %c0_13 = arith.constant 0 : index
    %9 = vector.load %arg3[%c1_11, %c0_12, %c0_13] : memref<3x18x18xf32, #tpu.memory_space<vmem>>, vector<1x18x18xf32>
    %10 = vector.shape_cast %9 : vector<1x18x18xf32> to vector<18x18xf32>
    %c2_14 = arith.constant 2 : index
    %c0_15 = arith.constant 0 : index
    %c0_16 = arith.constant 0 : index
    %11 = vector.load %arg3[%c2_14, %c0_15, %c0_16] : memref<3x18x18xf32, #tpu.memory_space<vmem>>, vector<1x18x18xf32>
    %12 = vector.shape_cast %11 : vector<1x18x18xf32> to vector<18x18xf32>
    %cst = arith.constant dense<0.000000e+00> : vector<64x18xf32>
    %13 = tpu.matmul %0, %2, %cst {dimension_numbers = #tpu.dot_dimension_numbers<[1], [0], [0], [1], [0, 0, 1, 1], [], []>} : vector<64x4xf32>, vector<4x18xf32>, vector<64x18xf32> -> vector<64x18xf32>
    %c0_17 = arith.constant 0 : index
    %c0_18 = arith.constant 0 : index
    %14 = vector.load %arg11[%c0_17, %c0_18] : memref<64x18xf32, #tpu.memory_space<vmem>>, vector<64x18xf32>
    tpu.vector_store %arg11[%c0_17, %c0_18], %13 {strides = array<i32>} : memref<64x18xf32, #tpu.memory_space<vmem>>, vector<64x18xf32>,
    %cst_19 = arith.constant dense<0.000000e+00> : vector<64x18xf32>
    %15 = tpu.matmul %0, %4, %cst_19 {dimension_numbers = #tpu.dot_dimension_numbers<[1], [0], [0], [1], [0, 0, 1, 1], [], []>} : vector<64x4xf32>, vector<4x18xf32>, vector<64x18xf32> -> vector<64x18xf32>
    %c0_20 = arith.constant 0 : index
    %c0_21 = arith.constant 0 : index
    %16 = vector.load %arg12[%c0_20, %c0_21] : memref<64x18xf32, #tpu.memory_space<vmem>>, vector<64x18xf32>
    tpu.vector_store %arg12[%c0_20, %c0_21], %15 {strides = array<i32>} : memref<64x18xf32, #tpu.memory_space<vmem>>, vector<64x18xf32>,
    %cst_22 = arith.constant dense<0.000000e+00> : vector<64x18xf32>
    %17 = tpu.matmul %0, %6, %cst_22 {dimension_numbers = #tpu.dot_dimension_numbers<[1], [0], [0], [1], [0, 0, 1, 1], [], []>} : vector<64x4xf32>, vector<4x18xf32>, vector<64x18xf32> -> vector<64x18xf32>
    %c0_23 = arith.constant 0 : index
    %c0_24 = arith.constant 0 : index
    %18 = vector.load %arg13[%c0_23, %c0_24] : memref<64x18xf32, #tpu.memory_space<vmem>>, vector<64x18xf32>
    tpu.vector_store %arg13[%c0_23, %c0_24], %17 {strides = array<i32>} : memref<64x18xf32, #tpu.memory_space<vmem>>, vector<64x18xf32>,
    %cst_25 = arith.constant 0.000000e+00 : f32
    %19 = vector.broadcast %cst_25 : f32 to vector<8x18xf32>
    %cst_26 = arith.constant dense<0.000000e+00> : vector<8x18xf32>
    %20 = tpu.matmul %19, %8, %cst_26 {dimension_numbers = #tpu.dot_dimension_numbers<[1], [0], [0], [1], [0, 0, 1, 1], [], []>} : vector<8x18xf32>, vector<18x18xf32>, vector<8x18xf32> -> vector<8x18xf32>
    %cst_27 = arith.constant dense<0.000000e+00> : vector<8x18xf32>
    %21 = tpu.matmul %19, %10, %cst_27 {dimension_numbers = #tpu.dot_dimension_numbers<[1], [0], [0], [1], [0, 0, 1, 1], [], []>} : vector<8x18xf32>, vector<18x18xf32>, vector<8x18xf32> -> vector<8x18xf32>
    %cst_28 = arith.constant dense<0.000000e+00> : vector<8x18xf32>
    %22 = tpu.matmul %19, %12, %cst_28 {dimension_numbers = #tpu.dot_dimension_numbers<[1], [0], [0], [1], [0, 0, 1, 1], [], []>} : vector<8x18xf32>, vector<18x18xf32>, vector<8x18xf32> -> vector<8x18xf32>
    %c0_29 = arith.constant 0 : index
    %c0_30 = arith.constant 0 : index
    %23 = vector.load %arg11[%c0_29, %c0_30] : memref<64x18xf32, #tpu.memory_space<vmem>>, vector<8x18xf32>
    %24 = arith.addf %23, %20 : vector<8x18xf32>
    %25 = arith.negf %24 : vector<8x18xf32>
    %26 = math.exp %25 : vector<8x18xf32>
    %cst_31 = arith.constant 1.000000e+00 : f32
    %27 = vector.broadcast %cst_31 : f32 to vector<8x18xf32>
    %28 = arith.addf %27, %26 : vector<8x18xf32>
    %29 = arith.divf %27, %28 : vector<8x18xf32>
    %c0_32 = arith.constant 0 : index
    %c0_33 = arith.constant 0 : index
    %30 = vector.load %arg12[%c0_32, %c0_33] : memref<64x18xf32, #tpu.memory_space<vmem>>, vector<8x18xf32>
    %31 = arith.addf %30, %21 : vector<8x18xf32>
    %32 = arith.negf %31 : vector<8x18xf32>
    %33 = math.exp %32 : vector<8x18xf32>
    %cst_34 = arith.constant 1.000000e+00 : f32
    %34 = vector.broadcast %cst_34 : f32 to vector<8x18xf32>
    %35 = arith.addf %34, %33 : vector<8x18xf32>
    %36 = arith.divf %34, %35 : vector<8x18xf32>
    %c0_35 = arith.constant 0 : index
    %c0_36 = arith.constant 0 : index
    %37 = vector.load %arg13[%c0_35, %c0_36] : memref<64x18xf32, #tpu.memory_space<vmem>>, vector<8x18xf32>
    %38 = arith.mulf %29, %22 : vector<8x18xf32>
    %39 = arith.addf %37, %38 : vector<8x18xf32>
    %40 = math.tanh %39 : vector<8x18xf32>
    %cst_37 = arith.constant 1.000000e+00 : f32
    %41 = vector.broadcast %cst_37 : f32 to vector<8x18xf32>
    %42 = arith.subf %41, %36 : vector<8x18xf32>
    %43 = arith.mulf %42, %40 : vector<8x18xf32>
    %44 = arith.mulf %36, %19 : vector<8x18xf32>
    %45 = arith.addf %43, %44 : vector<8x18xf32>
    %c0_38 = arith.constant 0 : index
    %c0_39 = arith.constant 0 : index
    %46 = vector.load %arg9[%c0_38, %c0_39] : memref<64x18xf32, #tpu.memory_space<vmem>>, vector<8x18xf32>
    tpu.vector_store %arg9[%c0_38, %c0_39], %45 {strides = array<i32>} : memref<64x18xf32, #tpu.memory_space<vmem>>, vector<8x18xf32>,
    %cst_40 = arith.constant dense<0.000000e+00> : vector<8x18xf32>
    %47 = tpu.matmul %45, %8, %cst_40 {dimension_numbers = #tpu.dot_dimension_numbers<[1], [0], [0], [1], [0, 0, 1, 1], [], []>} : vector<8x18xf32>, vector<18x18xf32>, vector<8x18xf32> -> vector<8x18xf32>
    %cst_41 = arith.constant dense<0.000000e+00> : vector<8x18xf32>
    %48 = tpu.matmul %45, %10, %cst_41 {dimension_numbers = #tpu.dot_dimension_numbers<[1], [0], [0], [1], [0, 0, 1, 1], [], []>} : vector<8x18xf32>, vector<18x18xf32>, vector<8x18xf32> -> vector<8x18xf32>
    %cst_42 = arith.constant dense<0.000000e+00> : vector<8x18xf32>
    %49 = tpu.matmul %45, %12, %cst_42 {dimension_numbers = #tpu.dot_dimension_numbers<[1], [0], [0], [1], [0, 0, 1, 1], [], []>} : vector<8x18xf32>, vector<18x18xf32>, vector<8x18xf32> -> vector<8x18xf32>
    %c8 = arith.constant 8 : index
    %c0_43 = arith.constant 0 : index
    %50 = vector.load %arg11[%c8, %c0_43] : memref<64x18xf32, #tpu.memory_space<vmem>>, vector<8x18xf32>
    %51 = arith.addf %50, %47 : vector<8x18xf32>
    %52 = arith.negf %51 : vector<8x18xf32>
    %53 = math.exp %52 : vector<8x18xf32>
    %cst_44 = arith.constant 1.000000e+00 : f32
    %54 = vector.broadcast %cst_44 : f32 to vector<8x18xf32>
    %55 = arith.addf %54, %53 : vector<8x18xf32>
    %56 = arith.divf %54, %55 : vector<8x18xf32>
    %c8_45 = arith.constant 8 : index
    %c0_46 = arith.constant 0 : index
    %57 = vector.load %arg12[%c8_45, %c0_46] : memref<64x18xf32, #tpu.memory_space<vmem>>, vector<8x18xf32>
    %58 = arith.addf %57, %48 : vector<8x18xf32>
    %59 = arith.negf %58 : vector<8x18xf32>
    %60 = math.exp %59 : vector<8x18xf32>
    %cst_47 = arith.constant 1.000000e+00 : f32
    %61 = vector.broadcast %cst_47 : f32 to vector<8x18xf32>
    %62 = arith.addf %61, %60 : vector<8x18xf32>
    %63 = arith.divf %61, %62 : vector<8x18xf32>
    %c8_48 = arith.constant 8 : index
    %c0_49 = arith.constant 0 : index
    %64 = vector.load %arg13[%c8_48, %c0_49] : memref<64x18xf32, #tpu.memory_space<vmem>>, vector<8x18xf32>
    %65 = arith.mulf %56, %49 : vector<8x18xf32>
    %66 = arith.addf %64, %65 : vector<8x18xf32>
    %67 = math.tanh %66 : vector<8x18xf32>
    %cst_50 = arith.constant 1.000000e+00 : f32
    %68 = vector.broadcast %cst_50 : f32 to vector<8x18xf32>
    %69 = arith.subf %68, %63 : vector<8x18xf32>
    %70 = arith.mulf %69, %67 : vector<8x18xf32>
    %71 = arith.mulf %63, %45 : vector<8x18xf32>
    %72 = arith.addf %70, %71 : vector<8x18xf32>
    %c8_51 = arith.constant 8 : index
    %c0_52 = arith.constant 0 : index
    %73 = vector.load %arg9[%c8_51, %c0_52] : memref<64x18xf32, #tpu.memory_space<vmem>>, vector<8x18xf32>
    tpu.vector_store %arg9[%c8_51, %c0_52], %72 {strides = array<i32>} : memref<64x18xf32, #tpu.memory_space<vmem>>, vector<8x18xf32>,
    %cst_53 = arith.constant dense<0.000000e+00> : vector<8x18xf32>
    %74 = tpu.matmul %72, %8, %cst_53 {dimension_numbers = #tpu.dot_dimension_numbers<[1], [0], [0], [1], [0, 0, 1, 1], [], []>} : vector<8x18xf32>, vector<18x18xf32>, vector<8x18xf32> -> vector<8x18xf32>
    %cst_54 = arith.constant dense<0.000000e+00> : vector<8x18xf32>
    %75 = tpu.matmul %72, %10, %cst_54 {dimension_numbers = #tpu.dot_dimension_numbers<[1], [0], [0], [1], [0, 0, 1, 1], [], []>} : vector<8x18xf32>, vector<18x18xf32>, vector<8x18xf32> -> vector<8x18xf32>
    %cst_55 = arith.constant dense<0.000000e+00> : vector<8x18xf32>
    %76 = tpu.matmul %72, %12, %cst_55 {dimension_numbers = #tpu.dot_dimension_numbers<[1], [0], [0], [1], [0, 0, 1, 1], [], []>} : vector<8x18xf32>, vector<18x18xf32>, vector<8x18xf32> -> vector<8x18xf32>
    %c16 = arith.constant 16 : index
    %c0_56 = arith.constant 0 : index
    %77 = vector.load %arg11[%c16, %c0_56] : memref<64x18xf32, #tpu.memory_space<vmem>>, vector<8x18xf32>
    %78 = arith.addf %77, %74 : vector<8x18xf32>
    %79 = arith.negf %78 : vector<8x18xf32>
    %80 = math.exp %79 : vector<8x18xf32>
    %cst_57 = arith.constant 1.000000e+00 : f32
    %81 = vector.broadcast %cst_57 : f32 to vector<8x18xf32>
    %82 = arith.addf %81, %80 : vector<8x18xf32>
    %83 = arith.divf %81, %82 : vector<8x18xf32>
    %c16_58 = arith.constant 16 : index
    %c0_59 = arith.constant 0 : index
    %84 = vector.load %arg12[%c16_58, %c0_59] : memref<64x18xf32, #tpu.memory_space<vmem>>, vector<8x18xf32>
    %85 = arith.addf %84, %75 : vector<8x18xf32>
    %86 = arith.negf %85 : vector<8x18xf32>
    %87 = math.exp %86 : vector<8x18xf32>
    %cst_60 = arith.constant 1.000000e+00 : f32
    %88 = vector.broadcast %cst_60 : f32 to vector<8x18xf32>
    %89 = arith.addf %88, %87 : vector<8x18xf32>
    %90 = arith.divf %88, %89 : vector<8x18xf32>
    %c16_61 = arith.constant 16 : index
    %c0_62 = arith.constant 0 : index
    %91 = vector.load %arg13[%c16_61, %c0_62] : memref<64x18xf32, #tpu.memory_space<vmem>>, vector<8x18xf32>
    %92 = arith.mulf %83, %76 : vector<8x18xf32>
    %93 = arith.addf %91, %92 : vector<8x18xf32>
    %94 = math.tanh %93 : vector<8x18xf32>
    %cst_63 = arith.constant 1.000000e+00 : f32
    %95 = vector.broadcast %cst_63 : f32 to vector<8x18xf32>
    %96 = arith.subf %95, %90 : vector<8x18xf32>
    %97 = arith.mulf %96, %94 : vector<8x18xf32>
    %98 = arith.mulf %90, %72 : vector<8x18xf32>
    %99 = arith.addf %97, %98 : vector<8x18xf32>
    %c16_64 = arith.constant 16 : index
    %c0_65 = arith.constant 0 : index
    %100 = vector.load %arg9[%c16_64, %c0_65] : memref<64x18xf32, #tpu.memory_space<vmem>>, vector<8x18xf32>
    tpu.vector_store %arg9[%c16_64, %c0_65], %99 {strides = array<i32>} : memref<64x18xf32, #tpu.memory_space<vmem>>, vector<8x18xf32>,
    %cst_66 = arith.constant dense<0.000000e+00> : vector<8x18xf32>
    %101 = tpu.matmul %99, %8, %cst_66 {dimension_numbers = #tpu.dot_dimension_numbers<[1], [0], [0], [1], [0, 0, 1, 1], [], []>} : vector<8x18xf32>, vector<18x18xf32>, vector<8x18xf32> -> vector<8x18xf32>
    %cst_67 = arith.constant dense<0.000000e+00> : vector<8x18xf32>
    %102 = tpu.matmul %99, %10, %cst_67 {dimension_numbers = #tpu.dot_dimension_numbers<[1], [0], [0], [1], [0, 0, 1, 1], [], []>} : vector<8x18xf32>, vector<18x18xf32>, vector<8x18xf32> -> vector<8x18xf32>
    %cst_68 = arith.constant dense<0.000000e+00> : vector<8x18xf32>
    %103 = tpu.matmul %99, %12, %cst_68 {dimension_numbers = #tpu.dot_dimension_numbers<[1], [0], [0], [1], [0, 0, 1, 1], [], []>} : vector<8x18xf32>, vector<18x18xf32>, vector<8x18xf32> -> vector<8x18xf32>
    %c24 = arith.constant 24 : index
    %c0_69 = arith.constant 0 : index
    %104 = vector.load %arg11[%c24, %c0_69] : memref<64x18xf32, #tpu.memory_space<vmem>>, vector<8x18xf32>
    %105 = arith.addf %104, %101 : vector<8x18xf32>
    %106 = arith.negf %105 : vector<8x18xf32>
    %107 = math.exp %106 : vector<8x18xf32>
    %cst_70 = arith.constant 1.000000e+00 : f32
    %108 = vector.broadcast %cst_70 : f32 to vector<8x18xf32>
    %109 = arith.addf %108, %107 : vector<8x18xf32>
    %110 = arith.divf %108, %109 : vector<8x18xf32>
    %c24_71 = arith.constant 24 : index
    %c0_72 = arith.constant 0 : index
    %111 = vector.load %arg12[%c24_71, %c0_72] : memref<64x18xf32, #tpu.memory_space<vmem>>, vector<8x18xf32>
    %112 = arith.addf %111, %102 : vector<8x18xf32>
    %113 = arith.negf %112 : vector<8x18xf32>
    %114 = math.exp %113 : vector<8x18xf32>
    %cst_73 = arith.constant 1.000000e+00 : f32
    %115 = vector.broadcast %cst_73 : f32 to vector<8x18xf32>
    %116 = arith.addf %115, %114 : vector<8x18xf32>
    %117 = arith.divf %115, %116 : vector<8x18xf32>
    %c24_74 = arith.constant 24 : index
    %c0_75 = arith.constant 0 : index
    %118 = vector.load %arg13[%c24_74, %c0_75] : memref<64x18xf32, #tpu.memory_space<vmem>>, vector<8x18xf32>
    %119 = arith.mulf %110, %103 : vector<8x18xf32>
    %120 = arith.addf %118, %119 : vector<8x18xf32>
    %121 = math.tanh %120 : vector<8x18xf32>
    %cst_76 = arith.constant 1.000000e+00 : f32
    %122 = vector.broadcast %cst_76 : f32 to vector<8x18xf32>
    %123 = arith.subf %122, %117 : vector<8x18xf32>
    %124 = arith.mulf %123, %121 : vector<8x18xf32>
    %125 = arith.mulf %117, %99 : vector<8x18xf32>
    %126 = arith.addf %124, %125 : vector<8x18xf32>
    %c24_77 = arith.constant 24 : index
    %c0_78 = arith.constant 0 : index
    %127 = vector.load %arg9[%c24_77, %c0_78] : memref<64x18xf32, #tpu.memory_space<vmem>>, vector<8x18xf32>
    tpu.vector_store %arg9[%c24_77, %c0_78], %126 {strides = array<i32>} : memref<64x18xf32, #tpu.memory_space<vmem>>, vector<8x18xf32>,
    %cst_79 = arith.constant dense<0.000000e+00> : vector<8x18xf32>
    %128 = tpu.matmul %126, %8, %cst_79 {dimension_numbers = #tpu.dot_dimension_numbers<[1], [0], [0], [1], [0, 0, 1, 1], [], []>} : vector<8x18xf32>, vector<18x18xf32>, vector<8x18xf32> -> vector<8x18xf32>
    %cst_80 = arith.constant dense<0.000000e+00> : vector<8x18xf32>
    %129 = tpu.matmul %126, %10, %cst_80 {dimension_numbers = #tpu.dot_dimension_numbers<[1], [0], [0], [1], [0, 0, 1, 1], [], []>} : vector<8x18xf32>, vector<18x18xf32>, vector<8x18xf32> -> vector<8x18xf32>
    %cst_81 = arith.constant dense<0.000000e+00> : vector<8x18xf32>
    %130 = tpu.matmul %126, %12, %cst_81 {dimension_numbers = #tpu.dot_dimension_numbers<[1], [0], [0], [1], [0, 0, 1, 1], [], []>} : vector<8x18xf32>, vector<18x18xf32>, vector<8x18xf32> -> vector<8x18xf32>
    %c32 = arith.constant 32 : index
    %c0_82 = arith.constant 0 : index
    %131 = vector.load %arg11[%c32, %c0_82] : memref<64x18xf32, #tpu.memory_space<vmem>>, vector<8x18xf32>
    %132 = arith.addf %131, %128 : vector<8x18xf32>
    %133 = arith.negf %132 : vector<8x18xf32>
    %134 = math.exp %133 : vector<8x18xf32>
    %cst_83 = arith.constant 1.000000e+00 : f32
    %135 = vector.broadcast %cst_83 : f32 to vector<8x18xf32>
    %136 = arith.addf %135, %134 : vector<8x18xf32>
    %137 = arith.divf %135, %136 : vector<8x18xf32>
    %c32_84 = arith.constant 32 : index
    %c0_85 = arith.constant 0 : index
    %138 = vector.load %arg12[%c32_84, %c0_85] : memref<64x18xf32, #tpu.memory_space<vmem>>, vector<8x18xf32>
    %139 = arith.addf %138, %129 : vector<8x18xf32>
    %140 = arith.negf %139 : vector<8x18xf32>
    %141 = math.exp %140 : vector<8x18xf32>
    %cst_86 = arith.constant 1.000000e+00 : f32
    %142 = vector.broadcast %cst_86 : f32 to vector<8x18xf32>
    %143 = arith.addf %142, %141 : vector<8x18xf32>
    %144 = arith.divf %142, %143 : vector<8x18xf32>
    %c32_87 = arith.constant 32 : index
    %c0_88 = arith.constant 0 : index
    %145 = vector.load %arg13[%c32_87, %c0_88] : memref<64x18xf32, #tpu.memory_space<vmem>>, vector<8x18xf32>
    %146 = arith.mulf %137, %130 : vector<8x18xf32>
    %147 = arith.addf %145, %146 : vector<8x18xf32>
    %148 = math.tanh %147 : vector<8x18xf32>
    %cst_89 = arith.constant 1.000000e+00 : f32
    %149 = vector.broadcast %cst_89 : f32 to vector<8x18xf32>
    %150 = arith.subf %149, %144 : vector<8x18xf32>
    %151 = arith.mulf %150, %148 : vector<8x18xf32>
    %152 = arith.mulf %144, %126 : vector<8x18xf32>
    %153 = arith.addf %151, %152 : vector<8x18xf32>
    %c32_90 = arith.constant 32 : index
    %c0_91 = arith.constant 0 : index
    %154 = vector.load %arg9[%c32_90, %c0_91] : memref<64x18xf32, #tpu.memory_space<vmem>>, vector<8x18xf32>
    tpu.vector_store %arg9[%c32_90, %c0_91], %153 {strides = array<i32>} : memref<64x18xf32, #tpu.memory_space<vmem>>, vector<8x18xf32>,
    %cst_92 = arith.constant dense<0.000000e+00> : vector<8x18xf32>
    %155 = tpu.matmul %153, %8, %cst_92 {dimension_numbers = #tpu.dot_dimension_numbers<[1], [0], [0], [1], [0, 0, 1, 1], [], []>} : vector<8x18xf32>, vector<18x18xf32>, vector<8x18xf32> -> vector<8x18xf32>
    %cst_93 = arith.constant dense<0.000000e+00> : vector<8x18xf32>
    %156 = tpu.matmul %153, %10, %cst_93 {dimension_numbers = #tpu.dot_dimension_numbers<[1], [0], [0], [1], [0, 0, 1, 1], [], []>} : vector<8x18xf32>, vector<18x18xf32>, vector<8x18xf32> -> vector<8x18xf32>
    %cst_94 = arith.constant dense<0.000000e+00> : vector<8x18xf32>
    %157 = tpu.matmul %153, %12, %cst_94 {dimension_numbers = #tpu.dot_dimension_numbers<[1], [0], [0], [1], [0, 0, 1, 1], [], []>} : vector<8x18xf32>, vector<18x18xf32>, vector<8x18xf32> -> vector<8x18xf32>
    %c40 = arith.constant 40 : index
    %c0_95 = arith.constant 0 : index
    %158 = vector.load %arg11[%c40, %c0_95] : memref<64x18xf32, #tpu.memory_space<vmem>>, vector<8x18xf32>
    %159 = arith.addf %158, %155 : vector<8x18xf32>
    %160 = arith.negf %159 : vector<8x18xf32>
    %161 = math.exp %160 : vector<8x18xf32>
    %cst_96 = arith.constant 1.000000e+00 : f32
    %162 = vector.broadcast %cst_96 : f32 to vector<8x18xf32>
    %163 = arith.addf %162, %161 : vector<8x18xf32>
    %164 = arith.divf %162, %163 : vector<8x18xf32>
    %c40_97 = arith.constant 40 : index
    %c0_98 = arith.constant 0 : index
    %165 = vector.load %arg12[%c40_97, %c0_98] : memref<64x18xf32, #tpu.memory_space<vmem>>, vector<8x18xf32>
    %166 = arith.addf %165, %156 : vector<8x18xf32>
    %167 = arith.negf %166 : vector<8x18xf32>
    %168 = math.exp %167 : vector<8x18xf32>
    %cst_99 = arith.constant 1.000000e+00 : f32
    %169 = vector.broadcast %cst_99 : f32 to vector<8x18xf32>
    %170 = arith.addf %169, %168 : vector<8x18xf32>
    %171 = arith.divf %169, %170 : vector<8x18xf32>
    %c40_100 = arith.constant 40 : index
    %c0_101 = arith.constant 0 : index
    %172 = vector.load %arg13[%c40_100, %c0_101] : memref<64x18xf32, #tpu.memory_space<vmem>>, vector<8x18xf32>
    %173 = arith.mulf %164, %157 : vector<8x18xf32>
    %174 = arith.addf %172, %173 : vector<8x18xf32>
    %175 = math.tanh %174 : vector<8x18xf32>
    %cst_102 = arith.constant 1.000000e+00 : f32
    %176 = vector.broadcast %cst_102 : f32 to vector<8x18xf32>
    %177 = arith.subf %176, %171 : vector<8x18xf32>
    %178 = arith.mulf %177, %175 : vector<8x18xf32>
    %179 = arith.mulf %171, %153 : vector<8x18xf32>
    %180 = arith.addf %178, %179 : vector<8x18xf32>
    %c40_103 = arith.constant 40 : index
    %c0_104 = arith.constant 0 : index
    %181 = vector.load %arg9[%c40_103, %c0_104] : memref<64x18xf32, #tpu.memory_space<vmem>>, vector<8x18xf32>
    tpu.vector_store %arg9[%c40_103, %c0_104], %180 {strides = array<i32>} : memref<64x18xf32, #tpu.memory_space<vmem>>, vector<8x18xf32>,
    %cst_105 = arith.constant dense<0.000000e+00> : vector<8x18xf32>
    %182 = tpu.matmul %180, %8, %cst_105 {dimension_numbers = #tpu.dot_dimension_numbers<[1], [0], [0], [1], [0, 0, 1, 1], [], []>} : vector<8x18xf32>, vector<18x18xf32>, vector<8x18xf32> -> vector<8x18xf32>
    %cst_106 = arith.constant dense<0.000000e+00> : vector<8x18xf32>
    %183 = tpu.matmul %180, %10, %cst_106 {dimension_numbers = #tpu.dot_dimension_numbers<[1], [0], [0], [1], [0, 0, 1, 1], [], []>} : vector<8x18xf32>, vector<18x18xf32>, vector<8x18xf32> -> vector<8x18xf32>
    %cst_107 = arith.constant dense<0.000000e+00> : vector<8x18xf32>
    %184 = tpu.matmul %180, %12, %cst_107 {dimension_numbers = #tpu.dot_dimension_numbers<[1], [0], [0], [1], [0, 0, 1, 1], [], []>} : vector<8x18xf32>, vector<18x18xf32>, vector<8x18xf32> -> vector<8x18xf32>
    %c48 = arith.constant 48 : index
    %c0_108 = arith.constant 0 : index
    %185 = vector.load %arg11[%c48, %c0_108] : memref<64x18xf32, #tpu.memory_space<vmem>>, vector<8x18xf32>
    %186 = arith.addf %185, %182 : vector<8x18xf32>
    %187 = arith.negf %186 : vector<8x18xf32>
    %188 = math.exp %187 : vector<8x18xf32>
    %cst_109 = arith.constant 1.000000e+00 : f32
    %189 = vector.broadcast %cst_109 : f32 to vector<8x18xf32>
    %190 = arith.addf %189, %188 : vector<8x18xf32>
    %191 = arith.divf %189, %190 : vector<8x18xf32>
    %c48_110 = arith.constant 48 : index
    %c0_111 = arith.constant 0 : index
    %192 = vector.load %arg12[%c48_110, %c0_111] : memref<64x18xf32, #tpu.memory_space<vmem>>, vector<8x18xf32>
    %193 = arith.addf %192, %183 : vector<8x18xf32>
    %194 = arith.negf %193 : vector<8x18xf32>
    %195 = math.exp %194 : vector<8x18xf32>
    %cst_112 = arith.constant 1.000000e+00 : f32
    %196 = vector.broadcast %cst_112 : f32 to vector<8x18xf32>
    %197 = arith.addf %196, %195 : vector<8x18xf32>
    %198 = arith.divf %196, %197 : vector<8x18xf32>
    %c48_113 = arith.constant 48 : index
    %c0_114 = arith.constant 0 : index
    %199 = vector.load %arg13[%c48_113, %c0_114] : memref<64x18xf32, #tpu.memory_space<vmem>>, vector<8x18xf32>
    %200 = arith.mulf %191, %184 : vector<8x18xf32>
    %201 = arith.addf %199, %200 : vector<8x18xf32>
    %202 = math.tanh %201 : vector<8x18xf32>
    %cst_115 = arith.constant 1.000000e+00 : f32
    %203 = vector.broadcast %cst_115 : f32 to vector<8x18xf32>
    %204 = arith.subf %203, %198 : vector<8x18xf32>
    %205 = arith.mulf %204, %202 : vector<8x18xf32>
    %206 = arith.mulf %198, %180 : vector<8x18xf32>
    %207 = arith.addf %205, %206 : vector<8x18xf32>
    %c48_116 = arith.constant 48 : index
    %c0_117 = arith.constant 0 : index
    %208 = vector.load %arg9[%c48_116, %c0_117] : memref<64x18xf32, #tpu.memory_space<vmem>>, vector<8x18xf32>
    tpu.vector_store %arg9[%c48_116, %c0_117], %207 {strides = array<i32>} : memref<64x18xf32, #tpu.memory_space<vmem>>, vector<8x18xf32>,
    %cst_118 = arith.constant dense<0.000000e+00> : vector<8x18xf32>
    %209 = tpu.matmul %207, %8, %cst_118 {dimension_numbers = #tpu.dot_dimension_numbers<[1], [0], [0], [1], [0, 0, 1, 1], [], []>} : vector<8x18xf32>, vector<18x18xf32>, vector<8x18xf32> -> vector<8x18xf32>
    %cst_119 = arith.constant dense<0.000000e+00> : vector<8x18xf32>
    %210 = tpu.matmul %207, %10, %cst_119 {dimension_numbers = #tpu.dot_dimension_numbers<[1], [0], [0], [1], [0, 0, 1, 1], [], []>} : vector<8x18xf32>, vector<18x18xf32>, vector<8x18xf32> -> vector<8x18xf32>
    %cst_120 = arith.constant dense<0.000000e+00> : vector<8x18xf32>
    %211 = tpu.matmul %207, %12, %cst_120 {dimension_numbers = #tpu.dot_dimension_numbers<[1], [0], [0], [1], [0, 0, 1, 1], [], []>} : vector<8x18xf32>, vector<18x18xf32>, vector<8x18xf32> -> vector<8x18xf32>
    %c56 = arith.constant 56 : index
    %c0_121 = arith.constant 0 : index
    %212 = vector.load %arg11[%c56, %c0_121] : memref<64x18xf32, #tpu.memory_space<vmem>>, vector<8x18xf32>
    %213 = arith.addf %212, %209 : vector<8x18xf32>
    %214 = arith.negf %213 : vector<8x18xf32>
    %215 = math.exp %214 : vector<8x18xf32>
    %cst_122 = arith.constant 1.000000e+00 : f32
    %216 = vector.broadcast %cst_122 : f32 to vector<8x18xf32>
    %217 = arith.addf %216, %215 : vector<8x18xf32>
    %218 = arith.divf %216, %217 : vector<8x18xf32>
    %c56_123 = arith.constant 56 : index
    %c0_124 = arith.constant 0 : index
    %219 = vector.load %arg12[%c56_123, %c0_124] : memref<64x18xf32, #tpu.memory_space<vmem>>, vector<8x18xf32>
    %220 = arith.addf %219, %210 : vector<8x18xf32>
    %221 = arith.negf %220 : vector<8x18xf32>
    %222 = math.exp %221 : vector<8x18xf32>
    %cst_125 = arith.constant 1.000000e+00 : f32
    %223 = vector.broadcast %cst_125 : f32 to vector<8x18xf32>
    %224 = arith.addf %223, %222 : vector<8x18xf32>
    %225 = arith.divf %223, %224 : vector<8x18xf32>
    %c56_126 = arith.constant 56 : index
    %c0_127 = arith.constant 0 : index
    %226 = vector.load %arg13[%c56_126, %c0_127] : memref<64x18xf32, #tpu.memory_space<vmem>>, vector<8x18xf32>
    %227 = arith.mulf %218, %211 : vector<8x18xf32>
    %228 = arith.addf %226, %227 : vector<8x18xf32>
    %229 = math.tanh %228 : vector<8x18xf32>
    %cst_128 = arith.constant 1.000000e+00 : f32
    %230 = vector.broadcast %cst_128 : f32 to vector<8x18xf32>
    %231 = arith.subf %230, %225 : vector<8x18xf32>
    %232 = arith.mulf %231, %229 : vector<8x18xf32>
    %233 = arith.mulf %225, %207 : vector<8x18xf32>
    %234 = arith.addf %232, %233 : vector<8x18xf32>
    %c56_129 = arith.constant 56 : index
    %c0_130 = arith.constant 0 : index
    %235 = vector.load %arg9[%c56_129, %c0_130] : memref<64x18xf32, #tpu.memory_space<vmem>>, vector<8x18xf32>
    tpu.vector_store %arg9[%c56_129, %c0_130], %234 {strides = array<i32>} : memref<64x18xf32, #tpu.memory_space<vmem>>, vector<8x18xf32>,
    %c0_131 = arith.constant 0 : index
    %c0_132 = arith.constant 0 : index
    %236 = vector.load %arg9[%c0_131, %c0_132] : memref<64x18xf32, #tpu.memory_space<vmem>>, vector<64x18xf32>
    %c0_133 = arith.constant 0 : index
    %c0_134 = arith.constant 0 : index
    %c0_135 = arith.constant 0 : index
    %237 = vector.load %arg4[%c0_133, %c0_134, %c0_135] : memref<3x18x18xf32, #tpu.memory_space<vmem>>, vector<1x18x18xf32>
    %238 = vector.shape_cast %237 : vector<1x18x18xf32> to vector<18x18xf32>
    %c1_136 = arith.constant 1 : index
    %c0_137 = arith.constant 0 : index
    %c0_138 = arith.constant 0 : index
    %239 = vector.load %arg4[%c1_136, %c0_137, %c0_138] : memref<3x18x18xf32, #tpu.memory_space<vmem>>, vector<1x18x18xf32>
    %240 = vector.shape_cast %239 : vector<1x18x18xf32> to vector<18x18xf32>
    %c2_139 = arith.constant 2 : index
    %c0_140 = arith.constant 0 : index
    %c0_141 = arith.constant 0 : index
    %241 = vector.load %arg4[%c2_139, %c0_140, %c0_141] : memref<3x18x18xf32, #tpu.memory_space<vmem>>, vector<1x18x18xf32>
    %242 = vector.shape_cast %241 : vector<1x18x18xf32> to vector<18x18xf32>
    %c0_142 = arith.constant 0 : index
    %c0_143 = arith.constant 0 : index
    %c0_144 = arith.constant 0 : index
    %243 = vector.load %arg5[%c0_142, %c0_143, %c0_144] : memref<3x18x18xf32, #tpu.memory_space<vmem>>, vector<1x18x18xf32>
    %244 = vector.shape_cast %243 : vector<1x18x18xf32> to vector<18x18xf32>
    %c1_145 = arith.constant 1 : index
    %c0_146 = arith.constant 0 : index
    %c0_147 = arith.constant 0 : index
    %245 = vector.load %arg5[%c1_145, %c0_146, %c0_147] : memref<3x18x18xf32, #tpu.memory_space<vmem>>, vector<1x18x18xf32>
    %246 = vector.shape_cast %245 : vector<1x18x18xf32> to vector<18x18xf32>
    %c2_148 = arith.constant 2 : index
    %c0_149 = arith.constant 0 : index
    %c0_150 = arith.constant 0 : index
    %247 = vector.load %arg5[%c2_148, %c0_149, %c0_150] : memref<3x18x18xf32, #tpu.memory_space<vmem>>, vector<1x18x18xf32>
    %248 = vector.shape_cast %247 : vector<1x18x18xf32> to vector<18x18xf32>
    %cst_151 = arith.constant dense<0.000000e+00> : vector<64x18xf32>
    %249 = tpu.matmul %236, %238, %cst_151 {dimension_numbers = #tpu.dot_dimension_numbers<[1], [0], [0], [1], [0, 0, 1, 1], [], []>} : vector<64x18xf32>, vector<18x18xf32>, vector<64x18xf32> -> vector<64x18xf32>
    %c0_152 = arith.constant 0 : index
    %c0_153 = arith.constant 0 : index
    %250 = vector.load %arg11[%c0_152, %c0_153] : memref<64x18xf32, #tpu.memory_space<vmem>>, vector<64x18xf32>
    tpu.vector_store %arg11[%c0_152, %c0_153], %249 {strides = array<i32>} : memref<64x18xf32, #tpu.memory_space<vmem>>, vector<64x18xf32>,
    %cst_154 = arith.constant dense<0.000000e+00> : vector<64x18xf32>
    %251 = tpu.matmul %236, %240, %cst_154 {dimension_numbers = #tpu.dot_dimension_numbers<[1], [0], [0], [1], [0, 0, 1, 1], [], []>} : vector<64x18xf32>, vector<18x18xf32>, vector<64x18xf32> -> vector<64x18xf32>
    %c0_155 = arith.constant 0 : index
    %c0_156 = arith.constant 0 : index
    %252 = vector.load %arg12[%c0_155, %c0_156] : memref<64x18xf32, #tpu.memory_space<vmem>>, vector<64x18xf32>
    tpu.vector_store %arg12[%c0_155, %c0_156], %251 {strides = array<i32>} : memref<64x18xf32, #tpu.memory_space<vmem>>, vector<64x18xf32>,
    %cst_157 = arith.constant dense<0.000000e+00> : vector<64x18xf32>
    %253 = tpu.matmul %236, %242, %cst_157 {dimension_numbers = #tpu.dot_dimension_numbers<[1], [0], [0], [1], [0, 0, 1, 1], [], []>} : vector<64x18xf32>, vector<18x18xf32>, vector<64x18xf32> -> vector<64x18xf32>
    %c0_158 = arith.constant 0 : index
    %c0_159 = arith.constant 0 : index
    %254 = vector.load %arg13[%c0_158, %c0_159] : memref<64x18xf32, #tpu.memory_space<vmem>>, vector<64x18xf32>
    tpu.vector_store %arg13[%c0_158, %c0_159], %253 {strides = array<i32>} : memref<64x18xf32, #tpu.memory_space<vmem>>, vector<64x18xf32>,
    %cst_160 = arith.constant 0.000000e+00 : f32
    %255 = vector.broadcast %cst_160 : f32 to vector<8x18xf32>
    %cst_161 = arith.constant dense<0.000000e+00> : vector<8x18xf32>
    %256 = tpu.matmul %255, %244, %cst_161 {dimension_numbers = #tpu.dot_dimension_numbers<[1], [0], [0], [1], [0, 0, 1, 1], [], []>} : vector<8x18xf32>, vector<18x18xf32>, vector<8x18xf32> -> vector<8x18xf32>
    %cst_162 = arith.constant dense<0.000000e+00> : vector<8x18xf32>
    %257 = tpu.matmul %255, %246, %cst_162 {dimension_numbers = #tpu.dot_dimension_numbers<[1], [0], [0], [1], [0, 0, 1, 1], [], []>} : vector<8x18xf32>, vector<18x18xf32>, vector<8x18xf32> -> vector<8x18xf32>
    %cst_163 = arith.constant dense<0.000000e+00> : vector<8x18xf32>
    %258 = tpu.matmul %255, %248, %cst_163 {dimension_numbers = #tpu.dot_dimension_numbers<[1], [0], [0], [1], [0, 0, 1, 1], [], []>} : vector<8x18xf32>, vector<18x18xf32>, vector<8x18xf32> -> vector<8x18xf32>
    %c0_164 = arith.constant 0 : index
    %c0_165 = arith.constant 0 : index
    %259 = vector.load %arg11[%c0_164, %c0_165] : memref<64x18xf32, #tpu.memory_space<vmem>>, vector<8x18xf32>
    %260 = arith.addf %259, %256 : vector<8x18xf32>
    %261 = arith.negf %260 : vector<8x18xf32>
    %262 = math.exp %261 : vector<8x18xf32>
    %cst_166 = arith.constant 1.000000e+00 : f32
    %263 = vector.broadcast %cst_166 : f32 to vector<8x18xf32>
    %264 = arith.addf %263, %262 : vector<8x18xf32>
    %265 = arith.divf %263, %264 : vector<8x18xf32>
    %c0_167 = arith.constant 0 : index
    %c0_168 = arith.constant 0 : index
    %266 = vector.load %arg12[%c0_167, %c0_168] : memref<64x18xf32, #tpu.memory_space<vmem>>, vector<8x18xf32>
    %267 = arith.addf %266, %257 : vector<8x18xf32>
    %268 = arith.negf %267 : vector<8x18xf32>
    %269 = math.exp %268 : vector<8x18xf32>
    %cst_169 = arith.constant 1.000000e+00 : f32
    %270 = vector.broadcast %cst_169 : f32 to vector<8x18xf32>
    %271 = arith.addf %270, %269 : vector<8x18xf32>
    %272 = arith.divf %270, %271 : vector<8x18xf32>
    %c0_170 = arith.constant 0 : index
    %c0_171 = arith.constant 0 : index
    %273 = vector.load %arg13[%c0_170, %c0_171] : memref<64x18xf32, #tpu.memory_space<vmem>>, vector<8x18xf32>
    %274 = arith.mulf %265, %258 : vector<8x18xf32>
    %275 = arith.addf %273, %274 : vector<8x18xf32>
    %276 = math.tanh %275 : vector<8x18xf32>
    %cst_172 = arith.constant 1.000000e+00 : f32
    %277 = vector.broadcast %cst_172 : f32 to vector<8x18xf32>
    %278 = arith.subf %277, %272 : vector<8x18xf32>
    %279 = arith.mulf %278, %276 : vector<8x18xf32>
    %280 = arith.mulf %272, %255 : vector<8x18xf32>
    %281 = arith.addf %279, %280 : vector<8x18xf32>
    %c0_173 = arith.constant 0 : index
    %c0_174 = arith.constant 0 : index
    %282 = vector.load %arg10[%c0_173, %c0_174] : memref<64x18xf32, #tpu.memory_space<vmem>>, vector<8x18xf32>
    tpu.vector_store %arg10[%c0_173, %c0_174], %281 {strides = array<i32>} : memref<64x18xf32, #tpu.memory_space<vmem>>, vector<8x18xf32>,
    %cst_175 = arith.constant dense<0.000000e+00> : vector<8x18xf32>
    %283 = tpu.matmul %281, %244, %cst_175 {dimension_numbers = #tpu.dot_dimension_numbers<[1], [0], [0], [1], [0, 0, 1, 1], [], []>} : vector<8x18xf32>, vector<18x18xf32>, vector<8x18xf32> -> vector<8x18xf32>
    %cst_176 = arith.constant dense<0.000000e+00> : vector<8x18xf32>
    %284 = tpu.matmul %281, %246, %cst_176 {dimension_numbers = #tpu.dot_dimension_numbers<[1], [0], [0], [1], [0, 0, 1, 1], [], []>} : vector<8x18xf32>, vector<18x18xf32>, vector<8x18xf32> -> vector<8x18xf32>
    %cst_177 = arith.constant dense<0.000000e+00> : vector<8x18xf32>
    %285 = tpu.matmul %281, %248, %cst_177 {dimension_numbers = #tpu.dot_dimension_numbers<[1], [0], [0], [1], [0, 0, 1, 1], [], []>} : vector<8x18xf32>, vector<18x18xf32>, vector<8x18xf32> -> vector<8x18xf32>
    %c8_178 = arith.constant 8 : index
    %c0_179 = arith.constant 0 : index
    %286 = vector.load %arg11[%c8_178, %c0_179] : memref<64x18xf32, #tpu.memory_space<vmem>>, vector<8x18xf32>
    %287 = arith.addf %286, %283 : vector<8x18xf32>
    %288 = arith.negf %287 : vector<8x18xf32>
    %289 = math.exp %288 : vector<8x18xf32>
    %cst_180 = arith.constant 1.000000e+00 : f32
    %290 = vector.broadcast %cst_180 : f32 to vector<8x18xf32>
    %291 = arith.addf %290, %289 : vector<8x18xf32>
    %292 = arith.divf %290, %291 : vector<8x18xf32>
    %c8_181 = arith.constant 8 : index
    %c0_182 = arith.constant 0 : index
    %293 = vector.load %arg12[%c8_181, %c0_182] : memref<64x18xf32, #tpu.memory_space<vmem>>, vector<8x18xf32>
    %294 = arith.addf %293, %284 : vector<8x18xf32>
    %295 = arith.negf %294 : vector<8x18xf32>
    %296 = math.exp %295 : vector<8x18xf32>
    %cst_183 = arith.constant 1.000000e+00 : f32
    %297 = vector.broadcast %cst_183 : f32 to vector<8x18xf32>
    %298 = arith.addf %297, %296 : vector<8x18xf32>
    %299 = arith.divf %297, %298 : vector<8x18xf32>
    %c8_184 = arith.constant 8 : index
    %c0_185 = arith.constant 0 : index
    %300 = vector.load %arg13[%c8_184, %c0_185] : memref<64x18xf32, #tpu.memory_space<vmem>>, vector<8x18xf32>
    %301 = arith.mulf %292, %285 : vector<8x18xf32>
    %302 = arith.addf %300, %301 : vector<8x18xf32>
    %303 = math.tanh %302 : vector<8x18xf32>
    %cst_186 = arith.constant 1.000000e+00 : f32
    %304 = vector.broadcast %cst_186 : f32 to vector<8x18xf32>
    %305 = arith.subf %304, %299 : vector<8x18xf32>
    %306 = arith.mulf %305, %303 : vector<8x18xf32>
    %307 = arith.mulf %299, %281 : vector<8x18xf32>
    %308 = arith.addf %306, %307 : vector<8x18xf32>
    %c8_187 = arith.constant 8 : index
    %c0_188 = arith.constant 0 : index
    %309 = vector.load %arg10[%c8_187, %c0_188] : memref<64x18xf32, #tpu.memory_space<vmem>>, vector<8x18xf32>
    tpu.vector_store %arg10[%c8_187, %c0_188], %308 {strides = array<i32>} : memref<64x18xf32, #tpu.memory_space<vmem>>, vector<8x18xf32>,
    %cst_189 = arith.constant dense<0.000000e+00> : vector<8x18xf32>
    %310 = tpu.matmul %308, %244, %cst_189 {dimension_numbers = #tpu.dot_dimension_numbers<[1], [0], [0], [1], [0, 0, 1, 1], [], []>} : vector<8x18xf32>, vector<18x18xf32>, vector<8x18xf32> -> vector<8x18xf32>
    %cst_190 = arith.constant dense<0.000000e+00> : vector<8x18xf32>
    %311 = tpu.matmul %308, %246, %cst_190 {dimension_numbers = #tpu.dot_dimension_numbers<[1], [0], [0], [1], [0, 0, 1, 1], [], []>} : vector<8x18xf32>, vector<18x18xf32>, vector<8x18xf32> -> vector<8x18xf32>
    %cst_191 = arith.constant dense<0.000000e+00> : vector<8x18xf32>
    %312 = tpu.matmul %308, %248, %cst_191 {dimension_numbers = #tpu.dot_dimension_numbers<[1], [0], [0], [1], [0, 0, 1, 1], [], []>} : vector<8x18xf32>, vector<18x18xf32>, vector<8x18xf32> -> vector<8x18xf32>
    %c16_192 = arith.constant 16 : index
    %c0_193 = arith.constant 0 : index
    %313 = vector.load %arg11[%c16_192, %c0_193] : memref<64x18xf32, #tpu.memory_space<vmem>>, vector<8x18xf32>
    %314 = arith.addf %313, %310 : vector<8x18xf32>
    %315 = arith.negf %314 : vector<8x18xf32>
    %316 = math.exp %315 : vector<8x18xf32>
    %cst_194 = arith.constant 1.000000e+00 : f32
    %317 = vector.broadcast %cst_194 : f32 to vector<8x18xf32>
    %318 = arith.addf %317, %316 : vector<8x18xf32>
    %319 = arith.divf %317, %318 : vector<8x18xf32>
    %c16_195 = arith.constant 16 : index
    %c0_196 = arith.constant 0 : index
    %320 = vector.load %arg12[%c16_195, %c0_196] : memref<64x18xf32, #tpu.memory_space<vmem>>, vector<8x18xf32>
    %321 = arith.addf %320, %311 : vector<8x18xf32>
    %322 = arith.negf %321 : vector<8x18xf32>
    %323 = math.exp %322 : vector<8x18xf32>
    %cst_197 = arith.constant 1.000000e+00 : f32
    %324 = vector.broadcast %cst_197 : f32 to vector<8x18xf32>
    %325 = arith.addf %324, %323 : vector<8x18xf32>
    %326 = arith.divf %324, %325 : vector<8x18xf32>
    %c16_198 = arith.constant 16 : index
    %c0_199 = arith.constant 0 : index
    %327 = vector.load %arg13[%c16_198, %c0_199] : memref<64x18xf32, #tpu.memory_space<vmem>>, vector<8x18xf32>
    %328 = arith.mulf %319, %312 : vector<8x18xf32>
    %329 = arith.addf %327, %328 : vector<8x18xf32>
    %330 = math.tanh %329 : vector<8x18xf32>
    %cst_200 = arith.constant 1.000000e+00 : f32
    %331 = vector.broadcast %cst_200 : f32 to vector<8x18xf32>
    %332 = arith.subf %331, %326 : vector<8x18xf32>
    %333 = arith.mulf %332, %330 : vector<8x18xf32>
    %334 = arith.mulf %326, %308 : vector<8x18xf32>
    %335 = arith.addf %333, %334 : vector<8x18xf32>
    %c16_201 = arith.constant 16 : index
    %c0_202 = arith.constant 0 : index
    %336 = vector.load %arg10[%c16_201, %c0_202] : memref<64x18xf32, #tpu.memory_space<vmem>>, vector<8x18xf32>
    tpu.vector_store %arg10[%c16_201, %c0_202], %335 {strides = array<i32>} : memref<64x18xf32, #tpu.memory_space<vmem>>, vector<8x18xf32>,
    %cst_203 = arith.constant dense<0.000000e+00> : vector<8x18xf32>
    %337 = tpu.matmul %335, %244, %cst_203 {dimension_numbers = #tpu.dot_dimension_numbers<[1], [0], [0], [1], [0, 0, 1, 1], [], []>} : vector<8x18xf32>, vector<18x18xf32>, vector<8x18xf32> -> vector<8x18xf32>
    %cst_204 = arith.constant dense<0.000000e+00> : vector<8x18xf32>
    %338 = tpu.matmul %335, %246, %cst_204 {dimension_numbers = #tpu.dot_dimension_numbers<[1], [0], [0], [1], [0, 0, 1, 1], [], []>} : vector<8x18xf32>, vector<18x18xf32>, vector<8x18xf32> -> vector<8x18xf32>
    %cst_205 = arith.constant dense<0.000000e+00> : vector<8x18xf32>
    %339 = tpu.matmul %335, %248, %cst_205 {dimension_numbers = #tpu.dot_dimension_numbers<[1], [0], [0], [1], [0, 0, 1, 1], [], []>} : vector<8x18xf32>, vector<18x18xf32>, vector<8x18xf32> -> vector<8x18xf32>
    %c24_206 = arith.constant 24 : index
    %c0_207 = arith.constant 0 : index
    %340 = vector.load %arg11[%c24_206, %c0_207] : memref<64x18xf32, #tpu.memory_space<vmem>>, vector<8x18xf32>
    %341 = arith.addf %340, %337 : vector<8x18xf32>
    %342 = arith.negf %341 : vector<8x18xf32>
    %343 = math.exp %342 : vector<8x18xf32>
    %cst_208 = arith.constant 1.000000e+00 : f32
    %344 = vector.broadcast %cst_208 : f32 to vector<8x18xf32>
    %345 = arith.addf %344, %343 : vector<8x18xf32>
    %346 = arith.divf %344, %345 : vector<8x18xf32>
    %c24_209 = arith.constant 24 : index
    %c0_210 = arith.constant 0 : index
    %347 = vector.load %arg12[%c24_209, %c0_210] : memref<64x18xf32, #tpu.memory_space<vmem>>, vector<8x18xf32>
    %348 = arith.addf %347, %338 : vector<8x18xf32>
    %349 = arith.negf %348 : vector<8x18xf32>
    %350 = math.exp %349 : vector<8x18xf32>
    %cst_211 = arith.constant 1.000000e+00 : f32
    %351 = vector.broadcast %cst_211 : f32 to vector<8x18xf32>
    %352 = arith.addf %351, %350 : vector<8x18xf32>
    %353 = arith.divf %351, %352 : vector<8x18xf32>
    %c24_212 = arith.constant 24 : index
    %c0_213 = arith.constant 0 : index
    %354 = vector.load %arg13[%c24_212, %c0_213] : memref<64x18xf32, #tpu.memory_space<vmem>>, vector<8x18xf32>
    %355 = arith.mulf %346, %339 : vector<8x18xf32>
    %356 = arith.addf %354, %355 : vector<8x18xf32>
    %357 = math.tanh %356 : vector<8x18xf32>
    %cst_214 = arith.constant 1.000000e+00 : f32
    %358 = vector.broadcast %cst_214 : f32 to vector<8x18xf32>
    %359 = arith.subf %358, %353 : vector<8x18xf32>
    %360 = arith.mulf %359, %357 : vector<8x18xf32>
    %361 = arith.mulf %353, %335 : vector<8x18xf32>
    %362 = arith.addf %360, %361 : vector<8x18xf32>
    %c24_215 = arith.constant 24 : index
    %c0_216 = arith.constant 0 : index
    %363 = vector.load %arg10[%c24_215, %c0_216] : memref<64x18xf32, #tpu.memory_space<vmem>>, vector<8x18xf32>
    tpu.vector_store %arg10[%c24_215, %c0_216], %362 {strides = array<i32>} : memref<64x18xf32, #tpu.memory_space<vmem>>, vector<8x18xf32>,
    %cst_217 = arith.constant dense<0.000000e+00> : vector<8x18xf32>
    %364 = tpu.matmul %362, %244, %cst_217 {dimension_numbers = #tpu.dot_dimension_numbers<[1], [0], [0], [1], [0, 0, 1, 1], [], []>} : vector<8x18xf32>, vector<18x18xf32>, vector<8x18xf32> -> vector<8x18xf32>
    %cst_218 = arith.constant dense<0.000000e+00> : vector<8x18xf32>
    %365 = tpu.matmul %362, %246, %cst_218 {dimension_numbers = #tpu.dot_dimension_numbers<[1], [0], [0], [1], [0, 0, 1, 1], [], []>} : vector<8x18xf32>, vector<18x18xf32>, vector<8x18xf32> -> vector<8x18xf32>
    %cst_219 = arith.constant dense<0.000000e+00> : vector<8x18xf32>
    %366 = tpu.matmul %362, %248, %cst_219 {dimension_numbers = #tpu.dot_dimension_numbers<[1], [0], [0], [1], [0, 0, 1, 1], [], []>} : vector<8x18xf32>, vector<18x18xf32>, vector<8x18xf32> -> vector<8x18xf32>
    %c32_220 = arith.constant 32 : index
    %c0_221 = arith.constant 0 : index
    %367 = vector.load %arg11[%c32_220, %c0_221] : memref<64x18xf32, #tpu.memory_space<vmem>>, vector<8x18xf32>
    %368 = arith.addf %367, %364 : vector<8x18xf32>
    %369 = arith.negf %368 : vector<8x18xf32>
    %370 = math.exp %369 : vector<8x18xf32>
    %cst_222 = arith.constant 1.000000e+00 : f32
    %371 = vector.broadcast %cst_222 : f32 to vector<8x18xf32>
    %372 = arith.addf %371, %370 : vector<8x18xf32>
    %373 = arith.divf %371, %372 : vector<8x18xf32>
    %c32_223 = arith.constant 32 : index
    %c0_224 = arith.constant 0 : index
    %374 = vector.load %arg12[%c32_223, %c0_224] : memref<64x18xf32, #tpu.memory_space<vmem>>, vector<8x18xf32>
    %375 = arith.addf %374, %365 : vector<8x18xf32>
    %376 = arith.negf %375 : vector<8x18xf32>
    %377 = math.exp %376 : vector<8x18xf32>
    %cst_225 = arith.constant 1.000000e+00 : f32
    %378 = vector.broadcast %cst_225 : f32 to vector<8x18xf32>
    %379 = arith.addf %378, %377 : vector<8x18xf32>
    %380 = arith.divf %378, %379 : vector<8x18xf32>
    %c32_226 = arith.constant 32 : index
    %c0_227 = arith.constant 0 : index
    %381 = vector.load %arg13[%c32_226, %c0_227] : memref<64x18xf32, #tpu.memory_space<vmem>>, vector<8x18xf32>
    %382 = arith.mulf %373, %366 : vector<8x18xf32>
    %383 = arith.addf %381, %382 : vector<8x18xf32>
    %384 = math.tanh %383 : vector<8x18xf32>
    %cst_228 = arith.constant 1.000000e+00 : f32
    %385 = vector.broadcast %cst_228 : f32 to vector<8x18xf32>
    %386 = arith.subf %385, %380 : vector<8x18xf32>
    %387 = arith.mulf %386, %384 : vector<8x18xf32>
    %388 = arith.mulf %380, %362 : vector<8x18xf32>
    %389 = arith.addf %387, %388 : vector<8x18xf32>
    %c32_229 = arith.constant 32 : index
    %c0_230 = arith.constant 0 : index
    %390 = vector.load %arg10[%c32_229, %c0_230] : memref<64x18xf32, #tpu.memory_space<vmem>>, vector<8x18xf32>
    tpu.vector_store %arg10[%c32_229, %c0_230], %389 {strides = array<i32>} : memref<64x18xf32, #tpu.memory_space<vmem>>, vector<8x18xf32>,
    %cst_231 = arith.constant dense<0.000000e+00> : vector<8x18xf32>
    %391 = tpu.matmul %389, %244, %cst_231 {dimension_numbers = #tpu.dot_dimension_numbers<[1], [0], [0], [1], [0, 0, 1, 1], [], []>} : vector<8x18xf32>, vector<18x18xf32>, vector<8x18xf32> -> vector<8x18xf32>
    %cst_232 = arith.constant dense<0.000000e+00> : vector<8x18xf32>
    %392 = tpu.matmul %389, %246, %cst_232 {dimension_numbers = #tpu.dot_dimension_numbers<[1], [0], [0], [1], [0, 0, 1, 1], [], []>} : vector<8x18xf32>, vector<18x18xf32>, vector<8x18xf32> -> vector<8x18xf32>
    %cst_233 = arith.constant dense<0.000000e+00> : vector<8x18xf32>
    %393 = tpu.matmul %389, %248, %cst_233 {dimension_numbers = #tpu.dot_dimension_numbers<[1], [0], [0], [1], [0, 0, 1, 1], [], []>} : vector<8x18xf32>, vector<18x18xf32>, vector<8x18xf32> -> vector<8x18xf32>
    %c40_234 = arith.constant 40 : index
    %c0_235 = arith.constant 0 : index
    %394 = vector.load %arg11[%c40_234, %c0_235] : memref<64x18xf32, #tpu.memory_space<vmem>>, vector<8x18xf32>
    %395 = arith.addf %394, %391 : vector<8x18xf32>
    %396 = arith.negf %395 : vector<8x18xf32>
    %397 = math.exp %396 : vector<8x18xf32>
    %cst_236 = arith.constant 1.000000e+00 : f32
    %398 = vector.broadcast %cst_236 : f32 to vector<8x18xf32>
    %399 = arith.addf %398, %397 : vector<8x18xf32>
    %400 = arith.divf %398, %399 : vector<8x18xf32>
    %c40_237 = arith.constant 40 : index
    %c0_238 = arith.constant 0 : index
    %401 = vector.load %arg12[%c40_237, %c0_238] : memref<64x18xf32, #tpu.memory_space<vmem>>, vector<8x18xf32>
    %402 = arith.addf %401, %392 : vector<8x18xf32>
    %403 = arith.negf %402 : vector<8x18xf32>
    %404 = math.exp %403 : vector<8x18xf32>
    %cst_239 = arith.constant 1.000000e+00 : f32
    %405 = vector.broadcast %cst_239 : f32 to vector<8x18xf32>
    %406 = arith.addf %405, %404 : vector<8x18xf32>
    %407 = arith.divf %405, %406 : vector<8x18xf32>
    %c40_240 = arith.constant 40 : index
    %c0_241 = arith.constant 0 : index
    %408 = vector.load %arg13[%c40_240, %c0_241] : memref<64x18xf32, #tpu.memory_space<vmem>>, vector<8x18xf32>
    %409 = arith.mulf %400, %393 : vector<8x18xf32>
    %410 = arith.addf %408, %409 : vector<8x18xf32>
    %411 = math.tanh %410 : vector<8x18xf32>
    %cst_242 = arith.constant 1.000000e+00 : f32
    %412 = vector.broadcast %cst_242 : f32 to vector<8x18xf32>
    %413 = arith.subf %412, %407 : vector<8x18xf32>
    %414 = arith.mulf %413, %411 : vector<8x18xf32>
    %415 = arith.mulf %407, %389 : vector<8x18xf32>
    %416 = arith.addf %414, %415 : vector<8x18xf32>
    %c40_243 = arith.constant 40 : index
    %c0_244 = arith.constant 0 : index
    %417 = vector.load %arg10[%c40_243, %c0_244] : memref<64x18xf32, #tpu.memory_space<vmem>>, vector<8x18xf32>
    tpu.vector_store %arg10[%c40_243, %c0_244], %416 {strides = array<i32>} : memref<64x18xf32, #tpu.memory_space<vmem>>, vector<8x18xf32>,
    %cst_245 = arith.constant dense<0.000000e+00> : vector<8x18xf32>
    %418 = tpu.matmul %416, %244, %cst_245 {dimension_numbers = #tpu.dot_dimension_numbers<[1], [0], [0], [1], [0, 0, 1, 1], [], []>} : vector<8x18xf32>, vector<18x18xf32>, vector<8x18xf32> -> vector<8x18xf32>
    %cst_246 = arith.constant dense<0.000000e+00> : vector<8x18xf32>
    %419 = tpu.matmul %416, %246, %cst_246 {dimension_numbers = #tpu.dot_dimension_numbers<[1], [0], [0], [1], [0, 0, 1, 1], [], []>} : vector<8x18xf32>, vector<18x18xf32>, vector<8x18xf32> -> vector<8x18xf32>
    %cst_247 = arith.constant dense<0.000000e+00> : vector<8x18xf32>
    %420 = tpu.matmul %416, %248, %cst_247 {dimension_numbers = #tpu.dot_dimension_numbers<[1], [0], [0], [1], [0, 0, 1, 1], [], []>} : vector<8x18xf32>, vector<18x18xf32>, vector<8x18xf32> -> vector<8x18xf32>
    %c48_248 = arith.constant 48 : index
    %c0_249 = arith.constant 0 : index
    %421 = vector.load %arg11[%c48_248, %c0_249] : memref<64x18xf32, #tpu.memory_space<vmem>>, vector<8x18xf32>
    %422 = arith.addf %421, %418 : vector<8x18xf32>
    %423 = arith.negf %422 : vector<8x18xf32>
    %424 = math.exp %423 : vector<8x18xf32>
    %cst_250 = arith.constant 1.000000e+00 : f32
    %425 = vector.broadcast %cst_250 : f32 to vector<8x18xf32>
    %426 = arith.addf %425, %424 : vector<8x18xf32>
    %427 = arith.divf %425, %426 : vector<8x18xf32>
    %c48_251 = arith.constant 48 : index
    %c0_252 = arith.constant 0 : index
    %428 = vector.load %arg12[%c48_251, %c0_252] : memref<64x18xf32, #tpu.memory_space<vmem>>, vector<8x18xf32>
    %429 = arith.addf %428, %419 : vector<8x18xf32>
    %430 = arith.negf %429 : vector<8x18xf32>
    %431 = math.exp %430 : vector<8x18xf32>
    %cst_253 = arith.constant 1.000000e+00 : f32
    %432 = vector.broadcast %cst_253 : f32 to vector<8x18xf32>
    %433 = arith.addf %432, %431 : vector<8x18xf32>
    %434 = arith.divf %432, %433 : vector<8x18xf32>
    %c48_254 = arith.constant 48 : index
    %c0_255 = arith.constant 0 : index
    %435 = vector.load %arg13[%c48_254, %c0_255] : memref<64x18xf32, #tpu.memory_space<vmem>>, vector<8x18xf32>
    %436 = arith.mulf %427, %420 : vector<8x18xf32>
    %437 = arith.addf %435, %436 : vector<8x18xf32>
    %438 = math.tanh %437 : vector<8x18xf32>
    %cst_256 = arith.constant 1.000000e+00 : f32
    %439 = vector.broadcast %cst_256 : f32 to vector<8x18xf32>
    %440 = arith.subf %439, %434 : vector<8x18xf32>
    %441 = arith.mulf %440, %438 : vector<8x18xf32>
    %442 = arith.mulf %434, %416 : vector<8x18xf32>
    %443 = arith.addf %441, %442 : vector<8x18xf32>
    %c48_257 = arith.constant 48 : index
    %c0_258 = arith.constant 0 : index
    %444 = vector.load %arg10[%c48_257, %c0_258] : memref<64x18xf32, #tpu.memory_space<vmem>>, vector<8x18xf32>
    tpu.vector_store %arg10[%c48_257, %c0_258], %443 {strides = array<i32>} : memref<64x18xf32, #tpu.memory_space<vmem>>, vector<8x18xf32>,
    %cst_259 = arith.constant dense<0.000000e+00> : vector<8x18xf32>
    %445 = tpu.matmul %443, %244, %cst_259 {dimension_numbers = #tpu.dot_dimension_numbers<[1], [0], [0], [1], [0, 0, 1, 1], [], []>} : vector<8x18xf32>, vector<18x18xf32>, vector<8x18xf32> -> vector<8x18xf32>
    %cst_260 = arith.constant dense<0.000000e+00> : vector<8x18xf32>
    %446 = tpu.matmul %443, %246, %cst_260 {dimension_numbers = #tpu.dot_dimension_numbers<[1], [0], [0], [1], [0, 0, 1, 1], [], []>} : vector<8x18xf32>, vector<18x18xf32>, vector<8x18xf32> -> vector<8x18xf32>
    %cst_261 = arith.constant dense<0.000000e+00> : vector<8x18xf32>
    %447 = tpu.matmul %443, %248, %cst_261 {dimension_numbers = #tpu.dot_dimension_numbers<[1], [0], [0], [1], [0, 0, 1, 1], [], []>} : vector<8x18xf32>, vector<18x18xf32>, vector<8x18xf32> -> vector<8x18xf32>
    %c56_262 = arith.constant 56 : index
    %c0_263 = arith.constant 0 : index
    %448 = vector.load %arg11[%c56_262, %c0_263] : memref<64x18xf32, #tpu.memory_space<vmem>>, vector<8x18xf32>
    %449 = arith.addf %448, %445 : vector<8x18xf32>
    %450 = arith.negf %449 : vector<8x18xf32>
    %451 = math.exp %450 : vector<8x18xf32>
    %cst_264 = arith.constant 1.000000e+00 : f32
    %452 = vector.broadcast %cst_264 : f32 to vector<8x18xf32>
    %453 = arith.addf %452, %451 : vector<8x18xf32>
    %454 = arith.divf %452, %453 : vector<8x18xf32>
    %c56_265 = arith.constant 56 : index
    %c0_266 = arith.constant 0 : index
    %455 = vector.load %arg12[%c56_265, %c0_266] : memref<64x18xf32, #tpu.memory_space<vmem>>, vector<8x18xf32>
    %456 = arith.addf %455, %446 : vector<8x18xf32>
    %457 = arith.negf %456 : vector<8x18xf32>
    %458 = math.exp %457 : vector<8x18xf32>
    %cst_267 = arith.constant 1.000000e+00 : f32
    %459 = vector.broadcast %cst_267 : f32 to vector<8x18xf32>
    %460 = arith.addf %459, %458 : vector<8x18xf32>
    %461 = arith.divf %459, %460 : vector<8x18xf32>
    %c56_268 = arith.constant 56 : index
    %c0_269 = arith.constant 0 : index
    %462 = vector.load %arg13[%c56_268, %c0_269] : memref<64x18xf32, #tpu.memory_space<vmem>>, vector<8x18xf32>
    %463 = arith.mulf %454, %447 : vector<8x18xf32>
    %464 = arith.addf %462, %463 : vector<8x18xf32>
    %465 = math.tanh %464 : vector<8x18xf32>
    %cst_270 = arith.constant 1.000000e+00 : f32
    %466 = vector.broadcast %cst_270 : f32 to vector<8x18xf32>
    %467 = arith.subf %466, %461 : vector<8x18xf32>
    %468 = arith.mulf %467, %465 : vector<8x18xf32>
    %469 = arith.mulf %461, %443 : vector<8x18xf32>
    %470 = arith.addf %468, %469 : vector<8x18xf32>
    %c56_271 = arith.constant 56 : index
    %c0_272 = arith.constant 0 : index
    %471 = vector.load %arg10[%c56_271, %c0_272] : memref<64x18xf32, #tpu.memory_space<vmem>>, vector<8x18xf32>
    tpu.vector_store %arg10[%c56_271, %c0_272], %470 {strides = array<i32>} : memref<64x18xf32, #tpu.memory_space<vmem>>, vector<8x18xf32>,
    %c0_273 = arith.constant 0 : index
    %c0_274 = arith.constant 0 : index
    %472 = vector.load %arg10[%c0_273, %c0_274] : memref<64x18xf32, #tpu.memory_space<vmem>>, vector<64x18xf32>
    %c0_275 = arith.constant 0 : index
    %c0_276 = arith.constant 0 : index
    %473 = vector.load %arg6[%c0_275, %c0_276] : memref<18x18xf32, #tpu.memory_space<vmem>>, vector<18x18xf32>
    %cst_277 = arith.constant dense<0.000000e+00> : vector<64x18xf32>
    %474 = tpu.matmul %472, %473, %cst_277 {dimension_numbers = #tpu.dot_dimension_numbers<[1], [0], [0], [1], [0, 0, 1, 1], [], []>} : vector<64x18xf32>, vector<18x18xf32>, vector<64x18xf32> -> vector<64x18xf32>
    %c0_278 = arith.constant 0 : index
    %c0_279 = arith.constant 0 : index
    %475 = vector.load %arg7[%c0_278, %c0_279] : memref<1x18xf32, #tpu.memory_space<vmem>>, vector<1x18xf32>
    %476 = vector.broadcast %475 : vector<1x18xf32> to vector<64x18xf32>
    %477 = arith.addf %474, %476 : vector<64x18xf32>
    %c0_280 = arith.constant 0 : index
    %c0_281 = arith.constant 0 : index
    %478 = vector.load %arg8[%c0_280, %c0_281] : memref<64x18xf32, #tpu.memory_space<vmem>>, vector<64x18xf32>
    tpu.vector_store %arg8[%c0_280, %c0_281], %477 {strides = array<i32>} : memref<64x18xf32, #tpu.memory_space<vmem>>, vector<64x18xf32>,
    return
  }
  func.func @transform_0(%arg0: i32) -> (i32, i32) {
    %c0_i32 = arith.constant 0 : i32
    %c0_i32_0 = arith.constant 0 : i32
    %c0_i32_1 = arith.constant 0 : i32
    return %c0_i32, %c0_i32_0 : i32, i32
  }
  func.func @transform_1(%arg0: i32) -> (i32, i32, i32) {
    %c0_i32 = arith.constant 0 : i32
    %c0_i32_0 = arith.constant 0 : i32
    %c0_i32_1 = arith.constant 0 : i32
    %c0_i32_2 = arith.constant 0 : i32
    return %c0_i32, %c0_i32_0, %c0_i32_1 : i32, i32, i32
  }
  func.func @transform_2(%arg0: i32) -> (i32, i32, i32) {
    %c0_i32 = arith.constant 0 : i32
    %c0_i32_0 = arith.constant 0 : i32
    %c0_i32_1 = arith.constant 0 : i32
    %c0_i32_2 = arith.constant 0 : i32
    return %c0_i32, %c0_i32_0, %c0_i32_1 : i32, i32, i32
  }
  func.func @transform_3(%arg0: i32) -> (i32, i32, i32) {
    %c0_i32 = arith.constant 0 : i32
    %c0_i32_0 = arith.constant 0 : i32
    %c0_i32_1 = arith.constant 0 : i32
    %c0_i32_2 = arith.constant 0 : i32
    return %c0_i32, %c0_i32_0, %c0_i32_1 : i32, i32, i32
  }
  func.func @transform_4(%arg0: i32) -> (i32, i32, i32) {
    %c0_i32 = arith.constant 0 : i32
    %c0_i32_0 = arith.constant 0 : i32
    %c0_i32_1 = arith.constant 0 : i32
    %c0_i32_2 = arith.constant 0 : i32
    return %c0_i32, %c0_i32_0, %c0_i32_1 : i32, i32, i32
  }
  func.func @transform_5(%arg0: i32) -> (i32, i32) {
    %c0_i32 = arith.constant 0 : i32
    %c0_i32_0 = arith.constant 0 : i32
    %c0_i32_1 = arith.constant 0 : i32
    return %c0_i32, %c0_i32_0 : i32, i32
  }
  func.func @transform_6(%arg0: i32) -> (i32, i32) {
    %c0_i32 = arith.constant 0 : i32
    %c0_i32_0 = arith.constant 0 : i32
    %c0_i32_1 = arith.constant 0 : i32
    return %c0_i32, %c0_i32_0 : i32, i32
  }
  func.func @transform_7(%arg0: i32) -> (i32, i32) {
    %c0_i32 = arith.constant 0 : i32
    %c0_i32_0 = arith.constant 0 : i32
    %c0_i32_1 = arith.constant 0 : i32
    return %c0_i32, %c0_i32_0 : i32, i32
  }
}

</mosaic_0001>

<llo_original>
// kernel: tpu_custom_call.1
$region0: #{tpu_custom_call.1}
  #allocation0 [shape = 'u32[]', space=smem, size = 0x4, offset = 0x4, fixed_abs, tag = 'smem constant byte address 0x4 - core index']
  #allocation1 [shape = 'u32[72,128]{1,0:T(1,128)}', space=vmem, size = 0x9000, scoped, tag = 'internal scratch']
  #allocation2 [shape = 'f32[64,18]{1,0:T(8,128)}', space=vmem, size = 0x8000, scoped, tag = 'scratch operand']
  #allocation3 [shape = 'f32[64,18]{1,0:T(8,128)}', space=vmem, size = 0x8000, scoped, tag = 'scratch operand']
  #allocation4 [shape = 'f32[64,18]{1,0:T(8,128)}', space=vmem, size = 0x8000, scoped, tag = 'scratch operand']
  #allocation5 [shape = 'f32[64,18]{1,0:T(8,128)}', space=vmem, size = 0x8000, scoped, tag = 'scratch operand']
  #allocation6 [shape = 'f32[64,18]{1,0:T(8,128)}', space=vmem, size = 0x8000, scoped, tag = 'scratch operand']
  %s0 = inlined_call_operand.vmem [shape: f32[64,4], index: 0, kind: input, shape index: {}]
  %s1 = inlined_call_operand.vmem [shape: f32[3,4,18], index: 1, kind: input, shape index: {}]
  %s2 = inlined_call_operand.hbm [shape: f32[3,18,18], index: 2, kind: input, shape index: {}]
  %s3 = inlined_call_operand.hbm [shape: f32[3,18,18], index: 3, kind: input, shape index: {}]
  %s4 = inlined_call_operand.hbm [shape: f32[3,18,18], index: 4, kind: input, shape index: {}]
  %s5 = inlined_call_operand.vmem [shape: f32[18,18], index: 5, kind: input, shape index: {}]
  %s6 = inlined_call_operand.vmem [shape: f32[1,18], index: 6, kind: input, shape index: {}]
  %s7 = inlined_call_operand.vmem [shape: f32[64,18], index: 7, kind: output, shape index: {}]
  %s8 = sld [smem:[#allocation0]]
  $region50: #{tpu_custom_call.1} parent=0
    _
  %s10 = ssub.s32 1, %s8
  %s11 = scalar_select 0, %s10, %s8
  $region1: #{tpu_custom_call.1} parent=0
    #allocation7 [shape = 'u8[36864]{0}', space=vmem, size = 0x9000, scoped, tag = 'input window, operand 2, single buffered']
    #allocation8 [shape = 's32[1]{0}', space=sflag, size = 0x4, scoped, tag = 'scoped memory for tpu_custom_call.1']
    #allocation9 [shape = 'u8[36864]{0}', space=vmem, size = 0x9000, scoped, tag = 'input window, operand 3, single buffered']
    #allocation10 [shape = 's32[1]{0}', space=sflag, size = 0x4, scoped, tag = 'scoped memory for tpu_custom_call.1']
    #allocation11 [shape = 'u8[36864]{0}', space=vmem, size = 0x9000, scoped, tag = 'input window, operand 4, single buffered']
    %12 = vsyncpa [#allocation8], 0
    %13 = vsyncpa [#allocation10], 0
    // Predicated region
    $region2: #{tpu_custom_call.1} parent=1 // pred_check
      _
    $region3: #{tpu_custom_call.1} parent=1 // pred_check_branch
      %15 = sbr.rel (0) target = $region5
    $region4: #{tpu_custom_call.1} parent=1 // pred_region
      _
    $region5: #{tpu_custom_call.1} parent=1 // pred_fallthru
      _
    // Predicated region
    $region6: #{tpu_custom_call.1} parent=1 // pred_check
      _
    $region7: #{tpu_custom_call.1} parent=1 // pred_check_branch
      %17 = sbr.rel (0) target = $region9
    $region8: #{tpu_custom_call.1} parent=1 // pred_region
      _
    $region9: #{tpu_custom_call.1} parent=1 // pred_fallthru
      _
    // Predicated region
    $region10: #{tpu_custom_call.1} parent=1 // pred_check
      _
    $region11: #{tpu_custom_call.1} parent=1 // pred_check_branch
      %19 = sbr.rel (0) target = $region13
    $region12: #{tpu_custom_call.1} parent=1 // pred_region
      %21 = vsyncadd [#allocation8], 0
      %s22 = sshll.u32 %s2, 4
      %s23 = int_to_ptr.hbm [resolvable:$true] %s22
      %s24 = sshll.u32 [#allocation7], 4
      %s25 = int_to_ptr.vmem [resolvable:$true] %s24
      %30 = dma.hbm_to_vmem [thread:$0]  %s23, 1152, %s25, [#allocation8], 128, 128, 8
    $region13: #{tpu_custom_call.1} parent=1 // pred_fallthru
      _
    // Predicated region
    $region14: #{tpu_custom_call.1} parent=1 // pred_check
      _
    $region15: #{tpu_custom_call.1} parent=1 // pred_check_branch
      %32 = sbr.rel (0) target = $region17
    $region16: #{tpu_custom_call.1} parent=1 // pred_region
      %34 = vsyncadd [#allocation10], 0
      %s35 = sshll.u32 %s3, 4
      %s36 = int_to_ptr.hbm [resolvable:$true] %s35
      %s37 = sshll.u32 [#allocation9], 4
      %s38 = int_to_ptr.vmem [resolvable:$true] %s37
      %43 = dma.hbm_to_vmem [thread:$0]  %s36, 1152, %s38, [#allocation10], 128, 128, 8
    $region17: #{tpu_custom_call.1} parent=1 // pred_fallthru
      _
    // Predicated region
    $region18: #{tpu_custom_call.1} parent=1 // pred_check
      _
    $region19: #{tpu_custom_call.1} parent=1 // pred_check_branch
      %45 = sbr.rel (0) target = $region21
    $region20: #{tpu_custom_call.1} parent=1 // pred_region
      %47 = vsyncadd [#allocation10], 0
      %s48 = sshll.u32 %s4, 4
      %s49 = int_to_ptr.hbm [resolvable:$true] %s48
      %s50 = sshll.u32 [#allocation11], 4
      %s51 = int_to_ptr.vmem [resolvable:$true] %s50
      %56 = dma.hbm_to_vmem [thread:$0]  %s49, 1152, %s51, [#allocation10], 128, 128, 8
    $region21: #{tpu_custom_call.1} parent=1 // pred_fallthru
      _
    // Predicated region
    $region22: #{tpu_custom_call.1} parent=1 // pred_check
      _
    $region23: #{tpu_custom_call.1} parent=1 // pred_check_branch
      %58 = sbr.rel (0) target = $region25
    $region24: #{tpu_custom_call.1} parent=1 // pred_region
      _
    $region25: #{tpu_custom_call.1} parent=1 // pred_fallthru
      _
    // Predicated region
    $region26: #{tpu_custom_call.1} parent=1 // pred_check
      _
    $region27: #{tpu_custom_call.1} parent=1 // pred_check_branch
      %60 = sbr.rel (0) target = $region29
    $region28: #{tpu_custom_call.1} parent=1 // pred_region
      _
    $region29: #{tpu_custom_call.1} parent=1 // pred_fallthru
      _
    // Predicated region
    $region30: #{tpu_custom_call.1} parent=1 // pred_check
      _
    $region31: #{tpu_custom_call.1} parent=1 // pred_check_branch
      %62 = sbr.rel (0) target = $region33
    $region32: #{tpu_custom_call.1} parent=1 // pred_region
      %64 = dma.done [#allocation8], 1152
    $region33: #{tpu_custom_call.1} parent=1 // pred_fallthru
      _
    // Predicated region
    $region34: #{tpu_custom_call.1} parent=1 // pred_check
      _
    $region35: #{tpu_custom_call.1} parent=1 // pred_check_branch
      %66 = sbr.rel (0) target = $region37
    $region36: #{tpu_custom_call.1} parent=1 // pred_region
      %68 = dma.done [#allocation10], 1152
    $region37: #{tpu_custom_call.1} parent=1 // pred_fallthru
      _
    // Predicated region
    $region38: #{tpu_custom_call.1} parent=1 // pred_check
      _
    $region39: #{tpu_custom_call.1} parent=1 // pred_check_branch
      %70 = sbr.rel (0) target = $region41
    $region40: #{tpu_custom_call.1} parent=1 // pred_region
      %72 = dma.done [#allocation10], 1152
    $region41: #{tpu_custom_call.1} parent=1 // pred_fallthru
      _
    %v73 = vld [vmem:[%s0] sm:$0xff]
    %v74 = vld [vmem:[%s0 + $0x8] sm:$0xff]
    %v75 = vld [vmem:[%s0 + $0x10] sm:$0xff]
    %v76 = vld [vmem:[%s0 + $0x18] sm:$0xff]
    %v77 = vld [vmem:[%s0 + $0x20] sm:$0xff]
    %v78 = vld [vmem:[%s0 + $0x28] sm:$0xff]
    %v79 = vld [vmem:[%s0 + $0x30] sm:$0xff]
    %v80 = vld [vmem:[%s0 + $0x38] sm:$0xff]
    %v81 = vld [vmem:[%s1] sm:$0xf]
    %s82 = scalar_lea.vmem %s1, 4
    %v83 = vld [vmem:[%s82] sm:$0xf]
    %s84 = scalar_lea.vmem %s1, 8
    %v85 = vld [vmem:[%s84] sm:$0xf]
    %v86 = vld [vmem:[#allocation7] sm:$0xff]
    %v87 = vld [vmem:[#allocation7 + $0x8] sm:$0xff]
    %v88 = vld [vmem:[#allocation7 + $0x10] sm:$0x3]
    %s89 = scalar_lea.vmem [#allocation7], 24
    %v90 = vld [vmem:[%s89] sm:$0xff]
    %v91 = vld [vmem:[%s89 + $0x8] sm:$0xff]
    %v92 = vld [vmem:[%s89 + $0x10] sm:$0x3]
    %s93 = scalar_lea.vmem [#allocation7], 48
    %v94 = vld [vmem:[%s93] sm:$0xff]
    %v95 = vld [vmem:[%s93 + $0x8] sm:$0xff]
    %v96 = vld [vmem:[%s93 + $0x10] sm:$0x3]
    %vm97 = vcmask 31744
    %v99 = vsel %vm97, %v73, 0
    %v102 = vsel %vm97, %v74, 0
    %v105 = vsel %vm97, %v75, 0
    %v108 = vsel %vm97, %v76, 0
    %v111 = vsel %vm97, %v77, 0
    %v114 = vsel %vm97, %v78, 0
    %v117 = vsel %vm97, %v79, 0
    %v120 = vsel %vm97, %v80, 0
    %vm122 = vcmask 1043456
    %v124 = vsel %vm122, %v81, 0
    %126 = vmatpush.msra.mxu0 0.0
    %127 = vmatpush.msra.mxu0 0.0
    %128 = vmatpush.msra.mxu0 0.0
    %129 = vmatpush.msra.mxu0 0.0
    %130 = vmatpush.msra.mxu0 0.0
    %131 = vmatpush.msra.mxu0 0.0
    %132 = vmatpush.msra.mxu0 0.0
    %133 = vmatpush.msra.mxu0 0.0
    %134 = vmatpush.msra.mxu0 0.0
    %135 = vmatpush.msra.mxu0 0.0
    %136 = vmatpush.msra.mxu0 0.0
    %137 = vmatpush.msra.mxu0 0.0
    %138 = vmatpush.msra.mxu0 0.0
    %139 = vmatpush.msra.mxu0 0.0
    %140 = vmatpush.msra.mxu0 0.0
    %141 = vmatpush.msra.mxu0 %v124
    %142 = vmatmul.f32.gmra.mxu0 %v99
    %v143 = vpop.f32.mrf.mxu0
    %v144 = vadd.f32 0.0, %v143
    %145 = vmatmul.f32.gmra.mxu0 %v102
    %v146 = vpop.f32.mrf.mxu0
    %v147 = vadd.f32 0.0, %v146
    %148 = vmatmul.f32.gmra.mxu0 %v105
    %v149 = vpop.f32.mrf.mxu0
    %v150 = vadd.f32 0.0, %v149
    %151 = vmatmul.f32.gmra.mxu0 %v108
    %v152 = vpop.f32.mrf.mxu0
    %v153 = vadd.f32 0.0, %v152
    %154 = vmatmul.f32.gmra.mxu0 %v111
    %v155 = vpop.f32.mrf.mxu0
    %v156 = vadd.f32 0.0, %v155
    %157 = vmatmul.f32.gmra.mxu0 %v114
    %v158 = vpop.f32.mrf.mxu0
    %v159 = vadd.f32 0.0, %v158
    %160 = vmatmul.f32.gmra.mxu0 %v117
    %v161 = vpop.f32.mrf.mxu0
    %v162 = vadd.f32 0.0, %v161
    %163 = vmatmul.f32.gmra.mxu0 %v120
    %v164 = vpop.f32.mrf.mxu0
    %v165 = vadd.f32 0.0, %v164
    %166 = vdwg.mxu0
    %vm167 = vcmask 146432
    %168 = vst.msk [vmem:[#allocation4] sm:$0xff] %vm167, %v144
    %169 = vst.msk [vmem:[#allocation4 + $0x8] sm:$0xff] %vm167, %v147
    %170 = vst.msk [vmem:[#allocation4 + $0x10] sm:$0xff] %vm167, %v150
    %171 = vst.msk [vmem:[#allocation4 + $0x18] sm:$0xff] %vm167, %v153
    %172 = vst.msk [vmem:[#allocation4 + $0x20] sm:$0xff] %vm167, %v156
    %173 = vst.msk [vmem:[#allocation4 + $0x28] sm:$0xff] %vm167, %v159
    %174 = vst.msk [vmem:[#allocation4 + $0x30] sm:$0xff] %vm167, %v162
    %175 = vst.msk [vmem:[#allocation4 + $0x38] sm:$0xff] %vm167, %v165
    %v177 = vsel %vm122, %v83, 0
    %179 = vmatpush.msra.mxu0 0.0
    %180 = vmatpush.msra.mxu0 0.0
    %181 = vmatpush.msra.mxu0 0.0
    %182 = vmatpush.msra.mxu0 0.0
    %183 = vmatpush.msra.mxu0 0.0
    %184 = vmatpush.msra.mxu0 0.0
    %185 = vmatpush.msra.mxu0 0.0
    %186 = vmatpush.msra.mxu0 0.0
    %187 = vmatpush.msra.mxu0 0.0
    %188 = vmatpush.msra.mxu0 0.0
    %189 = vmatpush.msra.mxu0 0.0
    %190 = vmatpush.msra.mxu0 0.0
    %191 = vmatpush.msra.mxu0 0.0
    %192 = vmatpush.msra.mxu0 0.0
    %193 = vmatpush.msra.mxu0 0.0
    %194 = vmatpush.msra.mxu0 %v177
    %195 = vmatmul.f32.gmra.mxu0 %v99
    %v196 = vpop.f32.mrf.mxu0
    %v197 = vadd.f32 0.0, %v196
    %198 = vmatmul.f32.gmra.mxu0 %v102
    %v199 = vpop.f32.mrf.mxu0
    %v200 = vadd.f32 0.0, %v199
    %201 = vmatmul.f32.gmra.mxu0 %v105
    %v202 = vpop.f32.mrf.mxu0
    %v203 = vadd.f32 0.0, %v202
    %204 = vmatmul.f32.gmra.mxu0 %v108
    %v205 = vpop.f32.mrf.mxu0
    %v206 = vadd.f32 0.0, %v205
    %207 = vmatmul.f32.gmra.mxu0 %v111
    %v208 = vpop.f32.mrf.mxu0
    %v209 = vadd.f32 0.0, %v208
    %210 = vmatmul.f32.gmra.mxu0 %v114
    %v211 = vpop.f32.mrf.mxu0
    %v212 = vadd.f32 0.0, %v211
    %213 = vmatmul.f32.gmra.mxu0 %v117
    %v214 = vpop.f32.mrf.mxu0
    %v215 = vadd.f32 0.0, %v214
    %216 = vmatmul.f32.gmra.mxu0 %v120
    %v217 = vpop.f32.mrf.mxu0
    %v218 = vadd.f32 0.0, %v217
    %219 = vdwg.mxu0
    %220 = vst.msk [vmem:[#allocation5] sm:$0xff] %vm167, %v197
    %221 = vst.msk [vmem:[#allocation5 + $0x8] sm:$0xff] %vm167, %v200
    %222 = vst.msk [vmem:[#allocation5 + $0x10] sm:$0xff] %vm167, %v203
    %223 = vst.msk [vmem:[#allocation5 + $0x18] sm:$0xff] %vm167, %v206
    %224 = vst.msk [vmem:[#allocation5 + $0x20] sm:$0xff] %vm167, %v209
    %225 = vst.msk [vmem:[#allocation5 + $0x28] sm:$0xff] %vm167, %v212
    %226 = vst.msk [vmem:[#allocation5 + $0x30] sm:$0xff] %vm167, %v215
    %227 = vst.msk [vmem:[#allocation5 + $0x38] sm:$0xff] %vm167, %v218
    %v229 = vsel %vm122, %v85, 0
    %231 = vmatpush.msra.mxu0 0.0
    %232 = vmatpush.msra.mxu0 0.0
    %233 = vmatpush.msra.mxu0 0.0
    %234 = vmatpush.msra.mxu0 0.0
    %235 = vmatpush.msra.mxu0 0.0
    %236 = vmatpush.msra.mxu0 0.0
    %237 = vmatpush.msra.mxu0 0.0
    %238 = vmatpush.msra.mxu0 0.0
    %239 = vmatpush.msra.mxu0 0.0
    %240 = vmatpush.msra.mxu0 0.0
    %241 = vmatpush.msra.mxu0 0.0
    %242 = vmatpush.msra.mxu0 0.0
    %243 = vmatpush.msra.mxu0 0.0
    %244 = vmatpush.msra.mxu0 0.0
    %245 = vmatpush.msra.mxu0 0.0
    %246 = vmatpush.msra.mxu0 %v229
    %247 = vmatmul.f32.gmra.mxu0 %v99
    %v248 = vpop.f32.mrf.mxu0
    %v249 = vadd.f32 0.0, %v248
    %250 = vmatmul.f32.gmra.mxu0 %v102
    %v251 = vpop.f32.mrf.mxu0
    %v252 = vadd.f32 0.0, %v251
    %253 = vmatmul.f32.gmra.mxu0 %v105
    %v254 = vpop.f32.mrf.mxu0
    %v255 = vadd.f32 0.0, %v254
    %256 = vmatmul.f32.gmra.mxu0 %v108
    %v257 = vpop.f32.mrf.mxu0
    %v258 = vadd.f32 0.0, %v257
    %259 = vmatmul.f32.gmra.mxu0 %v111
    %v260 = vpop.f32.mrf.mxu0
    %v261 = vadd.f32 0.0, %v260
    %262 = vmatmul.f32.gmra.mxu0 %v114
    %v263 = vpop.f32.mrf.mxu0
    %v264 = vadd.f32 0.0, %v263
    %265 = vmatmul.f32.gmra.mxu0 %v117
    %v266 = vpop.f32.mrf.mxu0
    %v267 = vadd.f32 0.0, %v266
    %268 = vmatmul.f32.gmra.mxu0 %v120
    %v269 = vpop.f32.mrf.mxu0
    %v270 = vadd.f32 0.0, %v269
    %271 = vdwg.mxu0
    %272 = vst.msk [vmem:[#allocation6] sm:$0xff] %vm167, %v249
    %273 = vst.msk [vmem:[#allocation6 + $0x8] sm:$0xff] %vm167, %v252
    %274 = vst.msk [vmem:[#allocation6 + $0x10] sm:$0xff] %vm167, %v255
    %275 = vst.msk [vmem:[#allocation6 + $0x18] sm:$0xff] %vm167, %v258
    %276 = vst.msk [vmem:[#allocation6 + $0x20] sm:$0xff] %vm167, %v261
    %277 = vst.msk [vmem:[#allocation6 + $0x28] sm:$0xff] %vm167, %v264
    %278 = vst.msk [vmem:[#allocation6 + $0x30] sm:$0xff] %vm167, %v267
    %279 = vst.msk [vmem:[#allocation6 + $0x38] sm:$0xff] %vm167, %v270
    %v281 = vsel %vm167, 0.0, 0
    %vm283 = vcmask 1041408
    %v285 = vsel %vm283, %v88, 0
    %287 = vmatpush.msra.mxu0 0.0
    %288 = vmatpush.msra.mxu0 0.0
    %289 = vmatpush.msra.mxu0 0.0
    %290 = vmatpush.msra.mxu0 0.0
    %291 = vmatpush.msra.mxu0 0.0
    %292 = vmatpush.msra.mxu0 0.0
    %293 = vmatpush.msra.mxu0 0.0
    %294 = vmatpush.msra.mxu0 0.0
    %295 = vmatpush.msra.mxu0 0.0
    %296 = vmatpush.msra.mxu0 0.0
    %297 = vmatpush.msra.mxu0 0.0
    %298 = vmatpush.msra.mxu0 0.0
    %299 = vmatpush.msra.mxu0 0.0
    %300 = vmatpush.msra.mxu0 %v285
    %301 = vmatpush.msra.mxu0 %v87
    %302 = vmatpush.msra.mxu0 %v86
    %303 = vmatmul.f32.gmra.mxu0 %v281
    %v304 = vpop.f32.mrf.mxu0
    %v305 = vadd.f32 0.0, %v304
    %306 = vdwg.mxu0
    %v308 = vsel %vm283, %v92, 0
    %310 = vmatpush.msra.mxu0 0.0
    %311 = vmatpush.msra.mxu0 0.0
    %312 = vmatpush.msra.mxu0 0.0
    %313 = vmatpush.msra.mxu0 0.0
    %314 = vmatpush.msra.mxu0 0.0
    %315 = vmatpush.msra.mxu0 0.0
    %316 = vmatpush.msra.mxu0 0.0
    %317 = vmatpush.msra.mxu0 0.0
    %318 = vmatpush.msra.mxu0 0.0
    %319 = vmatpush.msra.mxu0 0.0
    %320 = vmatpush.msra.mxu0 0.0
    %321 = vmatpush.msra.mxu0 0.0
    %322 = vmatpush.msra.mxu0 0.0
    %323 = vmatpush.msra.mxu0 %v308
    %324 = vmatpush.msra.mxu0 %v91
    %325 = vmatpush.msra.mxu0 %v90
    %326 = vmatmul.f32.gmra.mxu0 %v281
    %v327 = vpop.f32.mrf.mxu0
    %v328 = vadd.f32 0.0, %v327
    %329 = vdwg.mxu0
    %v331 = vsel %vm283, %v96, 0
    %333 = vmatpush.msra.mxu0 0.0
    %334 = vmatpush.msra.mxu0 0.0
    %335 = vmatpush.msra.mxu0 0.0
    %336 = vmatpush.msra.mxu0 0.0
    %337 = vmatpush.msra.mxu0 0.0
    %338 = vmatpush.msra.mxu0 0.0
    %339 = vmatpush.msra.mxu0 0.0
    %340 = vmatpush.msra.mxu0 0.0
    %341 = vmatpush.msra.mxu0 0.0
    %342 = vmatpush.msra.mxu0 0.0
    %343 = vmatpush.msra.mxu0 0.0
    %344 = vmatpush.msra.mxu0 0.0
    %345 = vmatpush.msra.mxu0 0.0
    %346 = vmatpush.msra.mxu0 %v331
    %347 = vmatpush.msra.mxu0 %v95
    %348 = vmatpush.msra.mxu0 %v94
    %349 = vmatmul.f32.gmra.mxu0 %v281
    %v350 = vpop.f32.mrf.mxu0
    %v351 = vadd.f32 0.0, %v350
    %352 = vdwg.mxu0
    %v353 = vld [vmem:[#allocation4] sm:$0xff]
    %v354 = vadd.f32 %v353, %v305
    %v355 = vxor.u32 %v354, 2147483648
    %v356 = vmul.f32 %v355, 1.442695
    %v357 = vpow.pop %v356
    %v358 = vadd.f32 %v357, 1.0
    %v359 = vrcp.pop %v358
    %v360 = vmul.f32 %v358, %v359
    %v361 = vsub.f32 1.0, %v360
    %v362 = vmul.f32 %v359, %v361
    %v363 = vadd.f32 %v359, %v362
    %vm364 = vweird.f32 %v358
    %vm365 = vweird.f32 %v359
    %vm366 = vmor %vm364, %vm365
    %v367 = vsel %vm366, %v359, %v363
    %v368 = vand.u32 2147483647, %v358
    %vm369 = vcmp.eq.f32.partialorder %v368, 8.507059e+37
    %v370 = vand.u32 %v358, 2147483648
    %v371 = vor.u32 1.1754944e-38, %v370
    %v372 = vsel %vm369, %v371, %v367
    %v373 = vmul.f32 1.0, %v372
    %v374 = vld [vmem:[#allocation5] sm:$0xff]
    %v375 = vadd.f32 %v374, %v328
    %v376 = vxor.u32 %v375, 2147483648
    %v377 = vmul.f32 %v376, 1.442695
    %v378 = vpow.pop %v377
    %v379 = vadd.f32 %v378, 1.0
    %v380 = vrcp.pop %v379
    %v381 = vmul.f32 %v379, %v380
    %v382 = vsub.f32 1.0, %v381
    %v383 = vmul.f32 %v380, %v382
    %v384 = vadd.f32 %v380, %v383
    %vm385 = vweird.f32 %v379
    %vm386 = vweird.f32 %v380
    %vm387 = vmor %vm385, %vm386
    %v388 = vsel %vm387, %v380, %v384
    %v389 = vand.u32 2147483647, %v379
    %vm390 = vcmp.eq.f32.partialorder %v389, 8.507059e+37
    %v391 = vand.u32 %v379, 2147483648
    %v392 = vor.u32 1.1754944e-38, %v391
    %v393 = vsel %vm390, %v392, %v388
    %v394 = vmul.f32 1.0, %v393
    %v395 = vld [vmem:[#allocation6] sm:$0xff]
    %v396 = vmul.f32 %v373, %v351
    %v397 = vadd.f32 %v395, %v396
    %v398 = vtanh.pop %v397
    %v399 = vsub.f32 1.0, %v394
    %v400 = vmul.f32 %v399, %v398
    %v401 = vmul.f32 %v394, 0.0
    %v402 = vadd.f32 %v400, %v401
    %403 = vst.msk [vmem:[#allocation2] sm:$0xff] %vm167, %v402
    %v405 = vsel %vm167, %v402, 0
    %407 = vmatpush.msra.mxu0 0.0
    %408 = vmatpush.msra.mxu0 0.0
    %409 = vmatpush.msra.mxu0 0.0
    %410 = vmatpush.msra.mxu0 0.0
    %411 = vmatpush.msra.mxu0 0.0
    %412 = vmatpush.msra.mxu0 0.0
    %413 = vmatpush.msra.mxu0 0.0
    %414 = vmatpush.msra.mxu0 0.0
    %415 = vmatpush.msra.mxu0 0.0
    %416 = vmatpush.msra.mxu0 0.0
    %417 = vmatpush.msra.mxu0 0.0
    %418 = vmatpush.msra.mxu0 0.0
    %419 = vmatpush.msra.mxu0 0.0
    %420 = vmatpush.msra.mxu0 %v285
    %421 = vmatpush.msra.mxu0 %v87
    %422 = vmatpush.msra.mxu0 %v86
    %423 = vmatmul.f32.gmra.mxu0 %v405
    %v424 = vpop.f32.mrf.mxu0
    %v425 = vadd.f32 0.0, %v424
    %426 = vdwg.mxu0
    %427 = vmatpush.msra.mxu0 0.0
    %428 = vmatpush.msra.mxu0 0.0
    %429 = vmatpush.msra.mxu0 0.0
    %430 = vmatpush.msra.mxu0 0.0
    %431 = vmatpush.msra.mxu0 0.0
    %432 = vmatpush.msra.mxu0 0.0
    %433 = vmatpush.msra.mxu0 0.0
    %434 = vmatpush.msra.mxu0 0.0
    %435 = vmatpush.msra.mxu0 0.0
    %436 = vmatpush.msra.mxu0 0.0
    %437 = vmatpush.msra.mxu0 0.0
    %438 = vmatpush.msra.mxu0 0.0
    %439 = vmatpush.msra.mxu0 0.0
    %440 = vmatpush.msra.mxu0 %v308
    %441 = vmatpush.msra.mxu0 %v91
    %442 = vmatpush.msra.mxu0 %v90
    %443 = vmatmul.f32.gmra.mxu0 %v405
    %v444 = vpop.f32.mrf.mxu0
    %v445 = vadd.f32 0.0, %v444
    %446 = vdwg.mxu0
    %447 = vmatpush.msra.mxu0 0.0
    %448 = vmatpush.msra.mxu0 0.0
    %449 = vmatpush.msra.mxu0 0.0
    %450 = vmatpush.msra.mxu0 0.0
    %451 = vmatpush.msra.mxu0 0.0
    %452 = vmatpush.msra.mxu0 0.0
    %453 = vmatpush.msra.mxu0 0.0
    %454 = vmatpush.msra.mxu0 0.0
    %455 = vmatpush.msra.mxu0 0.0
    %456 = vmatpush.msra.mxu0 0.0
    %457 = vmatpush.msra.mxu0 0.0
    %458 = vmatpush.msra.mxu0 0.0
    %459 = vmatpush.msra.mxu0 0.0
    %460 = vmatpush.msra.mxu0 %v331
    %461 = vmatpush.msra.mxu0 %v95
    %462 = vmatpush.msra.mxu0 %v94
    %463 = vmatmul.f32.gmra.mxu0 %v405
    %v464 = vpop.f32.mrf.mxu0
    %v465 = vadd.f32 0.0, %v464
    %466 = vdwg.mxu0
    %v467 = vld [vmem:[#allocation4 + $0x8] sm:$0xff]
    %v468 = vadd.f32 %v467, %v425
    %v469 = vxor.u32 %v468, 2147483648
    %v470 = vmul.f32 %v469, 1.442695
    %v471 = vpow.pop %v470
    %v472 = vadd.f32 %v471, 1.0
    %v473 = vrcp.pop %v472
    %v474 = vmul.f32 %v472, %v473
    %v475 = vsub.f32 1.0, %v474
    %v476 = vmul.f32 %v473, %v475
    %v477 = vadd.f32 %v473, %v476
    %vm478 = vweird.f32 %v472
    %vm479 = vweird.f32 %v473
    %vm480 = vmor %vm478, %vm479
    %v481 = vsel %vm480, %v473, %v477
    %v482 = vand.u32 2147483647, %v472
    %vm483 = vcmp.eq.f32.partialorder %v482, 8.507059e+37
    %v484 = vand.u32 %v472, 2147483648
    %v485 = vor.u32 1.1754944e-38, %v484
    %v486 = vsel %vm483, %v485, %v481
    %v487 = vmul.f32 1.0, %v486
    %v488 = vld [vmem:[#allocation5 + $0x8] sm:$0xff]
    %v489 = vadd.f32 %v488, %v445
    %v490 = vxor.u32 %v489, 2147483648
    %v491 = vmul.f32 %v490, 1.442695
    %v492 = vpow.pop %v491
    %v493 = vadd.f32 %v492, 1.0
    %v494 = vrcp.pop %v493
    %v495 = vmul.f32 %v493, %v494
    %v496 = vsub.f32 1.0, %v495
    %v497 = vmul.f32 %v494, %v496
    %v498 = vadd.f32 %v494, %v497
    %vm499 = vweird.f32 %v493
    %vm500 = vweird.f32 %v494
    %vm501 = vmor %vm499, %vm500
    %v502 = vsel %vm501, %v494, %v498
    %v503 = vand.u32 2147483647, %v493
    %vm504 = vcmp.eq.f32.partialorder %v503, 8.507059e+37
    %v505 = vand.u32 %v493, 2147483648
    %v506 = vor.u32 1.1754944e-38, %v505
    %v507 = vsel %vm504, %v506, %v502
    %v508 = vmul.f32 1.0, %v507
    %v509 = vld [vmem:[#allocation6 + $0x8] sm:$0xff]
    %v510 = vmul.f32 %v487, %v465
    %v511 = vadd.f32 %v509, %v510
    %v512 = vtanh.pop %v511
    %v513 = vsub.f32 1.0, %v508
    %v514 = vmul.f32 %v513, %v512
    %v515 = vmul.f32 %v508, %v402
    %v516 = vadd.f32 %v514, %v515
    %517 = vst.msk [vmem:[#allocation2 + $0x8] sm:$0xff] %vm167, %v516
    %v519 = vsel %vm167, %v516, 0
    %521 = vmatpush.msra.mxu0 0.0
    %522 = vmatpush.msra.mxu0 0.0
    %523 = vmatpush.msra.mxu0 0.0
    %524 = vmatpush.msra.mxu0 0.0
    %525 = vmatpush.msra.mxu0 0.0
    %526 = vmatpush.msra.mxu0 0.0
    %527 = vmatpush.msra.mxu0 0.0
    %528 = vmatpush.msra.mxu0 0.0
    %529 = vmatpush.msra.mxu0 0.0
    %530 = vmatpush.msra.mxu0 0.0
    %531 = vmatpush.msra.mxu0 0.0
    %532 = vmatpush.msra.mxu0 0.0
    %533 = vmatpush.msra.mxu0 0.0
    %534 = vmatpush.msra.mxu0 %v285
    %535 = vmatpush.msra.mxu0 %v87
    %536 = vmatpush.msra.mxu0 %v86
    %537 = vmatmul.f32.gmra.mxu0 %v519
    %v538 = vpop.f32.mrf.mxu0
    %v539 = vadd.f32 0.0, %v538
    %540 = vdwg.mxu0
    %541 = vmatpush.msra.mxu0 0.0
    %542 = vmatpush.msra.mxu0 0.0
    %543 = vmatpush.msra.mxu0 0.0
    %544 = vmatpush.msra.mxu0 0.0
    %545 = vmatpush.msra.mxu0 0.0
    %546 = vmatpush.msra.mxu0 0.0
    %547 = vmatpush.msra.mxu0 0.0
    %548 = vmatpush.msra.mxu0 0.0
    %549 = vmatpush.msra.mxu0 0.0
    %550 = vmatpush.msra.mxu0 0.0
    %551 = vmatpush.msra.mxu0 0.0
    %552 = vmatpush.msra.mxu0 0.0
    %553 = vmatpush.msra.mxu0 0.0
    %554 = vmatpush.msra.mxu0 %v308
    %555 = vmatpush.msra.mxu0 %v91
    %556 = vmatpush.msra.mxu0 %v90
    %557 = vmatmul.f32.gmra.mxu0 %v519
    %v558 = vpop.f32.mrf.mxu0
    %v559 = vadd.f32 0.0, %v558
    %560 = vdwg.mxu0
    %561 = vmatpush.msra.mxu0 0.0
    %562 = vmatpush.msra.mxu0 0.0
    %563 = vmatpush.msra.mxu0 0.0
    %564 = vmatpush.msra.mxu0 0.0
    %565 = vmatpush.msra.mxu0 0.0
    %566 = vmatpush.msra.mxu0 0.0
    %567 = vmatpush.msra.mxu0 0.0
    %568 = vmatpush.msra.mxu0 0.0
    %569 = vmatpush.msra.mxu0 0.0
    %570 = vmatpush.msra.mxu0 0.0
    %571 = vmatpush.msra.mxu0 0.0
    %572 = vmatpush.msra.mxu0 0.0
    %573 = vmatpush.msra.mxu0 0.0
    %574 = vmatpush.msra.mxu0 %v331
    %575 = vmatpush.msra.mxu0 %v95
    %576 = vmatpush.msra.mxu0 %v94
    %577 = vmatmul.f32.gmra.mxu0 %v519
    %v578 = vpop.f32.mrf.mxu0
    %v579 = vadd.f32 0.0, %v578
    %580 = vdwg.mxu0
    %v581 = vld [vmem:[#allocation4 + $0x10] sm:$0xff]
    %v582 = vadd.f32 %v581, %v539
    %v583 = vxor.u32 %v582, 2147483648
    %v584 = vmul.f32 %v583, 1.442695
    %v585 = vpow.pop %v584
    %v586 = vadd.f32 %v585, 1.0
    %v587 = vrcp.pop %v586
    %v588 = vmul.f32 %v586, %v587
    %v589 = vsub.f32 1.0, %v588
    %v590 = vmul.f32 %v587, %v589
    %v591 = vadd.f32 %v587, %v590
    %vm592 = vweird.f32 %v586
    %vm593 = vweird.f32 %v587
    %vm594 = vmor %vm592, %vm593
    %v595 = vsel %vm594, %v587, %v591
    %v596 = vand.u32 2147483647, %v586
    %vm597 = vcmp.eq.f32.partialorder %v596, 8.507059e+37
    %v598 = vand.u32 %v586, 2147483648
    %v599 = vor.u32 1.1754944e-38, %v598
    %v600 = vsel %vm597, %v599, %v595
    %v601 = vmul.f32 1.0, %v600
    %v602 = vld [vmem:[#allocation5 + $0x10] sm:$0xff]
    %v603 = vadd.f32 %v602, %v559
    %v604 = vxor.u32 %v603, 2147483648
    %v605 = vmul.f32 %v604, 1.442695
    %v606 = vpow.pop %v605
    %v607 = vadd.f32 %v606, 1.0
    %v608 = vrcp.pop %v607
    %v609 = vmul.f32 %v607, %v608
    %v610 = vsub.f32 1.0, %v609
    %v611 = vmul.f32 %v608, %v610
    %v612 = vadd.f32 %v608, %v611
    %vm613 = vweird.f32 %v607
    %vm614 = vweird.f32 %v608
    %vm615 = vmor %vm613, %vm614
    %v616 = vsel %vm615, %v608, %v612
    %v617 = vand.u32 2147483647, %v607
    %vm618 = vcmp.eq.f32.partialorder %v617, 8.507059e+37
    %v619 = vand.u32 %v607, 2147483648
    %v620 = vor.u32 1.1754944e-38, %v619
    %v621 = vsel %vm618, %v620, %v616
    %v622 = vmul.f32 1.0, %v621
    %v623 = vld [vmem:[#allocation6 + $0x10] sm:$0xff]
    %v624 = vmul.f32 %v601, %v579
    %v625 = vadd.f32 %v623, %v624
    %v626 = vtanh.pop %v625
    %v627 = vsub.f32 1.0, %v622
    %v628 = vmul.f32 %v627, %v626
    %v629 = vmul.f32 %v622, %v516
    %v630 = vadd.f32 %v628, %v629
    %631 = vst.msk [vmem:[#allocation2 + $0x10] sm:$0xff] %vm167, %v630
    %v633 = vsel %vm167, %v630, 0
    %635 = vmatpush.msra.mxu0 0.0
    %636 = vmatpush.msra.mxu0 0.0
    %637 = vmatpush.msra.mxu0 0.0
    %638 = vmatpush.msra.mxu0 0.0
    %639 = vmatpush.msra.mxu0 0.0
    %640 = vmatpush.msra.mxu0 0.0
    %641 = vmatpush.msra.mxu0 0.0
    %642 = vmatpush.msra.mxu0 0.0
    %643 = vmatpush.msra.mxu0 0.0
    %644 = vmatpush.msra.mxu0 0.0
    %645 = vmatpush.msra.mxu0 0.0
    %646 = vmatpush.msra.mxu0 0.0
    %647 = vmatpush.msra.mxu0 0.0
    %648 = vmatpush.msra.mxu0 %v285
    %649 = vmatpush.msra.mxu0 %v87
    %650 = vmatpush.msra.mxu0 %v86
    %651 = vmatmul.f32.gmra.mxu0 %v633
    %v652 = vpop.f32.mrf.mxu0
    %v653 = vadd.f32 0.0, %v652
    %654 = vdwg.mxu0
    %655 = vmatpush.msra.mxu0 0.0
    %656 = vmatpush.msra.mxu0 0.0
    %657 = vmatpush.msra.mxu0 0.0
    %658 = vmatpush.msra.mxu0 0.0
    %659 = vmatpush.msra.mxu0 0.0
    %660 = vmatpush.msra.mxu0 0.0
    %661 = vmatpush.msra.mxu0 0.0
    %662 = vmatpush.msra.mxu0 0.0
    %663 = vmatpush.msra.mxu0 0.0
    %664 = vmatpush.msra.mxu0 0.0
    %665 = vmatpush.msra.mxu0 0.0
    %666 = vmatpush.msra.mxu0 0.0
    %667 = vmatpush.msra.mxu0 0.0
    %668 = vmatpush.msra.mxu0 %v308
    %669 = vmatpush.msra.mxu0 %v91
    %670 = vmatpush.msra.mxu0 %v90
    %671 = vmatmul.f32.gmra.mxu0 %v633
    %v672 = vpop.f32.mrf.mxu0
    %v673 = vadd.f32 0.0, %v672
    %674 = vdwg.mxu0
    %675 = vmatpush.msra.mxu0 0.0
    %676 = vmatpush.msra.mxu0 0.0
    %677 = vmatpush.msra.mxu0 0.0
    %678 = vmatpush.msra.mxu0 0.0
    %679 = vmatpush.msra.mxu0 0.0
    %680 = vmatpush.msra.mxu0 0.0
    %681 = vmatpush.msra.mxu0 0.0
    %682 = vmatpush.msra.mxu0 0.0
    %683 = vmatpush.msra.mxu0 0.0
    %684 = vmatpush.msra.mxu0 0.0
    %685 = vmatpush.msra.mxu0 0.0
    %686 = vmatpush.msra.mxu0 0.0
    %687 = vmatpush.msra.mxu0 0.0
    %688 = vmatpush.msra.mxu0 %v331
    %689 = vmatpush.msra.mxu0 %v95
    %690 = vmatpush.msra.mxu0 %v94
    %691 = vmatmul.f32.gmra.mxu0 %v633
    %v692 = vpop.f32.mrf.mxu0
    %v693 = vadd.f32 0.0, %v692
    %694 = vdwg.mxu0
    %v695 = vld [vmem:[#allocation4 + $0x18] sm:$0xff]
    %v696 = vadd.f32 %v695, %v653
    %v697 = vxor.u32 %v696, 2147483648
    %v698 = vmul.f32 %v697, 1.442695
    %v699 = vpow.pop %v698
    %v700 = vadd.f32 %v699, 1.0
    %v701 = vrcp.pop %v700
    %v702 = vmul.f32 %v700, %v701
    %v703 = vsub.f32 1.0, %v702
    %v704 = vmul.f32 %v701, %v703
    %v705 = vadd.f32 %v701, %v704
    %vm706 = vweird.f32 %v700
    %vm707 = vweird.f32 %v701
    %vm708 = vmor %vm706, %vm707
    %v709 = vsel %vm708, %v701, %v705
    %v710 = vand.u32 2147483647, %v700
    %vm711 = vcmp.eq.f32.partialorder %v710, 8.507059e+37
    %v712 = vand.u32 %v700, 2147483648
    %v713 = vor.u32 1.1754944e-38, %v712
    %v714 = vsel %vm711, %v713, %v709
    %v715 = vmul.f32 1.0, %v714
    %v716 = vld [vmem:[#allocation5 + $0x18] sm:$0xff]
    %v717 = vadd.f32 %v716, %v673
    %v718 = vxor.u32 %v717, 2147483648
    %v719 = vmul.f32 %v718, 1.442695
    %v720 = vpow.pop %v719
    %v721 = vadd.f32 %v720, 1.0
    %v722 = vrcp.pop %v721
    %v723 = vmul.f32 %v721, %v722
    %v724 = vsub.f32 1.0, %v723
    %v725 = vmul.f32 %v722, %v724
    %v726 = vadd.f32 %v722, %v725
    %vm727 = vweird.f32 %v721
    %vm728 = vweird.f32 %v722
    %vm729 = vmor %vm727, %vm728
    %v730 = vsel %vm729, %v722, %v726
    %v731 = vand.u32 2147483647, %v721
    %vm732 = vcmp.eq.f32.partialorder %v731, 8.507059e+37
    %v733 = vand.u32 %v721, 2147483648
    %v734 = vor.u32 1.1754944e-38, %v733
    %v735 = vsel %vm732, %v734, %v730
    %v736 = vmul.f32 1.0, %v735
    %v737 = vld [vmem:[#allocation6 + $0x18] sm:$0xff]
    %v738 = vmul.f32 %v715, %v693
    %v739 = vadd.f32 %v737, %v738
    %v740 = vtanh.pop %v739
    %v741 = vsub.f32 1.0, %v736
    %v742 = vmul.f32 %v741, %v740
    %v743 = vmul.f32 %v736, %v630
    %v744 = vadd.f32 %v742, %v743
    %745 = vst.msk [vmem:[#allocation2 + $0x18] sm:$0xff] %vm167, %v744
    %v747 = vsel %vm167, %v744, 0
    %749 = vmatpush.msra.mxu0 0.0
    %750 = vmatpush.msra.mxu0 0.0
    %751 = vmatpush.msra.mxu0 0.0
    %752 = vmatpush.msra.mxu0 0.0
    %753 = vmatpush.msra.mxu0 0.0
    %754 = vmatpush.msra.mxu0 0.0
    %755 = vmatpush.msra.mxu0 0.0
    %756 = vmatpush.msra.mxu0 0.0
    %757 = vmatpush.msra.mxu0 0.0
    %758 = vmatpush.msra.mxu0 0.0
    %759 = vmatpush.msra.mxu0 0.0
    %760 = vmatpush.msra.mxu0 0.0
    %761 = vmatpush.msra.mxu0 0.0
    %762 = vmatpush.msra.mxu0 %v285
    %763 = vmatpush.msra.mxu0 %v87
    %764 = vmatpush.msra.mxu0 %v86
    %765 = vmatmul.f32.gmra.mxu0 %v747
    %v766 = vpop.f32.mrf.mxu0
    %v767 = vadd.f32 0.0, %v766
    %768 = vdwg.mxu0
    %769 = vmatpush.msra.mxu0 0.0
    %770 = vmatpush.msra.mxu0 0.0
    %771 = vmatpush.msra.mxu0 0.0
    %772 = vmatpush.msra.mxu0 0.0
    %773 = vmatpush.msra.mxu0 0.0
    %774 = vmatpush.msra.mxu0 0.0
    %775 = vmatpush.msra.mxu0 0.0
    %776 = vmatpush.msra.mxu0 0.0
    %777 = vmatpush.msra.mxu0 0.0
    %778 = vmatpush.msra.mxu0 0.0
    %779 = vmatpush.msra.mxu0 0.0
    %780 = vmatpush.msra.mxu0 0.0
    %781 = vmatpush.msra.mxu0 0.0
    %782 = vmatpush.msra.mxu0 %v308
    %783 = vmatpush.msra.mxu0 %v91
    %784 = vmatpush.msra.mxu0 %v90
    %785 = vmatmul.f32.gmra.mxu0 %v747
    %v786 = vpop.f32.mrf.mxu0
    %v787 = vadd.f32 0.0, %v786
    %788 = vdwg.mxu0
    %789 = vmatpush.msra.mxu0 0.0
    %790 = vmatpush.msra.mxu0 0.0
    %791 = vmatpush.msra.mxu0 0.0
    %792 = vmatpush.msra.mxu0 0.0
    %793 = vmatpush.msra.mxu0 0.0
    %794 = vmatpush.msra.mxu0 0.0
    %795 = vmatpush.msra.mxu0 0.0
    %796 = vmatpush.msra.mxu0 0.0
    %797 = vmatpush.msra.mxu0 0.0
    %798 = vmatpush.msra.mxu0 0.0
    %799 = vmatpush.msra.mxu0 0.0
    %800 = vmatpush.msra.mxu0 0.0
    %801 = vmatpush.msra.mxu0 0.0
    %802 = vmatpush.msra.mxu0 %v331
    %803 = vmatpush.msra.mxu0 %v95
    %804 = vmatpush.msra.mxu0 %v94
    %805 = vmatmul.f32.gmra.mxu0 %v747
    %v806 = vpop.f32.mrf.mxu0
    %v807 = vadd.f32 0.0, %v806
    %808 = vdwg.mxu0
    %v809 = vld [vmem:[#allocation4 + $0x20] sm:$0xff]
    %v810 = vadd.f32 %v809, %v767
    %v811 = vxor.u32 %v810, 2147483648
    %v812 = vmul.f32 %v811, 1.442695
    %v813 = vpow.pop %v812
    %v814 = vadd.f32 %v813, 1.0
    %v815 = vrcp.pop %v814
    %v816 = vmul.f32 %v814, %v815
    %v817 = vsub.f32 1.0, %v816
    %v818 = vmul.f32 %v815, %v817
    %v819 = vadd.f32 %v815, %v818
    %vm820 = vweird.f32 %v814
    %vm821 = vweird.f32 %v815
    %vm822 = vmor %vm820, %vm821
    %v823 = vsel %vm822, %v815, %v819
    %v824 = vand.u32 2147483647, %v814
    %vm825 = vcmp.eq.f32.partialorder %v824, 8.507059e+37
    %v826 = vand.u32 %v814, 2147483648
    %v827 = vor.u32 1.1754944e-38, %v826
    %v828 = vsel %vm825, %v827, %v823
    %v829 = vmul.f32 1.0, %v828
    %v830 = vld [vmem:[#allocation5 + $0x20] sm:$0xff]
    %v831 = vadd.f32 %v830, %v787
    %v832 = vxor.u32 %v831, 2147483648
    %v833 = vmul.f32 %v832, 1.442695
    %v834 = vpow.pop %v833
    %v835 = vadd.f32 %v834, 1.0
    %v836 = vrcp.pop %v835
    %v837 = vmul.f32 %v835, %v836
    %v838 = vsub.f32 1.0, %v837
    %v839 = vmul.f32 %v836, %v838
    %v840 = vadd.f32 %v836, %v839
    %vm841 = vweird.f32 %v835
    %vm842 = vweird.f32 %v836
    %vm843 = vmor %vm841, %vm842
    %v844 = vsel %vm843, %v836, %v840
    %v845 = vand.u32 2147483647, %v835
    %vm846 = vcmp.eq.f32.partialorder %v845, 8.507059e+37
    %v847 = vand.u32 %v835, 2147483648
    %v848 = vor.u32 1.1754944e-38, %v847
    %v849 = vsel %vm846, %v848, %v844
    %v850 = vmul.f32 1.0, %v849
    %v851 = vld [vmem:[#allocation6 + $0x20] sm:$0xff]
    %v852 = vmul.f32 %v829, %v807
    %v853 = vadd.f32 %v851, %v852
    %v854 = vtanh.pop %v853
    %v855 = vsub.f32 1.0, %v850
    %v856 = vmul.f32 %v855, %v854
    %v857 = vmul.f32 %v850, %v744
    %v858 = vadd.f32 %v856, %v857
    %859 = vst.msk [vmem:[#allocation2 + $0x20] sm:$0xff] %vm167, %v858
    %v861 = vsel %vm167, %v858, 0
    %863 = vmatpush.msra.mxu0 0.0
    %864 = vmatpush.msra.mxu0 0.0
    %865 = vmatpush.msra.mxu0 0.0
    %866 = vmatpush.msra.mxu0 0.0
    %867 = vmatpush.msra.mxu0 0.0
    %868 = vmatpush.msra.mxu0 0.0
    %869 = vmatpush.msra.mxu0 0.0
    %870 = vmatpush.msra.mxu0 0.0
    %871 = vmatpush.msra.mxu0 0.0
    %872 = vmatpush.msra.mxu0 0.0
    %873 = vmatpush.msra.mxu0 0.0
    %874 = vmatpush.msra.mxu0 0.0
    %875 = vmatpush.msra.mxu0 0.0
    %876 = vmatpush.msra.mxu0 %v285
    %877 = vmatpush.msra.mxu0 %v87
    %878 = vmatpush.msra.mxu0 %v86
    %879 = vmatmul.f32.gmra.mxu0 %v861
    %v880 = vpop.f32.mrf.mxu0
    %v881 = vadd.f32 0.0, %v880
    %882 = vdwg.mxu0
    %883 = vmatpush.msra.mxu0 0.0
    %884 = vmatpush.msra.mxu0 0.0
    %885 = vmatpush.msra.mxu0 0.0
    %886 = vmatpush.msra.mxu0 0.0
    %887 = vmatpush.msra.mxu0 0.0
    %888 = vmatpush.msra.mxu0 0.0
    %889 = vmatpush.msra.mxu0 0.0
    %890 = vmatpush.msra.mxu0 0.0
    %891 = vmatpush.msra.mxu0 0.0
    %892 = vmatpush.msra.mxu0 0.0
    %893 = vmatpush.msra.mxu0 0.0
    %894 = vmatpush.msra.mxu0 0.0
    %895 = vmatpush.msra.mxu0 0.0
    %896 = vmatpush.msra.mxu0 %v308
    %897 = vmatpush.msra.mxu0 %v91
    %898 = vmatpush.msra.mxu0 %v90
    %899 = vmatmul.f32.gmra.mxu0 %v861
    %v900 = vpop.f32.mrf.mxu0
    %v901 = vadd.f32 0.0, %v900
    %902 = vdwg.mxu0
    %903 = vmatpush.msra.mxu0 0.0
    %904 = vmatpush.msra.mxu0 0.0
    %905 = vmatpush.msra.mxu0 0.0
    %906 = vmatpush.msra.mxu0 0.0
    %907 = vmatpush.msra.mxu0 0.0
    %908 = vmatpush.msra.mxu0 0.0
    %909 = vmatpush.msra.mxu0 0.0
    %910 = vmatpush.msra.mxu0 0.0
    %911 = vmatpush.msra.mxu0 0.0
    %912 = vmatpush.msra.mxu0 0.0
    %913 = vmatpush.msra.mxu0 0.0
    %914 = vmatpush.msra.mxu0 0.0
    %915 = vmatpush.msra.mxu0 0.0
    %916 = vmatpush.msra.mxu0 %v331
    %917 = vmatpush.msra.mxu0 %v95
    %918 = vmatpush.msra.mxu0 %v94
    %919 = vmatmul.f32.gmra.mxu0 %v861
    %v920 = vpop.f32.mrf.mxu0
    %v921 = vadd.f32 0.0, %v920
    %922 = vdwg.mxu0
    %v923 = vld [vmem:[#allocation4 + $0x28] sm:$0xff]
    %v924 = vadd.f32 %v923, %v881
    %v925 = vxor.u32 %v924, 2147483648
    %v926 = vmul.f32 %v925, 1.442695
    %v927 = vpow.pop %v926
    %v928 = vadd.f32 %v927, 1.0
    %v929 = vrcp.pop %v928
    %v930 = vmul.f32 %v928, %v929
    %v931 = vsub.f32 1.0, %v930
    %v932 = vmul.f32 %v929, %v931
    %v933 = vadd.f32 %v929, %v932
    %vm934 = vweird.f32 %v928
    %vm935 = vweird.f32 %v929
    %vm936 = vmor %vm934, %vm935
    %v937 = vsel %vm936, %v929, %v933
    %v938 = vand.u32 2147483647, %v928
    %vm939 = vcmp.eq.f32.partialorder %v938, 8.507059e+37
    %v940 = vand.u32 %v928, 2147483648
    %v941 = vor.u32 1.1754944e-38, %v940
    %v942 = vsel %vm939, %v941, %v937
    %v943 = vmul.f32 1.0, %v942
    %v944 = vld [vmem:[#allocation5 + $0x28] sm:$0xff]
    %v945 = vadd.f32 %v944, %v901
    %v946 = vxor.u32 %v945, 2147483648
    %v947 = vmul.f32 %v946, 1.442695
    %v948 = vpow.pop %v947
    %v949 = vadd.f32 %v948, 1.0
    %v950 = vrcp.pop %v949
    %v951 = vmul.f32 %v949, %v950
    %v952 = vsub.f32 1.0, %v951
    %v953 = vmul.f32 %v950, %v952
    %v954 = vadd.f32 %v950, %v953
    %vm955 = vweird.f32 %v949
    %vm956 = vweird.f32 %v950
    %vm957 = vmor %vm955, %vm956
    %v958 = vsel %vm957, %v950, %v954
    %v959 = vand.u32 2147483647, %v949
    %vm960 = vcmp.eq.f32.partialorder %v959, 8.507059e+37
    %v961 = vand.u32 %v949, 2147483648
    %v962 = vor.u32 1.1754944e-38, %v961
    %v963 = vsel %vm960, %v962, %v958
    %v964 = vmul.f32 1.0, %v963
    %v965 = vld [vmem:[#allocation6 + $0x28] sm:$0xff]
    %v966 = vmul.f32 %v943, %v921
    %v967 = vadd.f32 %v965, %v966
    %v968 = vtanh.pop %v967
    %v969 = vsub.f32 1.0, %v964
    %v970 = vmul.f32 %v969, %v968
    %v971 = vmul.f32 %v964, %v858
    %v972 = vadd.f32 %v970, %v971
    %973 = vst.msk [vmem:[#allocation2 + $0x28] sm:$0xff] %vm167, %v972
    %v975 = vsel %vm167, %v972, 0
    %977 = vmatpush.msra.mxu0 0.0
    %978 = vmatpush.msra.mxu0 0.0
    %979 = vmatpush.msra.mxu0 0.0
    %980 = vmatpush.msra.mxu0 0.0
    %981 = vmatpush.msra.mxu0 0.0
    %982 = vmatpush.msra.mxu0 0.0
    %983 = vmatpush.msra.mxu0 0.0
    %984 = vmatpush.msra.mxu0 0.0
    %985 = vmatpush.msra.mxu0 0.0
    %986 = vmatpush.msra.mxu0 0.0
    %987 = vmatpush.msra.mxu0 0.0
    %988 = vmatpush.msra.mxu0 0.0
    %989 = vmatpush.msra.mxu0 0.0
    %990 = vmatpush.msra.mxu0 %v285
    %991 = vmatpush.msra.mxu0 %v87
    %992 = vmatpush.msra.mxu0 %v86
    %993 = vmatmul.f32.gmra.mxu0 %v975
    %v994 = vpop.f32.mrf.mxu0
    %v995 = vadd.f32 0.0, %v994
    %996 = vdwg.mxu0
    %997 = vmatpush.msra.mxu0 0.0
    %998 = vmatpush.msra.mxu0 0.0
    %999 = vmatpush.msra.mxu0 0.0
    %1000 = vmatpush.msra.mxu0 0.0
    %1001 = vmatpush.msra.mxu0 0.0
    %1002 = vmatpush.msra.mxu0 0.0
    %1003 = vmatpush.msra.mxu0 0.0
    %1004 = vmatpush.msra.mxu0 0.0
    %1005 = vmatpush.msra.mxu0 0.0
    %1006 = vmatpush.msra.mxu0 0.0
    %1007 = vmatpush.msra.mxu0 0.0
    %1008 = vmatpush.msra.mxu0 0.0
    %1009 = vmatpush.msra.mxu0 0.0
    %1010 = vmatpush.msra.mxu0 %v308
    %1011 = vmatpush.msra.mxu0 %v91
    %1012 = vmatpush.msra.mxu0 %v90
    %1013 = vmatmul.f32.gmra.mxu0 %v975
    %v1014 = vpop.f32.mrf.mxu0
    %v1015 = vadd.f32 0.0, %v1014
    %1016 = vdwg.mxu0
    %1017 = vmatpush.msra.mxu0 0.0
    %1018 = vmatpush.msra.mxu0 0.0
    %1019 = vmatpush.msra.mxu0 0.0
    %1020 = vmatpush.msra.mxu0 0.0
    %1021 = vmatpush.msra.mxu0 0.0
    %1022 = vmatpush.msra.mxu0 0.0
    %1023 = vmatpush.msra.mxu0 0.0
    %1024 = vmatpush.msra.mxu0 0.0
    %1025 = vmatpush.msra.mxu0 0.0
    %1026 = vmatpush.msra.mxu0 0.0
    %1027 = vmatpush.msra.mxu0 0.0
    %1028 = vmatpush.msra.mxu0 0.0
    %1029 = vmatpush.msra.mxu0 0.0
    %1030 = vmatpush.msra.mxu0 %v331
    %1031 = vmatpush.msra.mxu0 %v95
    %1032 = vmatpush.msra.mxu0 %v94
    %1033 = vmatmul.f32.gmra.mxu0 %v975
    %v1034 = vpop.f32.mrf.mxu0
    %v1035 = vadd.f32 0.0, %v1034
    %1036 = vdwg.mxu0
    %v1037 = vld [vmem:[#allocation4 + $0x30] sm:$0xff]
    %v1038 = vadd.f32 %v1037, %v995
    %v1039 = vxor.u32 %v1038, 2147483648
    %v1040 = vmul.f32 %v1039, 1.442695
    %v1041 = vpow.pop %v1040
    %v1042 = vadd.f32 %v1041, 1.0
    %v1043 = vrcp.pop %v1042
    %v1044 = vmul.f32 %v1042, %v1043
    %v1045 = vsub.f32 1.0, %v1044
    %v1046 = vmul.f32 %v1043, %v1045
    %v1047 = vadd.f32 %v1043, %v1046
    %vm1048 = vweird.f32 %v1042
    %vm1049 = vweird.f32 %v1043
    %vm1050 = vmor %vm1048, %vm1049
    %v1051 = vsel %vm1050, %v1043, %v1047
    %v1052 = vand.u32 2147483647, %v1042
    %vm1053 = vcmp.eq.f32.partialorder %v1052, 8.507059e+37
    %v1054 = vand.u32 %v1042, 2147483648
    %v1055 = vor.u32 1.1754944e-38, %v1054
    %v1056 = vsel %vm1053, %v1055, %v1051
    %v1057 = vmul.f32 1.0, %v1056
    %v1058 = vld [vmem:[#allocation5 + $0x30] sm:$0xff]
    %v1059 = vadd.f32 %v1058, %v1015
    %v1060 = vxor.u32 %v1059, 2147483648
    %v1061 = vmul.f32 %v1060, 1.442695
    %v1062 = vpow.pop %v1061
    %v1063 = vadd.f32 %v1062, 1.0
    %v1064 = vrcp.pop %v1063
    %v1065 = vmul.f32 %v1063, %v1064
    %v1066 = vsub.f32 1.0, %v1065
    %v1067 = vmul.f32 %v1064, %v1066
    %v1068 = vadd.f32 %v1064, %v1067
    %vm1069 = vweird.f32 %v1063
    %vm1070 = vweird.f32 %v1064
    %vm1071 = vmor %vm1069, %vm1070
    %v1072 = vsel %vm1071, %v1064, %v1068
    %v1073 = vand.u32 2147483647, %v1063
    %vm1074 = vcmp.eq.f32.partialorder %v1073, 8.507059e+37
    %v1075 = vand.u32 %v1063, 2147483648
    %v1076 = vor.u32 1.1754944e-38, %v1075
    %v1077 = vsel %vm1074, %v1076, %v1072
    %v1078 = vmul.f32 1.0, %v1077
    %v1079 = vld [vmem:[#allocation6 + $0x30] sm:$0xff]
    %v1080 = vmul.f32 %v1057, %v1035
    %v1081 = vadd.f32 %v1079, %v1080
    %v1082 = vtanh.pop %v1081
    %v1083 = vsub.f32 1.0, %v1078
    %v1084 = vmul.f32 %v1083, %v1082
    %v1085 = vmul.f32 %v1078, %v972
    %v1086 = vadd.f32 %v1084, %v1085
    %1087 = vst.msk [vmem:[#allocation2 + $0x30] sm:$0xff] %vm167, %v1086
    %v1089 = vsel %vm167, %v1086, 0
    %1091 = vmatpush.msra.mxu0 0.0
    %1092 = vmatpush.msra.mxu0 0.0
    %1093 = vmatpush.msra.mxu0 0.0
    %1094 = vmatpush.msra.mxu0 0.0
    %1095 = vmatpush.msra.mxu0 0.0
    %1096 = vmatpush.msra.mxu0 0.0
    %1097 = vmatpush.msra.mxu0 0.0
    %1098 = vmatpush.msra.mxu0 0.0
    %1099 = vmatpush.msra.mxu0 0.0
    %1100 = vmatpush.msra.mxu0 0.0
    %1101 = vmatpush.msra.mxu0 0.0
    %1102 = vmatpush.msra.mxu0 0.0
    %1103 = vmatpush.msra.mxu0 0.0
    %1104 = vmatpush.msra.mxu0 %v285
    %1105 = vmatpush.msra.mxu0 %v87
    %1106 = vmatpush.msra.mxu0 %v86
    %1107 = vmatmul.f32.gmra.mxu0 %v1089
    %v1108 = vpop.f32.mrf.mxu0
    %v1109 = vadd.f32 0.0, %v1108
    %1110 = vdwg.mxu0
    %1111 = vmatpush.msra.mxu0 0.0
    %1112 = vmatpush.msra.mxu0 0.0
    %1113 = vmatpush.msra.mxu0 0.0
    %1114 = vmatpush.msra.mxu0 0.0
    %1115 = vmatpush.msra.mxu0 0.0
    %1116 = vmatpush.msra.mxu0 0.0
    %1117 = vmatpush.msra.mxu0 0.0
    %1118 = vmatpush.msra.mxu0 0.0
    %1119 = vmatpush.msra.mxu0 0.0
    %1120 = vmatpush.msra.mxu0 0.0
    %1121 = vmatpush.msra.mxu0 0.0
    %1122 = vmatpush.msra.mxu0 0.0
    %1123 = vmatpush.msra.mxu0 0.0
    %1124 = vmatpush.msra.mxu0 %v308
    %1125 = vmatpush.msra.mxu0 %v91
    %1126 = vmatpush.msra.mxu0 %v90
    %1127 = vmatmul.f32.gmra.mxu0 %v1089
    %v1128 = vpop.f32.mrf.mxu0
    %v1129 = vadd.f32 0.0, %v1128
    %1130 = vdwg.mxu0
    %1131 = vmatpush.msra.mxu0 0.0
    %1132 = vmatpush.msra.mxu0 0.0
    %1133 = vmatpush.msra.mxu0 0.0
    %1134 = vmatpush.msra.mxu0 0.0
    %1135 = vmatpush.msra.mxu0 0.0
    %1136 = vmatpush.msra.mxu0 0.0
    %1137 = vmatpush.msra.mxu0 0.0
    %1138 = vmatpush.msra.mxu0 0.0
    %1139 = vmatpush.msra.mxu0 0.0
    %1140 = vmatpush.msra.mxu0 0.0
    %1141 = vmatpush.msra.mxu0 0.0
    %1142 = vmatpush.msra.mxu0 0.0
    %1143 = vmatpush.msra.mxu0 0.0
    %1144 = vmatpush.msra.mxu0 %v331
    %1145 = vmatpush.msra.mxu0 %v95
    %1146 = vmatpush.msra.mxu0 %v94
    %1147 = vmatmul.f32.gmra.mxu0 %v1089
    %v1148 = vpop.f32.mrf.mxu0
    %v1149 = vadd.f32 0.0, %v1148
    %1150 = vdwg.mxu0
    %v1151 = vld [vmem:[#allocation4 + $0x38] sm:$0xff]
    %v1152 = vadd.f32 %v1151, %v1109
    %v1153 = vxor.u32 %v1152, 2147483648
    %v1154 = vmul.f32 %v1153, 1.442695
    %v1155 = vpow.pop %v1154
    %v1156 = vadd.f32 %v1155, 1.0
    %v1157 = vrcp.pop %v1156
    %v1158 = vmul.f32 %v1156, %v1157
    %v1159 = vsub.f32 1.0, %v1158
    %v1160 = vmul.f32 %v1157, %v1159
    %v1161 = vadd.f32 %v1157, %v1160
    %vm1162 = vweird.f32 %v1156
    %vm1163 = vweird.f32 %v1157
    %vm1164 = vmor %vm1162, %vm1163
    %v1165 = vsel %vm1164, %v1157, %v1161
    %v1166 = vand.u32 2147483647, %v1156
    %vm1167 = vcmp.eq.f32.partialorder %v1166, 8.507059e+37
    %v1168 = vand.u32 %v1156, 2147483648
    %v1169 = vor.u32 1.1754944e-38, %v1168
    %v1170 = vsel %vm1167, %v1169, %v1165
    %v1171 = vmul.f32 1.0, %v1170
    %v1172 = vld [vmem:[#allocation5 + $0x38] sm:$0xff]
    %v1173 = vadd.f32 %v1172, %v1129
    %v1174 = vxor.u32 %v1173, 2147483648
    %v1175 = vmul.f32 %v1174, 1.442695
    %v1176 = vpow.pop %v1175
    %v1177 = vadd.f32 %v1176, 1.0
    %v1178 = vrcp.pop %v1177
    %v1179 = vmul.f32 %v1177, %v1178
    %v1180 = vsub.f32 1.0, %v1179
    %v1181 = vmul.f32 %v1178, %v1180
    %v1182 = vadd.f32 %v1178, %v1181
    %vm1183 = vweird.f32 %v1177
    %vm1184 = vweird.f32 %v1178
    %vm1185 = vmor %vm1183, %vm1184
    %v1186 = vsel %vm1185, %v1178, %v1182
    %v1187 = vand.u32 2147483647, %v1177
    %vm1188 = vcmp.eq.f32.partialorder %v1187, 8.507059e+37
    %v1189 = vand.u32 %v1177, 2147483648
    %v1190 = vor.u32 1.1754944e-38, %v1189
    %v1191 = vsel %vm1188, %v1190, %v1186
    %v1192 = vmul.f32 1.0, %v1191
    %v1193 = vld [vmem:[#allocation6 + $0x38] sm:$0xff]
    %v1194 = vmul.f32 %v1171, %v1149
    %v1195 = vadd.f32 %v1193, %v1194
    %v1196 = vtanh.pop %v1195
    %v1197 = vsub.f32 1.0, %v1192
    %v1198 = vmul.f32 %v1197, %v1196
    %v1199 = vmul.f32 %v1192, %v1086
    %v1200 = vadd.f32 %v1198, %v1199
    %1201 = vst.msk [vmem:[#allocation2 + $0x38] sm:$0xff] %vm167, %v1200
    %v1202 = vld [vmem:[#allocation2] sm:$0xff]
    %v1203 = vld [vmem:[#allocation2 + $0x8] sm:$0xff]
    %v1204 = vld [vmem:[#allocation2 + $0x10] sm:$0xff]
    %v1205 = vld [vmem:[#allocation2 + $0x18] sm:$0xff]
    %v1206 = vld [vmem:[#allocation2 + $0x20] sm:$0xff]
    %v1207 = vld [vmem:[#allocation2 + $0x28] sm:$0xff]
    %v1208 = vld [vmem:[#allocation2 + $0x30] sm:$0xff]
    %v1209 = vld [vmem:[#allocation2 + $0x38] sm:$0xff]
    %v1210 = vld [vmem:[#allocation9] sm:$0xff]
    %v1211 = vld [vmem:[#allocation9 + $0x8] sm:$0xff]
    %v1212 = vld [vmem:[#allocation9 + $0x10] sm:$0x3]
    %s1213 = scalar_lea.vmem [#allocation9], 24
    %v1214 = vld [vmem:[%s1213] sm:$0xff]
    %v1215 = vld [vmem:[%s1213 + $0x8] sm:$0xff]
    %v1216 = vld [vmem:[%s1213 + $0x10] sm:$0x3]
    %s1217 = scalar_lea.vmem [#allocation9], 48
    %v1218 = vld [vmem:[%s1217] sm:$0xff]
    %v1219 = vld [vmem:[%s1217 + $0x8] sm:$0xff]
    %v1220 = vld [vmem:[%s1217 + $0x10] sm:$0x3]
    %v1221 = vld [vmem:[#allocation11] sm:$0xff]
    %v1222 = vld [vmem:[#allocation11 + $0x8] sm:$0xff]
    %v1223 = vld [vmem:[#allocation11 + $0x10] sm:$0x3]
    %s1224 = scalar_lea.vmem [#allocation11], 24
    %v1225 = vld [vmem:[%s1224] sm:$0xff]
    %v1226 = vld [vmem:[%s1224 + $0x8] sm:$0xff]
    %v1227 = vld [vmem:[%s1224 + $0x10] sm:$0x3]
    %s1228 = scalar_lea.vmem [#allocation11], 48
    %v1229 = vld [vmem:[%s1228] sm:$0xff]
    %v1230 = vld [vmem:[%s1228 + $0x8] sm:$0xff]
    %v1231 = vld [vmem:[%s1228 + $0x10] sm:$0x3]
    %v1233 = vsel %vm167, %v1202, 0
    %v1236 = vsel %vm167, %v1203, 0
    %v1239 = vsel %vm167, %v1204, 0
    %v1242 = vsel %vm167, %v1205, 0
    %v1245 = vsel %vm167, %v1206, 0
    %v1248 = vsel %vm167, %v1207, 0
    %v1251 = vsel %vm167, %v1208, 0
    %v1254 = vsel %vm167, %v1209, 0
    %v1257 = vsel %vm283, %v1212, 0
    %1259 = vmatpush.msra.mxu0 0.0
    %1260 = vmatpush.msra.mxu0 0.0
    %1261 = vmatpush.msra.mxu0 0.0
    %1262 = vmatpush.msra.mxu0 0.0
    %1263 = vmatpush.msra.mxu0 0.0
    %1264 = vmatpush.msra.mxu0 0.0
    %1265 = vmatpush.msra.mxu0 0.0
    %1266 = vmatpush.msra.mxu0 0.0
    %1267 = vmatpush.msra.mxu0 0.0
    %1268 = vmatpush.msra.mxu0 0.0
    %1269 = vmatpush.msra.mxu0 0.0
    %1270 = vmatpush.msra.mxu0 0.0
    %1271 = vmatpush.msra.mxu0 0.0
    %1272 = vmatpush.msra.mxu0 %v1257
    %1273 = vmatpush.msra.mxu0 %v1211
    %1274 = vmatpush.msra.mxu0 %v1210
    %1275 = vmatmul.f32.gmra.mxu0 %v1233
    %v1276 = vpop.f32.mrf.mxu0
    %v1277 = vadd.f32 0.0, %v1276
    %1278 = vmatmul.f32.gmra.mxu0 %v1236
    %v1279 = vpop.f32.mrf.mxu0
    %v1280 = vadd.f32 0.0, %v1279
    %1281 = vmatmul.f32.gmra.mxu0 %v1239
    %v1282 = vpop.f32.mrf.mxu0
    %v1283 = vadd.f32 0.0, %v1282
    %1284 = vmatmul.f32.gmra.mxu0 %v1242
    %v1285 = vpop.f32.mrf.mxu0
    %v1286 = vadd.f32 0.0, %v1285
    %1287 = vmatmul.f32.gmra.mxu0 %v1245
    %v1288 = vpop.f32.mrf.mxu0
    %v1289 = vadd.f32 0.0, %v1288
    %1290 = vmatmul.f32.gmra.mxu0 %v1248
    %v1291 = vpop.f32.mrf.mxu0
    %v1292 = vadd.f32 0.0, %v1291
    %1293 = vmatmul.f32.gmra.mxu0 %v1251
    %v1294 = vpop.f32.mrf.mxu0
    %v1295 = vadd.f32 0.0, %v1294
    %1296 = vmatmul.f32.gmra.mxu0 %v1254
    %v1297 = vpop.f32.mrf.mxu0
    %v1298 = vadd.f32 0.0, %v1297
    %1299 = vdwg.mxu0
    %1300 = vst.msk [vmem:[#allocation4] sm:$0xff] %vm167, %v1277
    %1301 = vst.msk [vmem:[#allocation4 + $0x8] sm:$0xff] %vm167, %v1280
    %1302 = vst.msk [vmem:[#allocation4 + $0x10] sm:$0xff] %vm167, %v1283
    %1303 = vst.msk [vmem:[#allocation4 + $0x18] sm:$0xff] %vm167, %v1286
    %1304 = vst.msk [vmem:[#allocation4 + $0x20] sm:$0xff] %vm167, %v1289
    %1305 = vst.msk [vmem:[#allocation4 + $0x28] sm:$0xff] %vm167, %v1292
    %1306 = vst.msk [vmem:[#allocation4 + $0x30] sm:$0xff] %vm167, %v1295
    %1307 = vst.msk [vmem:[#allocation4 + $0x38] sm:$0xff] %vm167, %v1298
    %v1309 = vsel %vm283, %v1216, 0
    %1311 = vmatpush.msra.mxu0 0.0
    %1312 = vmatpush.msra.mxu0 0.0
    %1313 = vmatpush.msra.mxu0 0.0
    %1314 = vmatpush.msra.mxu0 0.0
    %1315 = vmatpush.msra.mxu0 0.0
    %1316 = vmatpush.msra.mxu0 0.0
    %1317 = vmatpush.msra.mxu0 0.0
    %1318 = vmatpush.msra.mxu0 0.0
    %1319 = vmatpush.msra.mxu0 0.0
    %1320 = vmatpush.msra.mxu0 0.0
    %1321 = vmatpush.msra.mxu0 0.0
    %1322 = vmatpush.msra.mxu0 0.0
    %1323 = vmatpush.msra.mxu0 0.0
    %1324 = vmatpush.msra.mxu0 %v1309
    %1325 = vmatpush.msra.mxu0 %v1215
    %1326 = vmatpush.msra.mxu0 %v1214
    %1327 = vmatmul.f32.gmra.mxu0 %v1233
    %v1328 = vpop.f32.mrf.mxu0
    %v1329 = vadd.f32 0.0, %v1328
    %1330 = vmatmul.f32.gmra.mxu0 %v1236
    %v1331 = vpop.f32.mrf.mxu0
    %v1332 = vadd.f32 0.0, %v1331
    %1333 = vmatmul.f32.gmra.mxu0 %v1239
    %v1334 = vpop.f32.mrf.mxu0
    %v1335 = vadd.f32 0.0, %v1334
    %1336 = vmatmul.f32.gmra.mxu0 %v1242
    %v1337 = vpop.f32.mrf.mxu0
    %v1338 = vadd.f32 0.0, %v1337
    %1339 = vmatmul.f32.gmra.mxu0 %v1245
    %v1340 = vpop.f32.mrf.mxu0
    %v1341 = vadd.f32 0.0, %v1340
    %1342 = vmatmul.f32.gmra.mxu0 %v1248
    %v1343 = vpop.f32.mrf.mxu0
    %v1344 = vadd.f32 0.0, %v1343
    %1345 = vmatmul.f32.gmra.mxu0 %v1251
    %v1346 = vpop.f32.mrf.mxu0
    %v1347 = vadd.f32 0.0, %v1346
    %1348 = vmatmul.f32.gmra.mxu0 %v1254
    %v1349 = vpop.f32.mrf.mxu0
    %v1350 = vadd.f32 0.0, %v1349
    %1351 = vdwg.mxu0
    %1352 = vst.msk [vmem:[#allocation5] sm:$0xff] %vm167, %v1329
    %1353 = vst.msk [vmem:[#allocation5 + $0x8] sm:$0xff] %vm167, %v1332
    %1354 = vst.msk [vmem:[#allocation5 + $0x10] sm:$0xff] %vm167, %v1335
    %1355 = vst.msk [vmem:[#allocation5 + $0x18] sm:$0xff] %vm167, %v1338
    %1356 = vst.msk [vmem:[#allocation5 + $0x20] sm:$0xff] %vm167, %v1341
    %1357 = vst.msk [vmem:[#allocation5 + $0x28] sm:$0xff] %vm167, %v1344
    %1358 = vst.msk [vmem:[#allocation5 + $0x30] sm:$0xff] %vm167, %v1347
    %1359 = vst.msk [vmem:[#allocation5 + $0x38] sm:$0xff] %vm167, %v1350
    %v1361 = vsel %vm283, %v1220, 0
    %1363 = vmatpush.msra.mxu0 0.0
    %1364 = vmatpush.msra.mxu0 0.0
    %1365 = vmatpush.msra.mxu0 0.0
    %1366 = vmatpush.msra.mxu0 0.0
    %1367 = vmatpush.msra.mxu0 0.0
    %1368 = vmatpush.msra.mxu0 0.0
    %1369 = vmatpush.msra.mxu0 0.0
    %1370 = vmatpush.msra.mxu0 0.0
    %1371 = vmatpush.msra.mxu0 0.0
    %1372 = vmatpush.msra.mxu0 0.0
    %1373 = vmatpush.msra.mxu0 0.0
    %1374 = vmatpush.msra.mxu0 0.0
    %1375 = vmatpush.msra.mxu0 0.0
    %1376 = vmatpush.msra.mxu0 %v1361
    %1377 = vmatpush.msra.mxu0 %v1219
    %1378 = vmatpush.msra.mxu0 %v1218
    %1379 = vmatmul.f32.gmra.mxu0 %v1233
    %v1380 = vpop.f32.mrf.mxu0
    %v1381 = vadd.f32 0.0, %v1380
    %1382 = vmatmul.f32.gmra.mxu0 %v1236
    %v1383 = vpop.f32.mrf.mxu0
    %v1384 = vadd.f32 0.0, %v1383
    %1385 = vmatmul.f32.gmra.mxu0 %v1239
    %v1386 = vpop.f32.mrf.mxu0
    %v1387 = vadd.f32 0.0, %v1386
    %1388 = vmatmul.f32.gmra.mxu0 %v1242
    %v1389 = vpop.f32.mrf.mxu0
    %v1390 = vadd.f32 0.0, %v1389
    %1391 = vmatmul.f32.gmra.mxu0 %v1245
    %v1392 = vpop.f32.mrf.mxu0
    %v1393 = vadd.f32 0.0, %v1392
    %1394 = vmatmul.f32.gmra.mxu0 %v1248
    %v1395 = vpop.f32.mrf.mxu0
    %v1396 = vadd.f32 0.0, %v1395
    %1397 = vmatmul.f32.gmra.mxu0 %v1251
    %v1398 = vpop.f32.mrf.mxu0
    %v1399 = vadd.f32 0.0, %v1398
    %1400 = vmatmul.f32.gmra.mxu0 %v1254
    %v1401 = vpop.f32.mrf.mxu0
    %v1402 = vadd.f32 0.0, %v1401
    %1403 = vdwg.mxu0
    %1404 = vst.msk [vmem:[#allocation6] sm:$0xff] %vm167, %v1381
    %1405 = vst.msk [vmem:[#allocation6 + $0x8] sm:$0xff] %vm167, %v1384
    %1406 = vst.msk [vmem:[#allocation6 + $0x10] sm:$0xff] %vm167, %v1387
    %1407 = vst.msk [vmem:[#allocation6 + $0x18] sm:$0xff] %vm167, %v1390
    %1408 = vst.msk [vmem:[#allocation6 + $0x20] sm:$0xff] %vm167, %v1393
    %1409 = vst.msk [vmem:[#allocation6 + $0x28] sm:$0xff] %vm167, %v1396
    %1410 = vst.msk [vmem:[#allocation6 + $0x30] sm:$0xff] %vm167, %v1399
    %1411 = vst.msk [vmem:[#allocation6 + $0x38] sm:$0xff] %vm167, %v1402
    %v1413 = vsel %vm283, %v1223, 0
    %1415 = vmatpush.msra.mxu0 0.0
    %1416 = vmatpush.msra.mxu0 0.0
    %1417 = vmatpush.msra.mxu0 0.0
    %1418 = vmatpush.msra.mxu0 0.0
    %1419 = vmatpush.msra.mxu0 0.0
    %1420 = vmatpush.msra.mxu0 0.0
    %1421 = vmatpush.msra.mxu0 0.0
    %1422 = vmatpush.msra.mxu0 0.0
    %1423 = vmatpush.msra.mxu0 0.0
    %1424 = vmatpush.msra.mxu0 0.0
    %1425 = vmatpush.msra.mxu0 0.0
    %1426 = vmatpush.msra.mxu0 0.0
    %1427 = vmatpush.msra.mxu0 0.0
    %1428 = vmatpush.msra.mxu0 %v1413
    %1429 = vmatpush.msra.mxu0 %v1222
    %1430 = vmatpush.msra.mxu0 %v1221
    %1431 = vmatmul.f32.gmra.mxu0 %v281
    %v1432 = vpop.f32.mrf.mxu0
    %v1433 = vadd.f32 0.0, %v1432
    %1434 = vdwg.mxu0
    %v1436 = vsel %vm283, %v1227, 0
    %1438 = vmatpush.msra.mxu0 0.0
    %1439 = vmatpush.msra.mxu0 0.0
    %1440 = vmatpush.msra.mxu0 0.0
    %1441 = vmatpush.msra.mxu0 0.0
    %1442 = vmatpush.msra.mxu0 0.0
    %1443 = vmatpush.msra.mxu0 0.0
    %1444 = vmatpush.msra.mxu0 0.0
    %1445 = vmatpush.msra.mxu0 0.0
    %1446 = vmatpush.msra.mxu0 0.0
    %1447 = vmatpush.msra.mxu0 0.0
    %1448 = vmatpush.msra.mxu0 0.0
    %1449 = vmatpush.msra.mxu0 0.0
    %1450 = vmatpush.msra.mxu0 0.0
    %1451 = vmatpush.msra.mxu0 %v1436
    %1452 = vmatpush.msra.mxu0 %v1226
    %1453 = vmatpush.msra.mxu0 %v1225
    %1454 = vmatmul.f32.gmra.mxu0 %v281
    %v1455 = vpop.f32.mrf.mxu0
    %v1456 = vadd.f32 0.0, %v1455
    %1457 = vdwg.mxu0
    %v1459 = vsel %vm283, %v1231, 0
    %1461 = vmatpush.msra.mxu0 0.0
    %1462 = vmatpush.msra.mxu0 0.0
    %1463 = vmatpush.msra.mxu0 0.0
    %1464 = vmatpush.msra.mxu0 0.0
    %1465 = vmatpush.msra.mxu0 0.0
    %1466 = vmatpush.msra.mxu0 0.0
    %1467 = vmatpush.msra.mxu0 0.0
    %1468 = vmatpush.msra.mxu0 0.0
    %1469 = vmatpush.msra.mxu0 0.0
    %1470 = vmatpush.msra.mxu0 0.0
    %1471 = vmatpush.msra.mxu0 0.0
    %1472 = vmatpush.msra.mxu0 0.0
    %1473 = vmatpush.msra.mxu0 0.0
    %1474 = vmatpush.msra.mxu0 %v1459
    %1475 = vmatpush.msra.mxu0 %v1230
    %1476 = vmatpush.msra.mxu0 %v1229
    %1477 = vmatmul.f32.gmra.mxu0 %v281
    %v1478 = vpop.f32.mrf.mxu0
    %v1479 = vadd.f32 0.0, %v1478
    %1480 = vdwg.mxu0
    %v1481 = vld [vmem:[#allocation4] sm:$0xff]
    %v1482 = vadd.f32 %v1481, %v1433
    %v1483 = vxor.u32 %v1482, 2147483648
    %v1484 = vmul.f32 %v1483, 1.442695
    %v1485 = vpow.pop %v1484
    %v1486 = vadd.f32 %v1485, 1.0
    %v1487 = vrcp.pop %v1486
    %v1488 = vmul.f32 %v1486, %v1487
    %v1489 = vsub.f32 1.0, %v1488
    %v1490 = vmul.f32 %v1487, %v1489
    %v1491 = vadd.f32 %v1487, %v1490
    %vm1492 = vweird.f32 %v1486
    %vm1493 = vweird.f32 %v1487
    %vm1494 = vmor %vm1492, %vm1493
    %v1495 = vsel %vm1494, %v1487, %v1491
    %v1496 = vand.u32 2147483647, %v1486
    %vm1497 = vcmp.eq.f32.partialorder %v1496, 8.507059e+37
    %v1498 = vand.u32 %v1486, 2147483648
    %v1499 = vor.u32 1.1754944e-38, %v1498
    %v1500 = vsel %vm1497, %v1499, %v1495
    %v1501 = vmul.f32 1.0, %v1500
    %v1502 = vld [vmem:[#allocation5] sm:$0xff]
    %v1503 = vadd.f32 %v1502, %v1456
    %v1504 = vxor.u32 %v1503, 2147483648
    %v1505 = vmul.f32 %v1504, 1.442695
    %v1506 = vpow.pop %v1505
    %v1507 = vadd.f32 %v1506, 1.0
    %v1508 = vrcp.pop %v1507
    %v1509 = vmul.f32 %v1507, %v1508
    %v1510 = vsub.f32 1.0, %v1509
    %v1511 = vmul.f32 %v1508, %v1510
    %v1512 = vadd.f32 %v1508, %v1511
    %vm1513 = vweird.f32 %v1507
    %vm1514 = vweird.f32 %v1508
    %vm1515 = vmor %vm1513, %vm1514
    %v1516 = vsel %vm1515, %v1508, %v1512
    %v1517 = vand.u32 2147483647, %v1507
    %vm1518 = vcmp.eq.f32.partialorder %v1517, 8.507059e+37
    %v1519 = vand.u32 %v1507, 2147483648
    %v1520 = vor.u32 1.1754944e-38, %v1519
    %v1521 = vsel %vm1518, %v1520, %v1516
    %v1522 = vmul.f32 1.0, %v1521
    %v1523 = vld [vmem:[#allocation6] sm:$0xff]
    %v1524 = vmul.f32 %v1501, %v1479
    %v1525 = vadd.f32 %v1523, %v1524
    %v1526 = vtanh.pop %v1525
    %v1527 = vsub.f32 1.0, %v1522
    %v1528 = vmul.f32 %v1527, %v1526
    %v1529 = vmul.f32 %v1522, 0.0
    %v1530 = vadd.f32 %v1528, %v1529
    %1531 = vst.msk [vmem:[#allocation3] sm:$0xff] %vm167, %v1530
    %v1533 = vsel %vm167, %v1530, 0
    %1535 = vmatpush.msra.mxu0 0.0
    %1536 = vmatpush.msra.mxu0 0.0
    %1537 = vmatpush.msra.mxu0 0.0
    %1538 = vmatpush.msra.mxu0 0.0
    %1539 = vmatpush.msra.mxu0 0.0
    %1540 = vmatpush.msra.mxu0 0.0
    %1541 = vmatpush.msra.mxu0 0.0
    %1542 = vmatpush.msra.mxu0 0.0
    %1543 = vmatpush.msra.mxu0 0.0
    %1544 = vmatpush.msra.mxu0 0.0
    %1545 = vmatpush.msra.mxu0 0.0
    %1546 = vmatpush.msra.mxu0 0.0
    %1547 = vmatpush.msra.mxu0 0.0
    %1548 = vmatpush.msra.mxu0 %v1413
    %1549 = vmatpush.msra.mxu0 %v1222
    %1550 = vmatpush.msra.mxu0 %v1221
    %1551 = vmatmul.f32.gmra.mxu0 %v1533
    %v1552 = vpop.f32.mrf.mxu0
    %v1553 = vadd.f32 0.0, %v1552
    %1554 = vdwg.mxu0
    %1555 = vmatpush.msra.mxu0 0.0
    %1556 = vmatpush.msra.mxu0 0.0
    %1557 = vmatpush.msra.mxu0 0.0
    %1558 = vmatpush.msra.mxu0 0.0
    %1559 = vmatpush.msra.mxu0 0.0
    %1560 = vmatpush.msra.mxu0 0.0
    %1561 = vmatpush.msra.mxu0 0.0
    %1562 = vmatpush.msra.mxu0 0.0
    %1563 = vmatpush.msra.mxu0 0.0
    %1564 = vmatpush.msra.mxu0 0.0
    %1565 = vmatpush.msra.mxu0 0.0
    %1566 = vmatpush.msra.mxu0 0.0
    %1567 = vmatpush.msra.mxu0 0.0
    %1568 = vmatpush.msra.mxu0 %v1436
    %1569 = vmatpush.msra.mxu0 %v1226
    %1570 = vmatpush.msra.mxu0 %v1225
    %1571 = vmatmul.f32.gmra.mxu0 %v1533
    %v1572 = vpop.f32.mrf.mxu0
    %v1573 = vadd.f32 0.0, %v1572
    %1574 = vdwg.mxu0
    %1575 = vmatpush.msra.mxu0 0.0
    %1576 = vmatpush.msra.mxu0 0.0
    %1577 = vmatpush.msra.mxu0 0.0
    %1578 = vmatpush.msra.mxu0 0.0
    %1579 = vmatpush.msra.mxu0 0.0
    %1580 = vmatpush.msra.mxu0 0.0
    %1581 = vmatpush.msra.mxu0 0.0
    %1582 = vmatpush.msra.mxu0 0.0
    %1583 = vmatpush.msra.mxu0 0.0
    %1584 = vmatpush.msra.mxu0 0.0
    %1585 = vmatpush.msra.mxu0 0.0
    %1586 = vmatpush.msra.mxu0 0.0
    %1587 = vmatpush.msra.mxu0 0.0
    %1588 = vmatpush.msra.mxu0 %v1459
    %1589 = vmatpush.msra.mxu0 %v1230
    %1590 = vmatpush.msra.mxu0 %v1229
    %1591 = vmatmul.f32.gmra.mxu0 %v1533
    %v1592 = vpop.f32.mrf.mxu0
    %v1593 = vadd.f32 0.0, %v1592
    %1594 = vdwg.mxu0
    %v1595 = vld [vmem:[#allocation4 + $0x8] sm:$0xff]
    %v1596 = vadd.f32 %v1595, %v1553
    %v1597 = vxor.u32 %v1596, 2147483648
    %v1598 = vmul.f32 %v1597, 1.442695
    %v1599 = vpow.pop %v1598
    %v1600 = vadd.f32 %v1599, 1.0
    %v1601 = vrcp.pop %v1600
    %v1602 = vmul.f32 %v1600, %v1601
    %v1603 = vsub.f32 1.0, %v1602
    %v1604 = vmul.f32 %v1601, %v1603
    %v1605 = vadd.f32 %v1601, %v1604
    %vm1606 = vweird.f32 %v1600
    %vm1607 = vweird.f32 %v1601
    %vm1608 = vmor %vm1606, %vm1607
    %v1609 = vsel %vm1608, %v1601, %v1605
    %v1610 = vand.u32 2147483647, %v1600
    %vm1611 = vcmp.eq.f32.partialorder %v1610, 8.507059e+37
    %v1612 = vand.u32 %v1600, 2147483648
    %v1613 = vor.u32 1.1754944e-38, %v1612
    %v1614 = vsel %vm1611, %v1613, %v1609
    %v1615 = vmul.f32 1.0, %v1614
    %v1616 = vld [vmem:[#allocation5 + $0x8] sm:$0xff]
    %v1617 = vadd.f32 %v1616, %v1573
    %v1618 = vxor.u32 %v1617, 2147483648
    %v1619 = vmul.f32 %v1618, 1.442695
    %v1620 = vpow.pop %v1619
    %v1621 = vadd.f32 %v1620, 1.0
    %v1622 = vrcp.pop %v1621
    %v1623 = vmul.f32 %v1621, %v1622
    %v1624 = vsub.f32 1.0, %v1623
    %v1625 = vmul.f32 %v1622, %v1624
    %v1626 = vadd.f32 %v1622, %v1625
    %vm1627 = vweird.f32 %v1621
    %vm1628 = vweird.f32 %v1622
    %vm1629 = vmor %vm1627, %vm1628
    %v1630 = vsel %vm1629, %v1622, %v1626
    %v1631 = vand.u32 2147483647, %v1621
    %vm1632 = vcmp.eq.f32.partialorder %v1631, 8.507059e+37
    %v1633 = vand.u32 %v1621, 2147483648
    %v1634 = vor.u32 1.1754944e-38, %v1633
    %v1635 = vsel %vm1632, %v1634, %v1630
    %v1636 = vmul.f32 1.0, %v1635
    %v1637 = vld [vmem:[#allocation6 + $0x8] sm:$0xff]
    %v1638 = vmul.f32 %v1615, %v1593
    %v1639 = vadd.f32 %v1637, %v1638
    %v1640 = vtanh.pop %v1639
    %v1641 = vsub.f32 1.0, %v1636
    %v1642 = vmul.f32 %v1641, %v1640
    %v1643 = vmul.f32 %v1636, %v1530
    %v1644 = vadd.f32 %v1642, %v1643
    %1645 = vst.msk [vmem:[#allocation3 + $0x8] sm:$0xff] %vm167, %v1644
    %v1647 = vsel %vm167, %v1644, 0
    %1649 = vmatpush.msra.mxu0 0.0
    %1650 = vmatpush.msra.mxu0 0.0
    %1651 = vmatpush.msra.mxu0 0.0
    %1652 = vmatpush.msra.mxu0 0.0
    %1653 = vmatpush.msra.mxu0 0.0
    %1654 = vmatpush.msra.mxu0 0.0
    %1655 = vmatpush.msra.mxu0 0.0
    %1656 = vmatpush.msra.mxu0 0.0
    %1657 = vmatpush.msra.mxu0 0.0
    %1658 = vmatpush.msra.mxu0 0.0
    %1659 = vmatpush.msra.mxu0 0.0
    %1660 = vmatpush.msra.mxu0 0.0
    %1661 = vmatpush.msra.mxu0 0.0
    %1662 = vmatpush.msra.mxu0 %v1413
    %1663 = vmatpush.msra.mxu0 %v1222
    %1664 = vmatpush.msra.mxu0 %v1221
    %1665 = vmatmul.f32.gmra.mxu0 %v1647
    %v1666 = vpop.f32.mrf.mxu0
    %v1667 = vadd.f32 0.0, %v1666
    %1668 = vdwg.mxu0
    %1669 = vmatpush.msra.mxu0 0.0
    %1670 = vmatpush.msra.mxu0 0.0
    %1671 = vmatpush.msra.mxu0 0.0
    %1672 = vmatpush.msra.mxu0 0.0
    %1673 = vmatpush.msra.mxu0 0.0
    %1674 = vmatpush.msra.mxu0 0.0
    %1675 = vmatpush.msra.mxu0 0.0
    %1676 = vmatpush.msra.mxu0 0.0
    %1677 = vmatpush.msra.mxu0 0.0
    %1678 = vmatpush.msra.mxu0 0.0
    %1679 = vmatpush.msra.mxu0 0.0
    %1680 = vmatpush.msra.mxu0 0.0
    %1681 = vmatpush.msra.mxu0 0.0
    %1682 = vmatpush.msra.mxu0 %v1436
    %1683 = vmatpush.msra.mxu0 %v1226
    %1684 = vmatpush.msra.mxu0 %v1225
    %1685 = vmatmul.f32.gmra.mxu0 %v1647
    %v1686 = vpop.f32.mrf.mxu0
    %v1687 = vadd.f32 0.0, %v1686
    %1688 = vdwg.mxu0
    %1689 = vmatpush.msra.mxu0 0.0
    %1690 = vmatpush.msra.mxu0 0.0
    %1691 = vmatpush.msra.mxu0 0.0
    %1692 = vmatpush.msra.mxu0 0.0
    %1693 = vmatpush.msra.mxu0 0.0
    %1694 = vmatpush.msra.mxu0 0.0
    %1695 = vmatpush.msra.mxu0 0.0
    %1696 = vmatpush.msra.mxu0 0.0
    %1697 = vmatpush.msra.mxu0 0.0
    %1698 = vmatpush.msra.mxu0 0.0
    %1699 = vmatpush.msra.mxu0 0.0
    %1700 = vmatpush.msra.mxu0 0.0
    %1701 = vmatpush.msra.mxu0 0.0
    %1702 = vmatpush.msra.mxu0 %v1459
    %1703 = vmatpush.msra.mxu0 %v1230
    %1704 = vmatpush.msra.mxu0 %v1229
    %1705 = vmatmul.f32.gmra.mxu0 %v1647
    %v1706 = vpop.f32.mrf.mxu0
    %v1707 = vadd.f32 0.0, %v1706
    %1708 = vdwg.mxu0
    %v1709 = vld [vmem:[#allocation4 + $0x10] sm:$0xff]
    %v1710 = vadd.f32 %v1709, %v1667
    %v1711 = vxor.u32 %v1710, 2147483648
    %v1712 = vmul.f32 %v1711, 1.442695
    %v1713 = vpow.pop %v1712
    %v1714 = vadd.f32 %v1713, 1.0
    %v1715 = vrcp.pop %v1714
    %v1716 = vmul.f32 %v1714, %v1715
    %v1717 = vsub.f32 1.0, %v1716
    %v1718 = vmul.f32 %v1715, %v1717
    %v1719 = vadd.f32 %v1715, %v1718
    %vm1720 = vweird.f32 %v1714
    %vm1721 = vweird.f32 %v1715
    %vm1722 = vmor %vm1720, %vm1721
    %v1723 = vsel %vm1722, %v1715, %v1719
    %v1724 = vand.u32 2147483647, %v1714
    %vm1725 = vcmp.eq.f32.partialorder %v1724, 8.507059e+37
    %v1726 = vand.u32 %v1714, 2147483648
    %v1727 = vor.u32 1.1754944e-38, %v1726
    %v1728 = vsel %vm1725, %v1727, %v1723
    %v1729 = vmul.f32 1.0, %v1728
    %v1730 = vld [vmem:[#allocation5 + $0x10] sm:$0xff]
    %v1731 = vadd.f32 %v1730, %v1687
    %v1732 = vxor.u32 %v1731, 2147483648
    %v1733 = vmul.f32 %v1732, 1.442695
    %v1734 = vpow.pop %v1733
    %v1735 = vadd.f32 %v1734, 1.0
    %v1736 = vrcp.pop %v1735
    %v1737 = vmul.f32 %v1735, %v1736
    %v1738 = vsub.f32 1.0, %v1737
    %v1739 = vmul.f32 %v1736, %v1738
    %v1740 = vadd.f32 %v1736, %v1739
    %vm1741 = vweird.f32 %v1735
    %vm1742 = vweird.f32 %v1736
    %vm1743 = vmor %vm1741, %vm1742
    %v1744 = vsel %vm1743, %v1736, %v1740
    %v1745 = vand.u32 2147483647, %v1735
    %vm1746 = vcmp.eq.f32.partialorder %v1745, 8.507059e+37
    %v1747 = vand.u32 %v1735, 2147483648
    %v1748 = vor.u32 1.1754944e-38, %v1747
    %v1749 = vsel %vm1746, %v1748, %v1744
    %v1750 = vmul.f32 1.0, %v1749
    %v1751 = vld [vmem:[#allocation6 + $0x10] sm:$0xff]
    %v1752 = vmul.f32 %v1729, %v1707
    %v1753 = vadd.f32 %v1751, %v1752
    %v1754 = vtanh.pop %v1753
    %v1755 = vsub.f32 1.0, %v1750
    %v1756 = vmul.f32 %v1755, %v1754
    %v1757 = vmul.f32 %v1750, %v1644
    %v1758 = vadd.f32 %v1756, %v1757
    %1759 = vst.msk [vmem:[#allocation3 + $0x10] sm:$0xff] %vm167, %v1758
    %v1761 = vsel %vm167, %v1758, 0
    %1763 = vmatpush.msra.mxu0 0.0
    %1764 = vmatpush.msra.mxu0 0.0
    %1765 = vmatpush.msra.mxu0 0.0
    %1766 = vmatpush.msra.mxu0 0.0
    %1767 = vmatpush.msra.mxu0 0.0
    %1768 = vmatpush.msra.mxu0 0.0
    %1769 = vmatpush.msra.mxu0 0.0
    %1770 = vmatpush.msra.mxu0 0.0
    %1771 = vmatpush.msra.mxu0 0.0
    %1772 = vmatpush.msra.mxu0 0.0
    %1773 = vmatpush.msra.mxu0 0.0
    %1774 = vmatpush.msra.mxu0 0.0
    %1775 = vmatpush.msra.mxu0 0.0
    %1776 = vmatpush.msra.mxu0 %v1413
    %1777 = vmatpush.msra.mxu0 %v1222
    %1778 = vmatpush.msra.mxu0 %v1221
    %1779 = vmatmul.f32.gmra.mxu0 %v1761
    %v1780 = vpop.f32.mrf.mxu0
    %v1781 = vadd.f32 0.0, %v1780
    %1782 = vdwg.mxu0
    %1783 = vmatpush.msra.mxu0 0.0
    %1784 = vmatpush.msra.mxu0 0.0
    %1785 = vmatpush.msra.mxu0 0.0
    %1786 = vmatpush.msra.mxu0 0.0
    %1787 = vmatpush.msra.mxu0 0.0
    %1788 = vmatpush.msra.mxu0 0.0
    %1789 = vmatpush.msra.mxu0 0.0
    %1790 = vmatpush.msra.mxu0 0.0
    %1791 = vmatpush.msra.mxu0 0.0
    %1792 = vmatpush.msra.mxu0 0.0
    %1793 = vmatpush.msra.mxu0 0.0
    %1794 = vmatpush.msra.mxu0 0.0
    %1795 = vmatpush.msra.mxu0 0.0
    %1796 = vmatpush.msra.mxu0 %v1436
    %1797 = vmatpush.msra.mxu0 %v1226
    %1798 = vmatpush.msra.mxu0 %v1225
    %1799 = vmatmul.f32.gmra.mxu0 %v1761
    %v1800 = vpop.f32.mrf.mxu0
    %v1801 = vadd.f32 0.0, %v1800
    %1802 = vdwg.mxu0
    %1803 = vmatpush.msra.mxu0 0.0
    %1804 = vmatpush.msra.mxu0 0.0
    %1805 = vmatpush.msra.mxu0 0.0
    %1806 = vmatpush.msra.mxu0 0.0
    %1807 = vmatpush.msra.mxu0 0.0
    %1808 = vmatpush.msra.mxu0 0.0
    %1809 = vmatpush.msra.mxu0 0.0
    %1810 = vmatpush.msra.mxu0 0.0
    %1811 = vmatpush.msra.mxu0 0.0
    %1812 = vmatpush.msra.mxu0 0.0
    %1813 = vmatpush.msra.mxu0 0.0
    %1814 = vmatpush.msra.mxu0 0.0
    %1815 = vmatpush.msra.mxu0 0.0
    %1816 = vmatpush.msra.mxu0 %v1459
    %1817 = vmatpush.msra.mxu0 %v1230
    %1818 = vmatpush.msra.mxu0 %v1229
    %1819 = vmatmul.f32.gmra.mxu0 %v1761
    %v1820 = vpop.f32.mrf.mxu0
    %v1821 = vadd.f32 0.0, %v1820
    %1822 = vdwg.mxu0
    %v1823 = vld [vmem:[#allocation4 + $0x18] sm:$0xff]
    %v1824 = vadd.f32 %v1823, %v1781
    %v1825 = vxor.u32 %v1824, 2147483648
    %v1826 = vmul.f32 %v1825, 1.442695
    %v1827 = vpow.pop %v1826
    %v1828 = vadd.f32 %v1827, 1.0
    %v1829 = vrcp.pop %v1828
    %v1830 = vmul.f32 %v1828, %v1829
    %v1831 = vsub.f32 1.0, %v1830
    %v1832 = vmul.f32 %v1829, %v1831
    %v1833 = vadd.f32 %v1829, %v1832
    %vm1834 = vweird.f32 %v1828
    %vm1835 = vweird.f32 %v1829
    %vm1836 = vmor %vm1834, %vm1835
    %v1837 = vsel %vm1836, %v1829, %v1833
    %v1838 = vand.u32 2147483647, %v1828
    %vm1839 = vcmp.eq.f32.partialorder %v1838, 8.507059e+37
    %v1840 = vand.u32 %v1828, 2147483648
    %v1841 = vor.u32 1.1754944e-38, %v1840
    %v1842 = vsel %vm1839, %v1841, %v1837
    %v1843 = vmul.f32 1.0, %v1842
    %v1844 = vld [vmem:[#allocation5 + $0x18] sm:$0xff]
    %v1845 = vadd.f32 %v1844, %v1801
    %v1846 = vxor.u32 %v1845, 2147483648
    %v1847 = vmul.f32 %v1846, 1.442695
    %v1848 = vpow.pop %v1847
    %v1849 = vadd.f32 %v1848, 1.0
    %v1850 = vrcp.pop %v1849
    %v1851 = vmul.f32 %v1849, %v1850
    %v1852 = vsub.f32 1.0, %v1851
    %v1853 = vmul.f32 %v1850, %v1852
    %v1854 = vadd.f32 %v1850, %v1853
    %vm1855 = vweird.f32 %v1849
    %vm1856 = vweird.f32 %v1850
    %vm1857 = vmor %vm1855, %vm1856
    %v1858 = vsel %vm1857, %v1850, %v1854
    %v1859 = vand.u32 2147483647, %v1849
    %vm1860 = vcmp.eq.f32.partialorder %v1859, 8.507059e+37
    %v1861 = vand.u32 %v1849, 2147483648
    %v1862 = vor.u32 1.1754944e-38, %v1861
    %v1863 = vsel %vm1860, %v1862, %v1858
    %v1864 = vmul.f32 1.0, %v1863
    %v1865 = vld [vmem:[#allocation6 + $0x18] sm:$0xff]
    %v1866 = vmul.f32 %v1843, %v1821
    %v1867 = vadd.f32 %v1865, %v1866
    %v1868 = vtanh.pop %v1867
    %v1869 = vsub.f32 1.0, %v1864
    %v1870 = vmul.f32 %v1869, %v1868
    %v1871 = vmul.f32 %v1864, %v1758
    %v1872 = vadd.f32 %v1870, %v1871
    %1873 = vst.msk [vmem:[#allocation3 + $0x18] sm:$0xff] %vm167, %v1872
    %v1875 = vsel %vm167, %v1872, 0
    %1877 = vmatpush.msra.mxu0 0.0
    %1878 = vmatpush.msra.mxu0 0.0
    %1879 = vmatpush.msra.mxu0 0.0
    %1880 = vmatpush.msra.mxu0 0.0
    %1881 = vmatpush.msra.mxu0 0.0
    %1882 = vmatpush.msra.mxu0 0.0
    %1883 = vmatpush.msra.mxu0 0.0
    %1884 = vmatpush.msra.mxu0 0.0
    %1885 = vmatpush.msra.mxu0 0.0
    %1886 = vmatpush.msra.mxu0 0.0
    %1887 = vmatpush.msra.mxu0 0.0
    %1888 = vmatpush.msra.mxu0 0.0
    %1889 = vmatpush.msra.mxu0 0.0
    %1890 = vmatpush.msra.mxu0 %v1413
    %1891 = vmatpush.msra.mxu0 %v1222
    %1892 = vmatpush.msra.mxu0 %v1221
    %1893 = vmatmul.f32.gmra.mxu0 %v1875
    %v1894 = vpop.f32.mrf.mxu0
    %v1895 = vadd.f32 0.0, %v1894
    %1896 = vdwg.mxu0
    %1897 = vmatpush.msra.mxu0 0.0
    %1898 = vmatpush.msra.mxu0 0.0
    %1899 = vmatpush.msra.mxu0 0.0
    %1900 = vmatpush.msra.mxu0 0.0
    %1901 = vmatpush.msra.mxu0 0.0
    %1902 = vmatpush.msra.mxu0 0.0
    %1903 = vmatpush.msra.mxu0 0.0
    %1904 = vmatpush.msra.mxu0 0.0
    %1905 = vmatpush.msra.mxu0 0.0
    %1906 = vmatpush.msra.mxu0 0.0
    %1907 = vmatpush.msra.mxu0 0.0
    %1908 = vmatpush.msra.mxu0 0.0
    %1909 = vmatpush.msra.mxu0 0.0
    %1910 = vmatpush.msra.mxu0 %v1436
    %1911 = vmatpush.msra.mxu0 %v1226
    %1912 = vmatpush.msra.mxu0 %v1225
    %1913 = vmatmul.f32.gmra.mxu0 %v1875
    %v1914 = vpop.f32.mrf.mxu0
    %v1915 = vadd.f32 0.0, %v1914
    %1916 = vdwg.mxu0
    %1917 = vmatpush.msra.mxu0 0.0
    %1918 = vmatpush.msra.mxu0 0.0
    %1919 = vmatpush.msra.mxu0 0.0
    %1920 = vmatpush.msra.mxu0 0.0
    %1921 = vmatpush.msra.mxu0 0.0
    %1922 = vmatpush.msra.mxu0 0.0
    %1923 = vmatpush.msra.mxu0 0.0
    %1924 = vmatpush.msra.mxu0 0.0
    %1925 = vmatpush.msra.mxu0 0.0
    %1926 = vmatpush.msra.mxu0 0.0
    %1927 = vmatpush.msra.mxu0 0.0
    %1928 = vmatpush.msra.mxu0 0.0
    %1929 = vmatpush.msra.mxu0 0.0
    %1930 = vmatpush.msra.mxu0 %v1459
    %1931 = vmatpush.msra.mxu0 %v1230
    %1932 = vmatpush.msra.mxu0 %v1229
    %1933 = vmatmul.f32.gmra.mxu0 %v1875
    %v1934 = vpop.f32.mrf.mxu0
    %v1935 = vadd.f32 0.0, %v1934
    %1936 = vdwg.mxu0
    %v1937 = vld [vmem:[#allocation4 + $0x20] sm:$0xff]
    %v1938 = vadd.f32 %v1937, %v1895
    %v1939 = vxor.u32 %v1938, 2147483648
    %v1940 = vmul.f32 %v1939, 1.442695
    %v1941 = vpow.pop %v1940
    %v1942 = vadd.f32 %v1941, 1.0
    %v1943 = vrcp.pop %v1942
    %v1944 = vmul.f32 %v1942, %v1943
    %v1945 = vsub.f32 1.0, %v1944
    %v1946 = vmul.f32 %v1943, %v1945
    %v1947 = vadd.f32 %v1943, %v1946
    %vm1948 = vweird.f32 %v1942
    %vm1949 = vweird.f32 %v1943
    %vm1950 = vmor %vm1948, %vm1949
    %v1951 = vsel %vm1950, %v1943, %v1947
    %v1952 = vand.u32 2147483647, %v1942
    %vm1953 = vcmp.eq.f32.partialorder %v1952, 8.507059e+37
    %v1954 = vand.u32 %v1942, 2147483648
    %v1955 = vor.u32 1.1754944e-38, %v1954
    %v1956 = vsel %vm1953, %v1955, %v1951
    %v1957 = vmul.f32 1.0, %v1956
    %v1958 = vld [vmem:[#allocation5 + $0x20] sm:$0xff]
    %v1959 = vadd.f32 %v1958, %v1915
    %v1960 = vxor.u32 %v1959, 2147483648
    %v1961 = vmul.f32 %v1960, 1.442695
    %v1962 = vpow.pop %v1961
    %v1963 = vadd.f32 %v1962, 1.0
    %v1964 = vrcp.pop %v1963
    %v1965 = vmul.f32 %v1963, %v1964
    %v1966 = vsub.f32 1.0, %v1965
    %v1967 = vmul.f32 %v1964, %v1966
    %v1968 = vadd.f32 %v1964, %v1967
    %vm1969 = vweird.f32 %v1963
    %vm1970 = vweird.f32 %v1964
    %vm1971 = vmor %vm1969, %vm1970
    %v1972 = vsel %vm1971, %v1964, %v1968
    %v1973 = vand.u32 2147483647, %v1963
    %vm1974 = vcmp.eq.f32.partialorder %v1973, 8.507059e+37
    %v1975 = vand.u32 %v1963, 2147483648
    %v1976 = vor.u32 1.1754944e-38, %v1975
    %v1977 = vsel %vm1974, %v1976, %v1972
    %v1978 = vmul.f32 1.0, %v1977
    %v1979 = vld [vmem:[#allocation6 + $0x20] sm:$0xff]
    %v1980 = vmul.f32 %v1957, %v1935
    %v1981 = vadd.f32 %v1979, %v1980
    %v1982 = vtanh.pop %v1981
    %v1983 = vsub.f32 1.0, %v1978
    %v1984 = vmul.f32 %v1983, %v1982
    %v1985 = vmul.f32 %v1978, %v1872
    %v1986 = vadd.f32 %v1984, %v1985
    %1987 = vst.msk [vmem:[#allocation3 + $0x20] sm:$0xff] %vm167, %v1986
    %v1989 = vsel %vm167, %v1986, 0
    %1991 = vmatpush.msra.mxu0 0.0
    %1992 = vmatpush.msra.mxu0 0.0
    %1993 = vmatpush.msra.mxu0 0.0
    %1994 = vmatpush.msra.mxu0 0.0
    %1995 = vmatpush.msra.mxu0 0.0
    %1996 = vmatpush.msra.mxu0 0.0
    %1997 = vmatpush.msra.mxu0 0.0
    %1998 = vmatpush.msra.mxu0 0.0
    %1999 = vmatpush.msra.mxu0 0.0
    %2000 = vmatpush.msra.mxu0 0.0
    %2001 = vmatpush.msra.mxu0 0.0
    %2002 = vmatpush.msra.mxu0 0.0
    %2003 = vmatpush.msra.mxu0 0.0
    %2004 = vmatpush.msra.mxu0 %v1413
    %2005 = vmatpush.msra.mxu0 %v1222
    %2006 = vmatpush.msra.mxu0 %v1221
    %2007 = vmatmul.f32.gmra.mxu0 %v1989
    %v2008 = vpop.f32.mrf.mxu0
    %v2009 = vadd.f32 0.0, %v2008
    %2010 = vdwg.mxu0
    %2011 = vmatpush.msra.mxu0 0.0
    %2012 = vmatpush.msra.mxu0 0.0
    %2013 = vmatpush.msra.mxu0 0.0
    %2014 = vmatpush.msra.mxu0 0.0
    %2015 = vmatpush.msra.mxu0 0.0
    %2016 = vmatpush.msra.mxu0 0.0
    %2017 = vmatpush.msra.mxu0 0.0
    %2018 = vmatpush.msra.mxu0 0.0
    %2019 = vmatpush.msra.mxu0 0.0
    %2020 = vmatpush.msra.mxu0 0.0
    %2021 = vmatpush.msra.mxu0 0.0
    %2022 = vmatpush.msra.mxu0 0.0
    %2023 = vmatpush.msra.mxu0 0.0
    %2024 = vmatpush.msra.mxu0 %v1436
    %2025 = vmatpush.msra.mxu0 %v1226
    %2026 = vmatpush.msra.mxu0 %v1225
    %2027 = vmatmul.f32.gmra.mxu0 %v1989
    %v2028 = vpop.f32.mrf.mxu0
    %v2029 = vadd.f32 0.0, %v2028
    %2030 = vdwg.mxu0
    %2031 = vmatpush.msra.mxu0 0.0
    %2032 = vmatpush.msra.mxu0 0.0
    %2033 = vmatpush.msra.mxu0 0.0
    %2034 = vmatpush.msra.mxu0 0.0
    %2035 = vmatpush.msra.mxu0 0.0
    %2036 = vmatpush.msra.mxu0 0.0
    %2037 = vmatpush.msra.mxu0 0.0
    %2038 = vmatpush.msra.mxu0 0.0
    %2039 = vmatpush.msra.mxu0 0.0
    %2040 = vmatpush.msra.mxu0 0.0
    %2041 = vmatpush.msra.mxu0 0.0
    %2042 = vmatpush.msra.mxu0 0.0
    %2043 = vmatpush.msra.mxu0 0.0
    %2044 = vmatpush.msra.mxu0 %v1459
    %2045 = vmatpush.msra.mxu0 %v1230
    %2046 = vmatpush.msra.mxu0 %v1229
    %2047 = vmatmul.f32.gmra.mxu0 %v1989
    %v2048 = vpop.f32.mrf.mxu0
    %v2049 = vadd.f32 0.0, %v2048
    %2050 = vdwg.mxu0
    %v2051 = vld [vmem:[#allocation4 + $0x28] sm:$0xff]
    %v2052 = vadd.f32 %v2051, %v2009
    %v2053 = vxor.u32 %v2052, 2147483648
    %v2054 = vmul.f32 %v2053, 1.442695
    %v2055 = vpow.pop %v2054
    %v2056 = vadd.f32 %v2055, 1.0
    %v2057 = vrcp.pop %v2056
    %v2058 = vmul.f32 %v2056, %v2057
    %v2059 = vsub.f32 1.0, %v2058
    %v2060 = vmul.f32 %v2057, %v2059
    %v2061 = vadd.f32 %v2057, %v2060
    %vm2062 = vweird.f32 %v2056
    %vm2063 = vweird.f32 %v2057
    %vm2064 = vmor %vm2062, %vm2063
    %v2065 = vsel %vm2064, %v2057, %v2061
    %v2066 = vand.u32 2147483647, %v2056
    %vm2067 = vcmp.eq.f32.partialorder %v2066, 8.507059e+37
    %v2068 = vand.u32 %v2056, 2147483648
    %v2069 = vor.u32 1.1754944e-38, %v2068
    %v2070 = vsel %vm2067, %v2069, %v2065
    %v2071 = vmul.f32 1.0, %v2070
    %v2072 = vld [vmem:[#allocation5 + $0x28] sm:$0xff]
    %v2073 = vadd.f32 %v2072, %v2029
    %v2074 = vxor.u32 %v2073, 2147483648
    %v2075 = vmul.f32 %v2074, 1.442695
    %v2076 = vpow.pop %v2075
    %v2077 = vadd.f32 %v2076, 1.0
    %v2078 = vrcp.pop %v2077
    %v2079 = vmul.f32 %v2077, %v2078
    %v2080 = vsub.f32 1.0, %v2079
    %v2081 = vmul.f32 %v2078, %v2080
    %v2082 = vadd.f32 %v2078, %v2081
    %vm2083 = vweird.f32 %v2077
    %vm2084 = vweird.f32 %v2078
    %vm2085 = vmor %vm2083, %vm2084
    %v2086 = vsel %vm2085, %v2078, %v2082
    %v2087 = vand.u32 2147483647, %v2077
    %vm2088 = vcmp.eq.f32.partialorder %v2087, 8.507059e+37
    %v2089 = vand.u32 %v2077, 2147483648
    %v2090 = vor.u32 1.1754944e-38, %v2089
    %v2091 = vsel %vm2088, %v2090, %v2086
    %v2092 = vmul.f32 1.0, %v2091
    %v2093 = vld [vmem:[#allocation6 + $0x28] sm:$0xff]
    %v2094 = vmul.f32 %v2071, %v2049
    %v2095 = vadd.f32 %v2093, %v2094
    %v2096 = vtanh.pop %v2095
    %v2097 = vsub.f32 1.0, %v2092
    %v2098 = vmul.f32 %v2097, %v2096
    %v2099 = vmul.f32 %v2092, %v1986
    %v2100 = vadd.f32 %v2098, %v2099
    %2101 = vst.msk [vmem:[#allocation3 + $0x28] sm:$0xff] %vm167, %v2100
    %v2103 = vsel %vm167, %v2100, 0
    %2105 = vmatpush.msra.mxu0 0.0
    %2106 = vmatpush.msra.mxu0 0.0
    %2107 = vmatpush.msra.mxu0 0.0
    %2108 = vmatpush.msra.mxu0 0.0
    %2109 = vmatpush.msra.mxu0 0.0
    %2110 = vmatpush.msra.mxu0 0.0
    %2111 = vmatpush.msra.mxu0 0.0
    %2112 = vmatpush.msra.mxu0 0.0
    %2113 = vmatpush.msra.mxu0 0.0
    %2114 = vmatpush.msra.mxu0 0.0
    %2115 = vmatpush.msra.mxu0 0.0
    %2116 = vmatpush.msra.mxu0 0.0
    %2117 = vmatpush.msra.mxu0 0.0
    %2118 = vmatpush.msra.mxu0 %v1413
    %2119 = vmatpush.msra.mxu0 %v1222
    %2120 = vmatpush.msra.mxu0 %v1221
    %2121 = vmatmul.f32.gmra.mxu0 %v2103
    %v2122 = vpop.f32.mrf.mxu0
    %v2123 = vadd.f32 0.0, %v2122
    %2124 = vdwg.mxu0
    %2125 = vmatpush.msra.mxu0 0.0
    %2126 = vmatpush.msra.mxu0 0.0
    %2127 = vmatpush.msra.mxu0 0.0
    %2128 = vmatpush.msra.mxu0 0.0
    %2129 = vmatpush.msra.mxu0 0.0
    %2130 = vmatpush.msra.mxu0 0.0
    %2131 = vmatpush.msra.mxu0 0.0
    %2132 = vmatpush.msra.mxu0 0.0
    %2133 = vmatpush.msra.mxu0 0.0
    %2134 = vmatpush.msra.mxu0 0.0
    %2135 = vmatpush.msra.mxu0 0.0
    %2136 = vmatpush.msra.mxu0 0.0
    %2137 = vmatpush.msra.mxu0 0.0
    %2138 = vmatpush.msra.mxu0 %v1436
    %2139 = vmatpush.msra.mxu0 %v1226
    %2140 = vmatpush.msra.mxu0 %v1225
    %2141 = vmatmul.f32.gmra.mxu0 %v2103
    %v2142 = vpop.f32.mrf.mxu0
    %v2143 = vadd.f32 0.0, %v2142
    %2144 = vdwg.mxu0
    %2145 = vmatpush.msra.mxu0 0.0
    %2146 = vmatpush.msra.mxu0 0.0
    %2147 = vmatpush.msra.mxu0 0.0
    %2148 = vmatpush.msra.mxu0 0.0
    %2149 = vmatpush.msra.mxu0 0.0
    %2150 = vmatpush.msra.mxu0 0.0
    %2151 = vmatpush.msra.mxu0 0.0
    %2152 = vmatpush.msra.mxu0 0.0
    %2153 = vmatpush.msra.mxu0 0.0
    %2154 = vmatpush.msra.mxu0 0.0
    %2155 = vmatpush.msra.mxu0 0.0
    %2156 = vmatpush.msra.mxu0 0.0
    %2157 = vmatpush.msra.mxu0 0.0
    %2158 = vmatpush.msra.mxu0 %v1459
    %2159 = vmatpush.msra.mxu0 %v1230
    %2160 = vmatpush.msra.mxu0 %v1229
    %2161 = vmatmul.f32.gmra.mxu0 %v2103
    %v2162 = vpop.f32.mrf.mxu0
    %v2163 = vadd.f32 0.0, %v2162
    %2164 = vdwg.mxu0
    %v2165 = vld [vmem:[#allocation4 + $0x30] sm:$0xff]
    %v2166 = vadd.f32 %v2165, %v2123
    %v2167 = vxor.u32 %v2166, 2147483648
    %v2168 = vmul.f32 %v2167, 1.442695
    %v2169 = vpow.pop %v2168
    %v2170 = vadd.f32 %v2169, 1.0
    %v2171 = vrcp.pop %v2170
    %v2172 = vmul.f32 %v2170, %v2171
    %v2173 = vsub.f32 1.0, %v2172
    %v2174 = vmul.f32 %v2171, %v2173
    %v2175 = vadd.f32 %v2171, %v2174
    %vm2176 = vweird.f32 %v2170
    %vm2177 = vweird.f32 %v2171
    %vm2178 = vmor %vm2176, %vm2177
    %v2179 = vsel %vm2178, %v2171, %v2175
    %v2180 = vand.u32 2147483647, %v2170
    %vm2181 = vcmp.eq.f32.partialorder %v2180, 8.507059e+37
    %v2182 = vand.u32 %v2170, 2147483648
    %v2183 = vor.u32 1.1754944e-38, %v2182
    %v2184 = vsel %vm2181, %v2183, %v2179
    %v2185 = vmul.f32 1.0, %v2184
    %v2186 = vld [vmem:[#allocation5 + $0x30] sm:$0xff]
    %v2187 = vadd.f32 %v2186, %v2143
    %v2188 = vxor.u32 %v2187, 2147483648
    %v2189 = vmul.f32 %v2188, 1.442695
    %v2190 = vpow.pop %v2189
    %v2191 = vadd.f32 %v2190, 1.0
    %v2192 = vrcp.pop %v2191
    %v2193 = vmul.f32 %v2191, %v2192
    %v2194 = vsub.f32 1.0, %v2193
    %v2195 = vmul.f32 %v2192, %v2194
    %v2196 = vadd.f32 %v2192, %v2195
    %vm2197 = vweird.f32 %v2191
    %vm2198 = vweird.f32 %v2192
    %vm2199 = vmor %vm2197, %vm2198
    %v2200 = vsel %vm2199, %v2192, %v2196
    %v2201 = vand.u32 2147483647, %v2191
    %vm2202 = vcmp.eq.f32.partialorder %v2201, 8.507059e+37
    %v2203 = vand.u32 %v2191, 2147483648
    %v2204 = vor.u32 1.1754944e-38, %v2203
    %v2205 = vsel %vm2202, %v2204, %v2200
    %v2206 = vmul.f32 1.0, %v2205
    %v2207 = vld [vmem:[#allocation6 + $0x30] sm:$0xff]
    %v2208 = vmul.f32 %v2185, %v2163
    %v2209 = vadd.f32 %v2207, %v2208
    %v2210 = vtanh.pop %v2209
    %v2211 = vsub.f32 1.0, %v2206
    %v2212 = vmul.f32 %v2211, %v2210
    %v2213 = vmul.f32 %v2206, %v2100
    %v2214 = vadd.f32 %v2212, %v2213
    %2215 = vst.msk [vmem:[#allocation3 + $0x30] sm:$0xff] %vm167, %v2214
    %v2217 = vsel %vm167, %v2214, 0
    %2219 = vmatpush.msra.mxu0 0.0
    %2220 = vmatpush.msra.mxu0 0.0
    %2221 = vmatpush.msra.mxu0 0.0
    %2222 = vmatpush.msra.mxu0 0.0
    %2223 = vmatpush.msra.mxu0 0.0
    %2224 = vmatpush.msra.mxu0 0.0
    %2225 = vmatpush.msra.mxu0 0.0
    %2226 = vmatpush.msra.mxu0 0.0
    %2227 = vmatpush.msra.mxu0 0.0
    %2228 = vmatpush.msra.mxu0 0.0
    %2229 = vmatpush.msra.mxu0 0.0
    %2230 = vmatpush.msra.mxu0 0.0
    %2231 = vmatpush.msra.mxu0 0.0
    %2232 = vmatpush.msra.mxu0 %v1413
    %2233 = vmatpush.msra.mxu0 %v1222
    %2234 = vmatpush.msra.mxu0 %v1221
    %2235 = vmatmul.f32.gmra.mxu0 %v2217
    %v2236 = vpop.f32.mrf.mxu0
    %v2237 = vadd.f32 0.0, %v2236
    %2238 = vdwg.mxu0
    %2239 = vmatpush.msra.mxu0 0.0
    %2240 = vmatpush.msra.mxu0 0.0
    %2241 = vmatpush.msra.mxu0 0.0
    %2242 = vmatpush.msra.mxu0 0.0
    %2243 = vmatpush.msra.mxu0 0.0
    %2244 = vmatpush.msra.mxu0 0.0
    %2245 = vmatpush.msra.mxu0 0.0
    %2246 = vmatpush.msra.mxu0 0.0
    %2247 = vmatpush.msra.mxu0 0.0
    %2248 = vmatpush.msra.mxu0 0.0
    %2249 = vmatpush.msra.mxu0 0.0
    %2250 = vmatpush.msra.mxu0 0.0
    %2251 = vmatpush.msra.mxu0 0.0
    %2252 = vmatpush.msra.mxu0 %v1436
    %2253 = vmatpush.msra.mxu0 %v1226
    %2254 = vmatpush.msra.mxu0 %v1225
    %2255 = vmatmul.f32.gmra.mxu0 %v2217
    %v2256 = vpop.f32.mrf.mxu0
    %v2257 = vadd.f32 0.0, %v2256
    %2258 = vdwg.mxu0
    %2259 = vmatpush.msra.mxu0 0.0
    %2260 = vmatpush.msra.mxu0 0.0
    %2261 = vmatpush.msra.mxu0 0.0
    %2262 = vmatpush.msra.mxu0 0.0
    %2263 = vmatpush.msra.mxu0 0.0
    %2264 = vmatpush.msra.mxu0 0.0
    %2265 = vmatpush.msra.mxu0 0.0
    %2266 = vmatpush.msra.mxu0 0.0
    %2267 = vmatpush.msra.mxu0 0.0
    %2268 = vmatpush.msra.mxu0 0.0
    %2269 = vmatpush.msra.mxu0 0.0
    %2270 = vmatpush.msra.mxu0 0.0
    %2271 = vmatpush.msra.mxu0 0.0
    %2272 = vmatpush.msra.mxu0 %v1459
    %2273 = vmatpush.msra.mxu0 %v1230
    %2274 = vmatpush.msra.mxu0 %v1229
    %2275 = vmatmul.f32.gmra.mxu0 %v2217
    %v2276 = vpop.f32.mrf.mxu0
    %v2277 = vadd.f32 0.0, %v2276
    %2278 = vdwg.mxu0
    %v2279 = vld [vmem:[#allocation4 + $0x38] sm:$0xff]
    %v2280 = vadd.f32 %v2279, %v2237
    %v2281 = vxor.u32 %v2280, 2147483648
    %v2282 = vmul.f32 %v2281, 1.442695
    %v2283 = vpow.pop %v2282
    %v2284 = vadd.f32 %v2283, 1.0
    %v2285 = vrcp.pop %v2284
    %v2286 = vmul.f32 %v2284, %v2285
    %v2287 = vsub.f32 1.0, %v2286
    %v2288 = vmul.f32 %v2285, %v2287
    %v2289 = vadd.f32 %v2285, %v2288
    %vm2290 = vweird.f32 %v2284
    %vm2291 = vweird.f32 %v2285
    %vm2292 = vmor %vm2290, %vm2291
    %v2293 = vsel %vm2292, %v2285, %v2289
    %v2294 = vand.u32 2147483647, %v2284
    %vm2295 = vcmp.eq.f32.partialorder %v2294, 8.507059e+37
    %v2296 = vand.u32 %v2284, 2147483648
    %v2297 = vor.u32 1.1754944e-38, %v2296
    %v2298 = vsel %vm2295, %v2297, %v2293
    %v2299 = vmul.f32 1.0, %v2298
    %v2300 = vld [vmem:[#allocation5 + $0x38] sm:$0xff]
    %v2301 = vadd.f32 %v2300, %v2257
    %v2302 = vxor.u32 %v2301, 2147483648
    %v2303 = vmul.f32 %v2302, 1.442695
    %v2304 = vpow.pop %v2303
    %v2305 = vadd.f32 %v2304, 1.0
    %v2306 = vrcp.pop %v2305
    %v2307 = vmul.f32 %v2305, %v2306
    %v2308 = vsub.f32 1.0, %v2307
    %v2309 = vmul.f32 %v2306, %v2308
    %v2310 = vadd.f32 %v2306, %v2309
    %vm2311 = vweird.f32 %v2305
    %vm2312 = vweird.f32 %v2306
    %vm2313 = vmor %vm2311, %vm2312
    %v2314 = vsel %vm2313, %v2306, %v2310
    %v2315 = vand.u32 2147483647, %v2305
    %vm2316 = vcmp.eq.f32.partialorder %v2315, 8.507059e+37
    %v2317 = vand.u32 %v2305, 2147483648
    %v2318 = vor.u32 1.1754944e-38, %v2317
    %v2319 = vsel %vm2316, %v2318, %v2314
    %v2320 = vmul.f32 1.0, %v2319
    %v2321 = vld [vmem:[#allocation6 + $0x38] sm:$0xff]
    %v2322 = vmul.f32 %v2299, %v2277
    %v2323 = vadd.f32 %v2321, %v2322
    %v2324 = vtanh.pop %v2323
    %v2325 = vsub.f32 1.0, %v2320
    %v2326 = vmul.f32 %v2325, %v2324
    %v2327 = vmul.f32 %v2320, %v2214
    %v2328 = vadd.f32 %v2326, %v2327
    %2329 = vst.msk [vmem:[#allocation3 + $0x38] sm:$0xff] %vm167, %v2328
    %v2330 = vld [vmem:[#allocation3] sm:$0xff]
    %v2331 = vld [vmem:[#allocation3 + $0x8] sm:$0xff]
    %v2332 = vld [vmem:[#allocation3 + $0x10] sm:$0xff]
    %v2333 = vld [vmem:[#allocation3 + $0x18] sm:$0xff]
    %v2334 = vld [vmem:[#allocation3 + $0x20] sm:$0xff]
    %v2335 = vld [vmem:[#allocation3 + $0x28] sm:$0xff]
    %v2336 = vld [vmem:[#allocation3 + $0x30] sm:$0xff]
    %v2337 = vld [vmem:[#allocation3 + $0x38] sm:$0xff]
    %v2338 = vld [vmem:[%s5] sm:$0xff]
    %v2339 = vld [vmem:[%s5 + $0x8] sm:$0xff]
    %v2340 = vld [vmem:[%s5 + $0x10] sm:$0x3]
    %v2341 = vld [vmem:[%s6] sm:$0x1]
    %v2343 = vperm.slane %v2341, 0
    %v2346 = vsel %vm167, %v2330, 0
    %v2349 = vsel %vm167, %v2331, 0
    %v2352 = vsel %vm167, %v2332, 0
    %v2355 = vsel %vm167, %v2333, 0
    %v2358 = vsel %vm167, %v2334, 0
    %v2361 = vsel %vm167, %v2335, 0
    %v2364 = vsel %vm167, %v2336, 0
    %v2367 = vsel %vm167, %v2337, 0
    %v2370 = vsel %vm283, %v2340, 0
    %2372 = vmatpush.msra.mxu0 0.0
    %2373 = vmatpush.msra.mxu0 0.0
    %2374 = vmatpush.msra.mxu0 0.0
    %2375 = vmatpush.msra.mxu0 0.0
    %2376 = vmatpush.msra.mxu0 0.0
    %2377 = vmatpush.msra.mxu0 0.0
    %2378 = vmatpush.msra.mxu0 0.0
    %2379 = vmatpush.msra.mxu0 0.0
    %2380 = vmatpush.msra.mxu0 0.0
    %2381 = vmatpush.msra.mxu0 0.0
    %2382 = vmatpush.msra.mxu0 0.0
    %2383 = vmatpush.msra.mxu0 0.0
    %2384 = vmatpush.msra.mxu0 0.0
    %2385 = vmatpush.msra.mxu0 %v2370
    %2386 = vmatpush.msra.mxu0 %v2339
    %2387 = vmatpush.msra.mxu0 %v2338
    %2388 = vmatmul.f32.gmra.mxu0 %v2346
    %v2389 = vpop.f32.mrf.mxu0
    %v2390 = vadd.f32 %v2343, %v2389
    %2391 = vmatmul.f32.gmra.mxu0 %v2349
    %v2392 = vpop.f32.mrf.mxu0
    %v2393 = vadd.f32 %v2343, %v2392
    %2394 = vmatmul.f32.gmra.mxu0 %v2352
    %v2395 = vpop.f32.mrf.mxu0
    %v2396 = vadd.f32 %v2343, %v2395
    %2397 = vmatmul.f32.gmra.mxu0 %v2355
    %v2398 = vpop.f32.mrf.mxu0
    %v2399 = vadd.f32 %v2343, %v2398
    %2400 = vmatmul.f32.gmra.mxu0 %v2358
    %v2401 = vpop.f32.mrf.mxu0
    %v2402 = vadd.f32 %v2343, %v2401
    %2403 = vmatmul.f32.gmra.mxu0 %v2361
    %v2404 = vpop.f32.mrf.mxu0
    %v2405 = vadd.f32 %v2343, %v2404
    %2406 = vmatmul.f32.gmra.mxu0 %v2364
    %v2407 = vpop.f32.mrf.mxu0
    %v2408 = vadd.f32 %v2343, %v2407
    %2409 = vmatmul.f32.gmra.mxu0 %v2367
    %v2410 = vpop.f32.mrf.mxu0
    %v2411 = vadd.f32 %v2343, %v2410
    %2412 = vdwg.mxu0
    %2413 = vst.msk [vmem:[%s7] sm:$0xff] %vm167, %v2390
    %2414 = vst.msk [vmem:[%s7 + $0x8] sm:$0xff] %vm167, %v2393
    %2415 = vst.msk [vmem:[%s7 + $0x10] sm:$0xff] %vm167, %v2396
    %2416 = vst.msk [vmem:[%s7 + $0x18] sm:$0xff] %vm167, %v2399
    %2417 = vst.msk [vmem:[%s7 + $0x20] sm:$0xff] %vm167, %v2402
    %2418 = vst.msk [vmem:[%s7 + $0x28] sm:$0xff] %vm167, %v2405
    %2419 = vst.msk [vmem:[%s7 + $0x30] sm:$0xff] %vm167, %v2408
    %2420 = vst.msk [vmem:[%s7 + $0x38] sm:$0xff] %vm167, %v2411
    // Predicated region
    $region42: #{tpu_custom_call.1} parent=1 // pred_check
      _
    $region43: #{tpu_custom_call.1} parent=1 // pred_check_branch
      %2422 = sbr.rel (0) target = $region45
    $region44: #{tpu_custom_call.1} parent=1 // pred_region
      _
    $region45: #{tpu_custom_call.1} parent=1 // pred_fallthru
      _
    // Predicated region
    $region46: #{tpu_custom_call.1} parent=1 // pred_check
      _
    $region47: #{tpu_custom_call.1} parent=1 // pred_check_branch
      %2424 = sbr.rel (0) target = $region49
    $region48: #{tpu_custom_call.1} parent=1 // pred_region
      _
    $region49: #{tpu_custom_call.1} parent=1 // pred_fallthru
      _
    %2425 = vsyncpa [#allocation8], 1
    %2426 = vsyncpa [#allocation10], 1

</llo_original>
